<compile_context>
chip_gen: v6e
topology: v6e:2x2x1
jax: 0.10.0
libtpu: 0.0.40
codegen_flags: <defaults>
</compile_context>

<pallas_src>
import jax
import jax.numpy as jnp
from jax.experimental import pallas as pl
from jax.experimental.pallas import tpu as pltpu


# ------------------------------ Pallas kernel ------------------------------

def _lenet_kernel(xr_ref, wt1_ref, b1_ref, wt2_ref, b2_ref,
                  wf1_ref, bf1_ref, wf2_ref, bf2_ref, wf3_ref, bf3_ref, o_ref):
    """Whole MyLeNet forward for one image.

    xr_ref : (1, 4, 8, 32*Cin) bf16  padded 32x32 input, rows split mod 4,
                                     lanes pack (width, channel).
    wt1_ref: (5, 32*Cin, 256) bf16   conv1 Toeplitz weights, cols = px*128+(6*xo+co)
    wt2_ref: (5, 128, 256)    bf16   conv2 Toeplitz weights, cols = px*128+(16*x2+c2)
    b*_ref : (1, 128/...)     f32    packed biases (zero in padding lanes)
    wf*_ref: GEMM-ready FC weights (bf16), wf3 padded to 128 output lanes
    o_ref  : (1, 1, 128)      f32    logits (lanes >= n_classes are zero)
    """
    x = xr_ref[0]                                   # (4, 8, 32*Cin)

    # ---- stage 1: conv1(5x5, pad 2) + ReLU + 2x2/2 max-pool ----------------
    # Nine distinct input row-bands (u = 2*s + py + kh, u in [0, 9)).
    bands1 = [x[u % 4, u // 4: u // 4 + 7, :] for u in range(9)]

    acc1 = [jnp.zeros((7, 256), jnp.float32) for _ in range(4)]   # v = 2*s + py
    for kh in range(5):
        w = wt1_ref[kh]                             # (32*Cin, 256), reused 4x
        for v in range(4):
            acc1[v] = acc1[v] + jnp.dot(bands1[v + kh], w,
                                        preferred_element_type=jnp.float32)

    b1 = b1_ref[...]
    pooled1 = []                                    # per row-parity s: (7, 128) bf16
    for s in range(2):
        m = jnp.maximum(
            jnp.maximum(acc1[2 * s][:, :128], acc1[2 * s][:, 128:]),
            jnp.maximum(acc1[2 * s + 1][:, :128], acc1[2 * s + 1][:, 128:]))
        pooled1.append(jnp.maximum(m + b1, 0.0).astype(jnp.bfloat16))

    # ---- stage 2: conv2(5x5, valid) + ReLU + 2x2/2 max-pool ----------------
    bands2 = [pooled1[u % 2][u // 2: u // 2 + 5, :] for u in range(6)]

    acc2 = [jnp.zeros((5, 256), jnp.float32) for _ in range(2)]   # py
    for kh in range(5):
        w = wt2_ref[kh]                             # (128, 256), reused 2x
        for py in range(2):
            acc2[py] = acc2[py] + jnp.dot(bands2[py + kh], w,
                                          preferred_element_type=jnp.float32)

    m2 = jnp.maximum(jnp.maximum(acc2[0][:, :128], acc2[0][:, 128:]),
                     jnp.maximum(acc2[1][:, :128], acc2[1][:, 128:]))
    pooled2 = jnp.maximum(m2 + b2_ref[...], 0.0).astype(jnp.bfloat16)   # (5, 128)

    # ---- stage 3: fc1 + ReLU -> fc2 + ReLU -> fc3 --------------------------
    h = jnp.zeros((1, wf1_ref.shape[1]), jnp.float32)
    for r in range(5):                              # contract the 5x128 flatten
        h = h + jnp.dot(pooled2[r:r + 1, :], wf1_ref[128 * r:128 * (r + 1), :],
                        preferred_element_type=jnp.float32)
    h = jnp.maximum(h + bf1_ref[...], 0.0).astype(jnp.bfloat16)
    h = jnp.dot(h, wf2_ref[...], preferred_element_type=jnp.float32)
    h = jnp.maximum(h + bf2_ref[...], 0.0).astype(jnp.bfloat16)
    logits = jnp.dot(h, wf3_ref[...], preferred_element_type=jnp.float32) + bf3_ref[...]
    o_ref[0] = logits                               # full-lane (1, 128) store


def _lenet_fused_call(xr, prep):
    n = xr.shape[0]
    lane = xr.shape[-1]
    args = (xr, prep["wt1"], prep["b1p"], prep["wt2"], prep["b2p"],
            prep["wf1"], prep["bf1"], prep["wf2"], prep["bf2"],
            prep["wf3"], prep["bf3"])

    def resident(a):
        zeros = (0,) * a.ndim
        return pl.BlockSpec(a.shape, lambda i, _z=zeros: _z)

    flops_img = (20 * 2 * 7 * lane * 256 + 10 * 2 * 5 * 128 * 256
                 + 5 * 2 * 128 * prep["wf1"].shape[1]
                 + 2 * prep["wf2"].shape[0] * prep["wf2"].shape[1]
                 + 2 * prep["wf3"].shape[0] * 128)
    bytes_acc = (xr.size * 2
                 + sum(int(a.size) * a.dtype.itemsize for a in args[1:])
                 + n * 128 * 4)

    return pl.pallas_call(
        _lenet_kernel,
        out_shape=jax.ShapeDtypeStruct((n, 1, 128), jnp.float32),
        grid=(n,),
        in_specs=[pl.BlockSpec((1, 4, 8, lane), lambda i: (i, 0, 0, 0))]
                 + [resident(a) for a in args[1:]],
        out_specs=pl.BlockSpec((1, 1, 128), lambda i: (i, 0, 0)),
        compiler_params=pltpu.CompilerParams(
            dimension_semantics=("parallel",)),
        cost_estimate=pl.CostEstimate(flops=n * flops_img, transcendentals=0,
                                      bytes_accessed=int(bytes_acc)),
    )(*args)


# ------------------------------ parameters ---------------------------------

def init_params(key, in_channels=3, n_classes=10):
    """PyTorch-style uniform(-1/sqrt(fan_in), 1/sqrt(fan_in)), torch layouts."""
    ks = jax.random.split(key, 10)

    def u(k, shape, fan_in):
        bound = 1.0 / jnp.sqrt(jnp.float32(fan_in))
        return jax.random.uniform(k, shape, jnp.float32, -bound, bound)

    return {
        "conv1_w": u(ks[0], (6, in_channels, 5, 5), in_channels * 25),
        "conv1_b": u(ks[1], (6,), in_channels * 25),
        "conv2_w": u(ks[2], (16, 6, 5, 5), 6 * 25),
        "conv2_b": u(ks[3], (16,), 6 * 25),
        "fc1_w": u(ks[4], (120, 16 * 5 * 5), 16 * 5 * 5),
        "fc1_b": u(ks[5], (120,), 16 * 5 * 5),
        "fc2_w": u(ks[6], (64, 120), 120),
        "fc2_b": u(ks[7], (64,), 120),
        "fc3_w": u(ks[8], (n_classes, 64), 64),
        "fc3_b": u(ks[9], (n_classes,), 64),
    }


def prepare_params(p):
    """One-time weight re-layout (outside the jitted forward).

    Conv weights become row-wise Toeplitz GEMM slabs so im2col never has to be
    built (neither in HBM nor in-kernel); the PyTorch NCHW-flatten permutation
    is folded into fc1; everything is padded so the kernel only sees
    128-lane-aligned slices.
    """
    f32, bf16 = jnp.float32, jnp.bfloat16
    ci = p["conv1_w"].shape[1]
    n_classes = p["fc3_w"].shape[0]
    assert n_classes <= 128

    # conv1 Toeplitz: wt1[kh, 3*w+ci, px*128 + 6*xo + co] = W1[co,ci,kh, w-2*xo-px]
    w1 = p["conv1_w"].astype(f32)                               # (6, ci, 5, 5)
    ww = jnp.arange(32)
    xo = jnp.arange(14)
    px = jnp.arange(2)
    kw = ww[None, None, :] - 2 * xo[None, :, None] - px[:, None, None]   # (2,14,32)
    valid = (kw >= 0) & (kw < 5)
    wp = jnp.transpose(w1, (2, 3, 1, 0))                        # (kh, kw, ci, co)
    g = wp[:, jnp.clip(kw, 0, 4)] * valid[None, :, :, :, None, None]
    g = jnp.transpose(g, (0, 3, 4, 1, 2, 5))                    # (kh, w, ci, px, xo, co)
    g = g.reshape(5, 32 * ci, 2, 84)
    wt1 = jnp.pad(g, ((0, 0), (0, 0), (0, 0), (0, 44))).reshape(5, 32 * ci, 256)

    # conv2 Toeplitz: wt2[kh, 6*w1+c1, px*128 + 16*x2 + c2] = W2[c2,c1,kh, w1-2*x2-px]
    w2 = p["conv2_w"].astype(f32)                               # (16, 6, 5, 5)
    w1i = jnp.arange(14)
    x2 = jnp.arange(5)
    kw2 = w1i[None, None, :] - 2 * x2[None, :, None] - px[:, None, None]  # (2,5,14)
    valid2 = (kw2 >= 0) & (kw2 < 5)
    wp2 = jnp.transpose(w2, (2, 3, 1, 0))                       # (kh, kw, c1, c2)
    g2 = wp2[:, jnp.clip(kw2, 0, 4)] * valid2[None, :, :, :, None, None]
    g2 = jnp.transpose(g2, (0, 3, 4, 1, 2, 5))                  # (kh, w1, c1, px, x2, c2)
    g2 = g2.reshape(5, 84, 2, 80)
    g2 = jnp.pad(g2, ((0, 0), (0, 44), (0, 0), (0, 48)))        # (5, 128, 2, 128)
    wt2 = g2.reshape(5, 128, 256)

    # packed biases (zero in padding lanes)
    b1p = jnp.pad(jnp.tile(p["conv1_b"].astype(f32), 14), (0, 44)).reshape(1, 128)
    b2p = jnp.pad(jnp.tile(p["conv2_b"].astype(f32), 5), (0, 48)).reshape(1, 128)

    # fc1: fold the PyTorch NCHW (c,h,w) flatten into the weight; rows are the
    # kernel's (y2, 16*x2+c2) packed layout padded to 128 lanes per row.
    wf1 = p["fc1_w"].astype(f32).reshape(-1, 16, 5, 5)          # (120, c2, y2, x2)
    wf1 = jnp.transpose(wf1, (0, 2, 3, 1)).reshape(-1, 5, 80)   # (120, y2, 16*x2+c2)
    wf1 = jnp.pad(wf1, ((0, 0), (0, 0), (0, 48))).reshape(-1, 640).T   # (640, 120)

    wf3 = jnp.pad(p["fc3_w"].astype(f32).T, ((0, 0), (0, 128 - n_classes)))
    bf3 = jnp.pad(p["fc3_b"].astype(f32), (0, 128 - n_classes)).reshape(1, 128)

    return {
        "wt1": wt1.astype(bf16), "b1p": b1p,
        "wt2": wt2.astype(bf16), "b2p": b2p,
        "wf1": wf1.astype(bf16), "bf1": p["fc1_b"].reshape(1, -1).astype(f32),
        "wf2": p["fc2_w"].T.astype(bf16),
        "bf2": p["fc2_b"].reshape(1, -1).astype(f32),
        "wf3": wf3.astype(bf16), "bf3": bf3,
    }


# -------------------------------- forward ----------------------------------

def lenet_forward(prep, x_nchw, n_classes=10):
    """MyLeNet forward.  x_nchw: (N, C, 28, 28) -> logits (N, n_classes)."""
    n, ci = x_nchw.shape[0], x_nchw.shape[1]
    x = jnp.transpose(x_nchw, (0, 2, 3, 1)).astype(jnp.bfloat16)        # NHWC
    x = jnp.pad(x, ((0, 0), (2, 2), (2, 2), (0, 0)))                    # (N,32,32,C)
    # split rows mod 4 (two stacked stride-2 pools) + pack (w, c) into lanes
    x = x.reshape(n, 8, 4, 32, ci).transpose(0, 2, 1, 3, 4)             # (N,4,8,32,C)
    xr = x.reshape(n, 4, 8, 32 * ci)
    out = _lenet_fused_call(xr, prep)                                    # (N,1,128)
    return out[:, 0, :n_classes]


# ------------------------- pure-JAX reference (f32) -------------------------

def lenet_reference(params, x_nchw):
    x = jnp.transpose(x_nchw, (0, 2, 3, 1)).astype(jnp.float32)

    def conv(x, w, b, pad):
        if pad:
            x = jnp.pad(x, ((0, 0), (pad, pad), (pad, pad), (0, 0)))
        n, h, wd, c = x.shape
        k = w.shape[-1]
        ho, wo = h - k + 1, wd - k + 1
        cols = jnp.stack([x[:, di:di + ho, dj:dj + wo, :]
                          for di in range(k) for dj in range(k)],
                         axis=3).reshape(n * ho * wo, k * k * c)
        w2 = jnp.transpose(w, (2, 3, 1, 0)).reshape(k * k * c, w.shape[0])
        y = cols @ w2 + b
        return jnp.maximum(y, 0.0).reshape(n, ho, wo, w.shape[0])

    def pool(x):
        return jnp.maximum(jnp.maximum(x[:, 0::2, 0::2, :], x[:, 0::2, 1::2, :]),
                           jnp.maximum(x[:, 1::2, 0::2, :], x[:, 1::2, 1::2, :]))

    x = pool(conv(x, params["conv1_w"], params["conv1_b"], 2))
    x = pool(conv(x, params["conv2_w"], params["conv2_b"], 0))
    x = jnp.transpose(x, (0, 3, 1, 2)).reshape(x.shape[0], -1)
    x = jnp.maximum(x @ params["fc1_w"].T + params["fc1_b"], 0.0)
    x = jnp.maximum(x @ params["fc2_w"].T + params["fc2_b"], 0.0)
    return x @ params["fc3_w"].T + params["fc3_b"]


if __name__ == "__main__":
    key = jax.random.PRNGKey(0)
    k_param, k_x = jax.random.split(key)
    params = init_params(k_param, in_channels=3, n_classes=10)
    prep = prepare_params(params)          # one-time weight re-layout (not jitted)
    # MNIST-style spatial size (28x28) is required by the 16*5*5 FC input.
    x = jax.random.normal(k_x, (2, 3, 28, 28), dtype=jnp.float32)

    logits = jax.jit(lenet_forward)(prep, x)
    jax.block_until_ready(logits)
    assert logits.shape == (2, 10), logits.shape

    ref = lenet_reference(params, x)
    err = float(jnp.max(jnp.abs(logits - ref)))
    assert err < 0.25, f"max abs err vs f32 reference: {err}"
    print("KERNEL_OK")
</pallas_src>

<mosaic_0001>
module attributes {stable_mosaic.version = 11 : i64} {
  func.func @_lenet_kernel(%arg0: i32, %arg1: memref<1x4x8x96xbf16, #tpu.memory_space<vmem>>, %arg2: memref<5x96x256xbf16, #tpu.memory_space<vmem>>, %arg3: memref<1x128xf32, #tpu.memory_space<vmem>>, %arg4: memref<5x128x256xbf16, #tpu.memory_space<vmem>>, %arg5: memref<1x128xf32, #tpu.memory_space<vmem>>, %arg6: memref<640x120xbf16, #tpu.memory_space<vmem>>, %arg7: memref<1x120xf32, #tpu.memory_space<vmem>>, %arg8: memref<120x64xbf16, #tpu.memory_space<vmem>>, %arg9: memref<1x64xf32, #tpu.memory_space<vmem>>, %arg10: memref<64x128xbf16, #tpu.memory_space<vmem>>, %arg11: memref<1x128xf32, #tpu.memory_space<vmem>>, %arg12: memref<1x1x128xf32, #tpu.memory_space<vmem>>) attributes {dimension_semantics = [#tpu.dimension_semantics<parallel>], iteration_bounds = array<i64: 2>, scalar_prefetch = 0 : i64, scratch_operands = 0 : i64, tpu.core_type = #tpu.core_type<tc>, window_params = [{transform_indices = @transform_0, window_bounds = array<i64: 1, 4, 8, 96>}, {pipeline_mode = #tpu.pipeline_mode<synchronous>, transform_indices = @transform_1, window_bounds = array<i64: 5, 96, 256>}, {pipeline_mode = #tpu.pipeline_mode<synchronous>, transform_indices = @transform_2, window_bounds = array<i64: 1, 128>}, {pipeline_mode = #tpu.pipeline_mode<synchronous>, transform_indices = @transform_3, window_bounds = array<i64: 5, 128, 256>}, {pipeline_mode = #tpu.pipeline_mode<synchronous>, transform_indices = @transform_4, window_bounds = array<i64: 1, 128>}, {pipeline_mode = #tpu.pipeline_mode<synchronous>, transform_indices = @transform_5, window_bounds = array<i64: 640, 120>}, {pipeline_mode = #tpu.pipeline_mode<synchronous>, transform_indices = @transform_6, window_bounds = array<i64: 1, 120>}, {pipeline_mode = #tpu.pipeline_mode<synchronous>, transform_indices = @transform_7, window_bounds = array<i64: 120, 64>}, {pipeline_mode = #tpu.pipeline_mode<synchronous>, transform_indices = @transform_8, window_bounds = array<i64: 1, 64>}, {pipeline_mode = #tpu.pipeline_mode<synchronous>, transform_indices = @transform_9, window_bounds = array<i64: 64, 128>}, {pipeline_mode = #tpu.pipeline_mode<synchronous>, transform_indices = @transform_10, window_bounds = array<i64: 1, 128>}, {transform_indices = @transform_11, window_bounds = array<i64: 1, 1, 128>}]} {
    %c0 = arith.constant 0 : index
    %c0_0 = arith.constant 0 : index
    %c0_1 = arith.constant 0 : index
    %c0_2 = arith.constant 0 : index
    %0 = vector.load %arg1[%c0, %c0_0, %c0_1, %c0_2] : memref<1x4x8x96xbf16, #tpu.memory_space<vmem>>, vector<1x4x8x96xbf16>
    %1 = vector.shape_cast %0 : vector<1x4x8x96xbf16> to vector<4x8x96xbf16>
    %2 = vector.extract_strided_slice %1 {offsets = [0, 0, 0], sizes = [1, 7, 96], strides = [1, 1, 1]} : vector<4x8x96xbf16> to vector<1x7x96xbf16>
    %3 = vector.shape_cast %2 : vector<1x7x96xbf16> to vector<7x96xbf16>
    %4 = vector.extract_strided_slice %1 {offsets = [1, 0, 0], sizes = [1, 7, 96], strides = [1, 1, 1]} : vector<4x8x96xbf16> to vector<1x7x96xbf16>
    %5 = vector.shape_cast %4 : vector<1x7x96xbf16> to vector<7x96xbf16>
    %6 = vector.extract_strided_slice %1 {offsets = [2, 0, 0], sizes = [1, 7, 96], strides = [1, 1, 1]} : vector<4x8x96xbf16> to vector<1x7x96xbf16>
    %7 = vector.shape_cast %6 : vector<1x7x96xbf16> to vector<7x96xbf16>
    %8 = vector.extract_strided_slice %1 {offsets = [3, 0, 0], sizes = [1, 7, 96], strides = [1, 1, 1]} : vector<4x8x96xbf16> to vector<1x7x96xbf16>
    %9 = vector.shape_cast %8 : vector<1x7x96xbf16> to vector<7x96xbf16>
    %10 = vector.extract_strided_slice %1 {offsets = [0, 1, 0], sizes = [1, 7, 96], strides = [1, 1, 1]} : vector<4x8x96xbf16> to vector<1x7x96xbf16>
    %11 = vector.shape_cast %10 : vector<1x7x96xbf16> to vector<7x96xbf16>
    %12 = vector.extract_strided_slice %1 {offsets = [1, 1, 0], sizes = [1, 7, 96], strides = [1, 1, 1]} : vector<4x8x96xbf16> to vector<1x7x96xbf16>
    %13 = vector.shape_cast %12 : vector<1x7x96xbf16> to vector<7x96xbf16>
    %14 = vector.extract_strided_slice %1 {offsets = [2, 1, 0], sizes = [1, 7, 96], strides = [1, 1, 1]} : vector<4x8x96xbf16> to vector<1x7x96xbf16>
    %15 = vector.shape_cast %14 : vector<1x7x96xbf16> to vector<7x96xbf16>
    %16 = vector.extract_strided_slice %1 {offsets = [3, 1, 0], sizes = [1, 7, 96], strides = [1, 1, 1]} : vector<4x8x96xbf16> to vector<1x7x96xbf16>
    %17 = vector.shape_cast %16 : vector<1x7x96xbf16> to vector<7x96xbf16>
    %cst = arith.constant 0.000000e+00 : f32
    %18 = vector.broadcast %cst : f32 to vector<7x256xf32>
    %cst_3 = arith.constant 0.000000e+00 : f32
    %19 = vector.broadcast %cst_3 : f32 to vector<7x256xf32>
    %cst_4 = arith.constant 0.000000e+00 : f32
    %20 = vector.broadcast %cst_4 : f32 to vector<7x256xf32>
    %cst_5 = arith.constant 0.000000e+00 : f32
    %21 = vector.broadcast %cst_5 : f32 to vector<7x256xf32>
    %c0_6 = arith.constant 0 : index
    %c0_7 = arith.constant 0 : index
    %c0_8 = arith.constant 0 : index
    %22 = vector.load %arg2[%c0_6, %c0_7, %c0_8] : memref<5x96x256xbf16, #tpu.memory_space<vmem>>, vector<1x96x256xbf16>
    %23 = vector.shape_cast %22 : vector<1x96x256xbf16> to vector<96x256xbf16>
    %cst_9 = arith.constant dense<0.000000e+00> : vector<7x256xf32>
    %24 = tpu.matmul %3, %23, %cst_9 {dimension_numbers = #tpu.dot_dimension_numbers<[1], [0], [0], [1], [0, 0, 1, 1], [], []>} : vector<7x96xbf16>, vector<96x256xbf16>, vector<7x256xf32> -> vector<7x256xf32>
    %25 = arith.addf %18, %24 : vector<7x256xf32>
    %cst_10 = arith.constant dense<0.000000e+00> : vector<7x256xf32>
    %26 = tpu.matmul %5, %23, %cst_10 {dimension_numbers = #tpu.dot_dimension_numbers<[1], [0], [0], [1], [0, 0, 1, 1], [], []>} : vector<7x96xbf16>, vector<96x256xbf16>, vector<7x256xf32> -> vector<7x256xf32>
    %27 = arith.addf %19, %26 : vector<7x256xf32>
    %cst_11 = arith.constant dense<0.000000e+00> : vector<7x256xf32>
    %28 = tpu.matmul %7, %23, %cst_11 {dimension_numbers = #tpu.dot_dimension_numbers<[1], [0], [0], [1], [0, 0, 1, 1], [], []>} : vector<7x96xbf16>, vector<96x256xbf16>, vector<7x256xf32> -> vector<7x256xf32>
    %29 = arith.addf %20, %28 : vector<7x256xf32>
    %cst_12 = arith.constant dense<0.000000e+00> : vector<7x256xf32>
    %30 = tpu.matmul %9, %23, %cst_12 {dimension_numbers = #tpu.dot_dimension_numbers<[1], [0], [0], [1], [0, 0, 1, 1], [], []>} : vector<7x96xbf16>, vector<96x256xbf16>, vector<7x256xf32> -> vector<7x256xf32>
    %31 = arith.addf %21, %30 : vector<7x256xf32>
    %c1 = arith.constant 1 : index
    %c0_13 = arith.constant 0 : index
    %c0_14 = arith.constant 0 : index
    %32 = vector.load %arg2[%c1, %c0_13, %c0_14] : memref<5x96x256xbf16, #tpu.memory_space<vmem>>, vector<1x96x256xbf16>
    %33 = vector.shape_cast %32 : vector<1x96x256xbf16> to vector<96x256xbf16>
    %cst_15 = arith.constant dense<0.000000e+00> : vector<7x256xf32>
    %34 = tpu.matmul %5, %33, %cst_15 {dimension_numbers = #tpu.dot_dimension_numbers<[1], [0], [0], [1], [0, 0, 1, 1], [], []>} : vector<7x96xbf16>, vector<96x256xbf16>, vector<7x256xf32> -> vector<7x256xf32>
    %35 = arith.addf %25, %34 : vector<7x256xf32>
    %cst_16 = arith.constant dense<0.000000e+00> : vector<7x256xf32>
    %36 = tpu.matmul %7, %33, %cst_16 {dimension_numbers = #tpu.dot_dimension_numbers<[1], [0], [0], [1], [0, 0, 1, 1], [], []>} : vector<7x96xbf16>, vector<96x256xbf16>, vector<7x256xf32> -> vector<7x256xf32>
    %37 = arith.addf %27, %36 : vector<7x256xf32>
    %cst_17 = arith.constant dense<0.000000e+00> : vector<7x256xf32>
    %38 = tpu.matmul %9, %33, %cst_17 {dimension_numbers = #tpu.dot_dimension_numbers<[1], [0], [0], [1], [0, 0, 1, 1], [], []>} : vector<7x96xbf16>, vector<96x256xbf16>, vector<7x256xf32> -> vector<7x256xf32>
    %39 = arith.addf %29, %38 : vector<7x256xf32>
    %cst_18 = arith.constant dense<0.000000e+00> : vector<7x256xf32>
    %40 = tpu.matmul %11, %33, %cst_18 {dimension_numbers = #tpu.dot_dimension_numbers<[1], [0], [0], [1], [0, 0, 1, 1], [], []>} : vector<7x96xbf16>, vector<96x256xbf16>, vector<7x256xf32> -> vector<7x256xf32>
    %41 = arith.addf %31, %40 : vector<7x256xf32>
    %c2 = arith.constant 2 : index
    %c0_19 = arith.constant 0 : index
    %c0_20 = arith.constant 0 : index
    %42 = vector.load %arg2[%c2, %c0_19, %c0_20] : memref<5x96x256xbf16, #tpu.memory_space<vmem>>, vector<1x96x256xbf16>
    %43 = vector.shape_cast %42 : vector<1x96x256xbf16> to vector<96x256xbf16>
    %cst_21 = arith.constant dense<0.000000e+00> : vector<7x256xf32>
    %44 = tpu.matmul %7, %43, %cst_21 {dimension_numbers = #tpu.dot_dimension_numbers<[1], [0], [0], [1], [0, 0, 1, 1], [], []>} : vector<7x96xbf16>, vector<96x256xbf16>, vector<7x256xf32> -> vector<7x256xf32>
    %45 = arith.addf %35, %44 : vector<7x256xf32>
    %cst_22 = arith.constant dense<0.000000e+00> : vector<7x256xf32>
    %46 = tpu.matmul %9, %43, %cst_22 {dimension_numbers = #tpu.dot_dimension_numbers<[1], [0], [0], [1], [0, 0, 1, 1], [], []>} : vector<7x96xbf16>, vector<96x256xbf16>, vector<7x256xf32> -> vector<7x256xf32>
    %47 = arith.addf %37, %46 : vector<7x256xf32>
    %cst_23 = arith.constant dense<0.000000e+00> : vector<7x256xf32>
    %48 = tpu.matmul %11, %43, %cst_23 {dimension_numbers = #tpu.dot_dimension_numbers<[1], [0], [0], [1], [0, 0, 1, 1], [], []>} : vector<7x96xbf16>, vector<96x256xbf16>, vector<7x256xf32> -> vector<7x256xf32>
    %49 = arith.addf %39, %48 : vector<7x256xf32>
    %cst_24 = arith.constant dense<0.000000e+00> : vector<7x256xf32>
    %50 = tpu.matmul %13, %43, %cst_24 {dimension_numbers = #tpu.dot_dimension_numbers<[1], [0], [0], [1], [0, 0, 1, 1], [], []>} : vector<7x96xbf16>, vector<96x256xbf16>, vector<7x256xf32> -> vector<7x256xf32>
    %51 = arith.addf %41, %50 : vector<7x256xf32>
    %c3 = arith.constant 3 : index
    %c0_25 = arith.constant 0 : index
    %c0_26 = arith.constant 0 : index
    %52 = vector.load %arg2[%c3, %c0_25, %c0_26] : memref<5x96x256xbf16, #tpu.memory_space<vmem>>, vector<1x96x256xbf16>
    %53 = vector.shape_cast %52 : vector<1x96x256xbf16> to vector<96x256xbf16>
    %cst_27 = arith.constant dense<0.000000e+00> : vector<7x256xf32>
    %54 = tpu.matmul %9, %53, %cst_27 {dimension_numbers = #tpu.dot_dimension_numbers<[1], [0], [0], [1], [0, 0, 1, 1], [], []>} : vector<7x96xbf16>, vector<96x256xbf16>, vector<7x256xf32> -> vector<7x256xf32>
    %55 = arith.addf %45, %54 : vector<7x256xf32>
    %cst_28 = arith.constant dense<0.000000e+00> : vector<7x256xf32>
    %56 = tpu.matmul %11, %53, %cst_28 {dimension_numbers = #tpu.dot_dimension_numbers<[1], [0], [0], [1], [0, 0, 1, 1], [], []>} : vector<7x96xbf16>, vector<96x256xbf16>, vector<7x256xf32> -> vector<7x256xf32>
    %57 = arith.addf %47, %56 : vector<7x256xf32>
    %cst_29 = arith.constant dense<0.000000e+00> : vector<7x256xf32>
    %58 = tpu.matmul %13, %53, %cst_29 {dimension_numbers = #tpu.dot_dimension_numbers<[1], [0], [0], [1], [0, 0, 1, 1], [], []>} : vector<7x96xbf16>, vector<96x256xbf16>, vector<7x256xf32> -> vector<7x256xf32>
    %59 = arith.addf %49, %58 : vector<7x256xf32>
    %cst_30 = arith.constant dense<0.000000e+00> : vector<7x256xf32>
    %60 = tpu.matmul %15, %53, %cst_30 {dimension_numbers = #tpu.dot_dimension_numbers<[1], [0], [0], [1], [0, 0, 1, 1], [], []>} : vector<7x96xbf16>, vector<96x256xbf16>, vector<7x256xf32> -> vector<7x256xf32>
    %61 = arith.addf %51, %60 : vector<7x256xf32>
    %c4 = arith.constant 4 : index
    %c0_31 = arith.constant 0 : index
    %c0_32 = arith.constant 0 : index
    %62 = vector.load %arg2[%c4, %c0_31, %c0_32] : memref<5x96x256xbf16, #tpu.memory_space<vmem>>, vector<1x96x256xbf16>
    %63 = vector.shape_cast %62 : vector<1x96x256xbf16> to vector<96x256xbf16>
    %cst_33 = arith.constant dense<0.000000e+00> : vector<7x256xf32>
    %64 = tpu.matmul %11, %63, %cst_33 {dimension_numbers = #tpu.dot_dimension_numbers<[1], [0], [0], [1], [0, 0, 1, 1], [], []>} : vector<7x96xbf16>, vector<96x256xbf16>, vector<7x256xf32> -> vector<7x256xf32>
    %65 = arith.addf %55, %64 : vector<7x256xf32>
    %cst_34 = arith.constant dense<0.000000e+00> : vector<7x256xf32>
    %66 = tpu.matmul %13, %63, %cst_34 {dimension_numbers = #tpu.dot_dimension_numbers<[1], [0], [0], [1], [0, 0, 1, 1], [], []>} : vector<7x96xbf16>, vector<96x256xbf16>, vector<7x256xf32> -> vector<7x256xf32>
    %67 = arith.addf %57, %66 : vector<7x256xf32>
    %cst_35 = arith.constant dense<0.000000e+00> : vector<7x256xf32>
    %68 = tpu.matmul %15, %63, %cst_35 {dimension_numbers = #tpu.dot_dimension_numbers<[1], [0], [0], [1], [0, 0, 1, 1], [], []>} : vector<7x96xbf16>, vector<96x256xbf16>, vector<7x256xf32> -> vector<7x256xf32>
    %69 = arith.addf %59, %68 : vector<7x256xf32>
    %cst_36 = arith.constant dense<0.000000e+00> : vector<7x256xf32>
    %70 = tpu.matmul %17, %63, %cst_36 {dimension_numbers = #tpu.dot_dimension_numbers<[1], [0], [0], [1], [0, 0, 1, 1], [], []>} : vector<7x96xbf16>, vector<96x256xbf16>, vector<7x256xf32> -> vector<7x256xf32>
    %71 = arith.addf %61, %70 : vector<7x256xf32>
    %c0_37 = arith.constant 0 : index
    %c0_38 = arith.constant 0 : index
    %72 = vector.load %arg3[%c0_37, %c0_38] : memref<1x128xf32, #tpu.memory_space<vmem>>, vector<1x128xf32>
    %73 = vector.extract_strided_slice %65 {offsets = [0, 0], sizes = [7, 128], strides = [1, 1]} : vector<7x256xf32> to vector<7x128xf32>
    %74 = vector.extract_strided_slice %65 {offsets = [0, 128], sizes = [7, 128], strides = [1, 1]} : vector<7x256xf32> to vector<7x128xf32>
    %75 = arith.maximumf %73, %74 : vector<7x128xf32>
    %76 = vector.extract_strided_slice %67 {offsets = [0, 0], sizes = [7, 128], strides = [1, 1]} : vector<7x256xf32> to vector<7x128xf32>
    %77 = vector.extract_strided_slice %67 {offsets = [0, 128], sizes = [7, 128], strides = [1, 1]} : vector<7x256xf32> to vector<7x128xf32>
    %78 = arith.maximumf %76, %77 : vector<7x128xf32>
    %79 = arith.maximumf %75, %78 : vector<7x128xf32>
    %80 = vector.broadcast %72 : vector<1x128xf32> to vector<7x128xf32>
    %81 = arith.addf %79, %80 : vector<7x128xf32>
    %cst_39 = arith.constant 0.000000e+00 : f32
    %82 = vector.broadcast %cst_39 : f32 to vector<7x128xf32>
    %83 = arith.maximumf %81, %82 : vector<7x128xf32>
    %84 = arith.truncf %83 : vector<7x128xf32> to vector<7x128xbf16>
    %85 = vector.extract_strided_slice %69 {offsets = [0, 0], sizes = [7, 128], strides = [1, 1]} : vector<7x256xf32> to vector<7x128xf32>
    %86 = vector.extract_strided_slice %69 {offsets = [0, 128], sizes = [7, 128], strides = [1, 1]} : vector<7x256xf32> to vector<7x128xf32>
    %87 = arith.maximumf %85, %86 : vector<7x128xf32>
    %88 = vector.extract_strided_slice %71 {offsets = [0, 0], sizes = [7, 128], strides = [1, 1]} : vector<7x256xf32> to vector<7x128xf32>
    %89 = vector.extract_strided_slice %71 {offsets = [0, 128], sizes = [7, 128], strides = [1, 1]} : vector<7x256xf32> to vector<7x128xf32>
    %90 = arith.maximumf %88, %89 : vector<7x128xf32>
    %91 = arith.maximumf %87, %90 : vector<7x128xf32>
    %92 = vector.broadcast %72 : vector<1x128xf32> to vector<7x128xf32>
    %93 = arith.addf %91, %92 : vector<7x128xf32>
    %cst_40 = arith.constant 0.000000e+00 : f32
    %94 = vector.broadcast %cst_40 : f32 to vector<7x128xf32>
    %95 = arith.maximumf %93, %94 : vector<7x128xf32>
    %96 = arith.truncf %95 : vector<7x128xf32> to vector<7x128xbf16>
    %97 = vector.extract_strided_slice %84 {offsets = [0, 0], sizes = [5, 128], strides = [1, 1]} : vector<7x128xbf16> to vector<5x128xbf16>
    %98 = vector.extract_strided_slice %96 {offsets = [0, 0], sizes = [5, 128], strides = [1, 1]} : vector<7x128xbf16> to vector<5x128xbf16>
    %99 = vector.extract_strided_slice %84 {offsets = [1, 0], sizes = [5, 128], strides = [1, 1]} : vector<7x128xbf16> to vector<5x128xbf16>
    %100 = vector.extract_strided_slice %96 {offsets = [1, 0], sizes = [5, 128], strides = [1, 1]} : vector<7x128xbf16> to vector<5x128xbf16>
    %101 = vector.extract_strided_slice %84 {offsets = [2, 0], sizes = [5, 128], strides = [1, 1]} : vector<7x128xbf16> to vector<5x128xbf16>
    %102 = vector.extract_strided_slice %96 {offsets = [2, 0], sizes = [5, 128], strides = [1, 1]} : vector<7x128xbf16> to vector<5x128xbf16>
    %cst_41 = arith.constant 0.000000e+00 : f32
    %103 = vector.broadcast %cst_41 : f32 to vector<5x256xf32>
    %cst_42 = arith.constant 0.000000e+00 : f32
    %104 = vector.broadcast %cst_42 : f32 to vector<5x256xf32>
    %c0_43 = arith.constant 0 : index
    %c0_44 = arith.constant 0 : index
    %c0_45 = arith.constant 0 : index
    %105 = vector.load %arg4[%c0_43, %c0_44, %c0_45] : memref<5x128x256xbf16, #tpu.memory_space<vmem>>, vector<1x128x256xbf16>
    %106 = vector.shape_cast %105 : vector<1x128x256xbf16> to vector<128x256xbf16>
    %cst_46 = arith.constant dense<0.000000e+00> : vector<5x256xf32>
    %107 = tpu.matmul %97, %106, %cst_46 {dimension_numbers = #tpu.dot_dimension_numbers<[1], [0], [0], [1], [0, 0, 1, 1], [], []>} : vector<5x128xbf16>, vector<128x256xbf16>, vector<5x256xf32> -> vector<5x256xf32>
    %108 = arith.addf %103, %107 : vector<5x256xf32>
    %cst_47 = arith.constant dense<0.000000e+00> : vector<5x256xf32>
    %109 = tpu.matmul %98, %106, %cst_47 {dimension_numbers = #tpu.dot_dimension_numbers<[1], [0], [0], [1], [0, 0, 1, 1], [], []>} : vector<5x128xbf16>, vector<128x256xbf16>, vector<5x256xf32> -> vector<5x256xf32>
    %110 = arith.addf %104, %109 : vector<5x256xf32>
    %c1_48 = arith.constant 1 : index
    %c0_49 = arith.constant 0 : index
    %c0_50 = arith.constant 0 : index
    %111 = vector.load %arg4[%c1_48, %c0_49, %c0_50] : memref<5x128x256xbf16, #tpu.memory_space<vmem>>, vector<1x128x256xbf16>
    %112 = vector.shape_cast %111 : vector<1x128x256xbf16> to vector<128x256xbf16>
    %cst_51 = arith.constant dense<0.000000e+00> : vector<5x256xf32>
    %113 = tpu.matmul %98, %112, %cst_51 {dimension_numbers = #tpu.dot_dimension_numbers<[1], [0], [0], [1], [0, 0, 1, 1], [], []>} : vector<5x128xbf16>, vector<128x256xbf16>, vector<5x256xf32> -> vector<5x256xf32>
    %114 = arith.addf %108, %113 : vector<5x256xf32>
    %cst_52 = arith.constant dense<0.000000e+00> : vector<5x256xf32>
    %115 = tpu.matmul %99, %112, %cst_52 {dimension_numbers = #tpu.dot_dimension_numbers<[1], [0], [0], [1], [0, 0, 1, 1], [], []>} : vector<5x128xbf16>, vector<128x256xbf16>, vector<5x256xf32> -> vector<5x256xf32>
    %116 = arith.addf %110, %115 : vector<5x256xf32>
    %c2_53 = arith.constant 2 : index
    %c0_54 = arith.constant 0 : index
    %c0_55 = arith.constant 0 : index
    %117 = vector.load %arg4[%c2_53, %c0_54, %c0_55] : memref<5x128x256xbf16, #tpu.memory_space<vmem>>, vector<1x128x256xbf16>
    %118 = vector.shape_cast %117 : vector<1x128x256xbf16> to vector<128x256xbf16>
    %cst_56 = arith.constant dense<0.000000e+00> : vector<5x256xf32>
    %119 = tpu.matmul %99, %118, %cst_56 {dimension_numbers = #tpu.dot_dimension_numbers<[1], [0], [0], [1], [0, 0, 1, 1], [], []>} : vector<5x128xbf16>, vector<128x256xbf16>, vector<5x256xf32> -> vector<5x256xf32>
    %120 = arith.addf %114, %119 : vector<5x256xf32>
    %cst_57 = arith.constant dense<0.000000e+00> : vector<5x256xf32>
    %121 = tpu.matmul %100, %118, %cst_57 {dimension_numbers = #tpu.dot_dimension_numbers<[1], [0], [0], [1], [0, 0, 1, 1], [], []>} : vector<5x128xbf16>, vector<128x256xbf16>, vector<5x256xf32> -> vector<5x256xf32>
    %122 = arith.addf %116, %121 : vector<5x256xf32>
    %c3_58 = arith.constant 3 : index
    %c0_59 = arith.constant 0 : index
    %c0_60 = arith.constant 0 : index
    %123 = vector.load %arg4[%c3_58, %c0_59, %c0_60] : memref<5x128x256xbf16, #tpu.memory_space<vmem>>, vector<1x128x256xbf16>
    %124 = vector.shape_cast %123 : vector<1x128x256xbf16> to vector<128x256xbf16>
    %cst_61 = arith.constant dense<0.000000e+00> : vector<5x256xf32>
    %125 = tpu.matmul %100, %124, %cst_61 {dimension_numbers = #tpu.dot_dimension_numbers<[1], [0], [0], [1], [0, 0, 1, 1], [], []>} : vector<5x128xbf16>, vector<128x256xbf16>, vector<5x256xf32> -> vector<5x256xf32>
    %126 = arith.addf %120, %125 : vector<5x256xf32>
    %cst_62 = arith.constant dense<0.000000e+00> : vector<5x256xf32>
    %127 = tpu.matmul %101, %124, %cst_62 {dimension_numbers = #tpu.dot_dimension_numbers<[1], [0], [0], [1], [0, 0, 1, 1], [], []>} : vector<5x128xbf16>, vector<128x256xbf16>, vector<5x256xf32> -> vector<5x256xf32>
    %128 = arith.addf %122, %127 : vector<5x256xf32>
    %c4_63 = arith.constant 4 : index
    %c0_64 = arith.constant 0 : index
    %c0_65 = arith.constant 0 : index
    %129 = vector.load %arg4[%c4_63, %c0_64, %c0_65] : memref<5x128x256xbf16, #tpu.memory_space<vmem>>, vector<1x128x256xbf16>
    %130 = vector.shape_cast %129 : vector<1x128x256xbf16> to vector<128x256xbf16>
    %cst_66 = arith.constant dense<0.000000e+00> : vector<5x256xf32>
    %131 = tpu.matmul %101, %130, %cst_66 {dimension_numbers = #tpu.dot_dimension_numbers<[1], [0], [0], [1], [0, 0, 1, 1], [], []>} : vector<5x128xbf16>, vector<128x256xbf16>, vector<5x256xf32> -> vector<5x256xf32>
    %132 = arith.addf %126, %131 : vector<5x256xf32>
    %cst_67 = arith.constant dense<0.000000e+00> : vector<5x256xf32>
    %133 = tpu.matmul %102, %130, %cst_67 {dimension_numbers = #tpu.dot_dimension_numbers<[1], [0], [0], [1], [0, 0, 1, 1], [], []>} : vector<5x128xbf16>, vector<128x256xbf16>, vector<5x256xf32> -> vector<5x256xf32>
    %134 = arith.addf %128, %133 : vector<5x256xf32>
    %135 = vector.extract_strided_slice %132 {offsets = [0, 0], sizes = [5, 128], strides = [1, 1]} : vector<5x256xf32> to vector<5x128xf32>
    %136 = vector.extract_strided_slice %132 {offsets = [0, 128], sizes = [5, 128], strides = [1, 1]} : vector<5x256xf32> to vector<5x128xf32>
    %137 = arith.maximumf %135, %136 : vector<5x128xf32>
    %138 = vector.extract_strided_slice %134 {offsets = [0, 0], sizes = [5, 128], strides = [1, 1]} : vector<5x256xf32> to vector<5x128xf32>
    %139 = vector.extract_strided_slice %134 {offsets = [0, 128], sizes = [5, 128], strides = [1, 1]} : vector<5x256xf32> to vector<5x128xf32>
    %140 = arith.maximumf %138, %139 : vector<5x128xf32>
    %141 = arith.maximumf %137, %140 : vector<5x128xf32>
    %c0_68 = arith.constant 0 : index
    %c0_69 = arith.constant 0 : index
    %142 = vector.load %arg5[%c0_68, %c0_69] : memref<1x128xf32, #tpu.memory_space<vmem>>, vector<1x128xf32>
    %143 = vector.broadcast %142 : vector<1x128xf32> to vector<5x128xf32>
    %144 = arith.addf %141, %143 : vector<5x128xf32>
    %cst_70 = arith.constant 0.000000e+00 : f32
    %145 = vector.broadcast %cst_70 : f32 to vector<5x128xf32>
    %146 = arith.maximumf %144, %145 : vector<5x128xf32>
    %147 = arith.truncf %146 : vector<5x128xf32> to vector<5x128xbf16>
    %cst_71 = arith.constant 0.000000e+00 : f32
    %148 = vector.broadcast %cst_71 : f32 to vector<1x120xf32>
    %149 = vector.extract_strided_slice %147 {offsets = [0, 0], sizes = [1, 128], strides = [1, 1]} : vector<5x128xbf16> to vector<1x128xbf16>
    %c0_72 = arith.constant 0 : index
    %c0_73 = arith.constant 0 : index
    %150 = vector.load %arg6[%c0_72, %c0_73] : memref<640x120xbf16, #tpu.memory_space<vmem>>, vector<128x120xbf16>
    %cst_74 = arith.constant dense<0.000000e+00> : vector<1x120xf32>
    %151 = tpu.matmul %149, %150, %cst_74 {dimension_numbers = #tpu.dot_dimension_numbers<[1], [0], [0], [1], [0, 0, 1, 1], [], []>} : vector<1x128xbf16>, vector<128x120xbf16>, vector<1x120xf32> -> vector<1x120xf32>
    %152 = arith.addf %148, %151 : vector<1x120xf32>
    %153 = vector.extract_strided_slice %147 {offsets = [1, 0], sizes = [1, 128], strides = [1, 1]} : vector<5x128xbf16> to vector<1x128xbf16>
    %c128 = arith.constant 128 : index
    %c0_75 = arith.constant 0 : index
    %154 = vector.load %arg6[%c128, %c0_75] : memref<640x120xbf16, #tpu.memory_space<vmem>>, vector<128x120xbf16>
    %cst_76 = arith.constant dense<0.000000e+00> : vector<1x120xf32>
    %155 = tpu.matmul %153, %154, %cst_76 {dimension_numbers = #tpu.dot_dimension_numbers<[1], [0], [0], [1], [0, 0, 1, 1], [], []>} : vector<1x128xbf16>, vector<128x120xbf16>, vector<1x120xf32> -> vector<1x120xf32>
    %156 = arith.addf %152, %155 : vector<1x120xf32>
    %157 = vector.extract_strided_slice %147 {offsets = [2, 0], sizes = [1, 128], strides = [1, 1]} : vector<5x128xbf16> to vector<1x128xbf16>
    %c256 = arith.constant 256 : index
    %c0_77 = arith.constant 0 : index
    %158 = vector.load %arg6[%c256, %c0_77] : memref<640x120xbf16, #tpu.memory_space<vmem>>, vector<128x120xbf16>
    %cst_78 = arith.constant dense<0.000000e+00> : vector<1x120xf32>
    %159 = tpu.matmul %157, %158, %cst_78 {dimension_numbers = #tpu.dot_dimension_numbers<[1], [0], [0], [1], [0, 0, 1, 1], [], []>} : vector<1x128xbf16>, vector<128x120xbf16>, vector<1x120xf32> -> vector<1x120xf32>
    %160 = arith.addf %156, %159 : vector<1x120xf32>
    %161 = vector.extract_strided_slice %147 {offsets = [3, 0], sizes = [1, 128], strides = [1, 1]} : vector<5x128xbf16> to vector<1x128xbf16>
    %c384 = arith.constant 384 : index
    %c0_79 = arith.constant 0 : index
    %162 = vector.load %arg6[%c384, %c0_79] : memref<640x120xbf16, #tpu.memory_space<vmem>>, vector<128x120xbf16>
    %cst_80 = arith.constant dense<0.000000e+00> : vector<1x120xf32>
    %163 = tpu.matmul %161, %162, %cst_80 {dimension_numbers = #tpu.dot_dimension_numbers<[1], [0], [0], [1], [0, 0, 1, 1], [], []>} : vector<1x128xbf16>, vector<128x120xbf16>, vector<1x120xf32> -> vector<1x120xf32>
    %164 = arith.addf %160, %163 : vector<1x120xf32>
    %165 = vector.extract_strided_slice %147 {offsets = [4, 0], sizes = [1, 128], strides = [1, 1]} : vector<5x128xbf16> to vector<1x128xbf16>
    %c512 = arith.constant 512 : index
    %c0_81 = arith.constant 0 : index
    %166 = vector.load %arg6[%c512, %c0_81] : memref<640x120xbf16, #tpu.memory_space<vmem>>, vector<128x120xbf16>
    %cst_82 = arith.constant dense<0.000000e+00> : vector<1x120xf32>
    %167 = tpu.matmul %165, %166, %cst_82 {dimension_numbers = #tpu.dot_dimension_numbers<[1], [0], [0], [1], [0, 0, 1, 1], [], []>} : vector<1x128xbf16>, vector<128x120xbf16>, vector<1x120xf32> -> vector<1x120xf32>
    %168 = arith.addf %164, %167 : vector<1x120xf32>
    %c0_83 = arith.constant 0 : index
    %c0_84 = arith.constant 0 : index
    %169 = vector.load %arg7[%c0_83, %c0_84] : memref<1x120xf32, #tpu.memory_space<vmem>>, vector<1x120xf32>
    %170 = arith.addf %168, %169 : vector<1x120xf32>
    %cst_85 = arith.constant 0.000000e+00 : f32
    %171 = vector.broadcast %cst_85 : f32 to vector<1x120xf32>
    %172 = arith.maximumf %170, %171 : vector<1x120xf32>
    %173 = arith.truncf %172 : vector<1x120xf32> to vector<1x120xbf16>
    %c0_86 = arith.constant 0 : index
    %c0_87 = arith.constant 0 : index
    %174 = vector.load %arg8[%c0_86, %c0_87] : memref<120x64xbf16, #tpu.memory_space<vmem>>, vector<120x64xbf16>
    %cst_88 = arith.constant dense<0.000000e+00> : vector<1x64xf32>
    %175 = tpu.matmul %173, %174, %cst_88 {dimension_numbers = #tpu.dot_dimension_numbers<[1], [0], [0], [1], [0, 0, 1, 1], [], []>} : vector<1x120xbf16>, vector<120x64xbf16>, vector<1x64xf32> -> vector<1x64xf32>
    %c0_89 = arith.constant 0 : index
    %c0_90 = arith.constant 0 : index
    %176 = vector.load %arg9[%c0_89, %c0_90] : memref<1x64xf32, #tpu.memory_space<vmem>>, vector<1x64xf32>
    %177 = arith.addf %175, %176 : vector<1x64xf32>
    %cst_91 = arith.constant 0.000000e+00 : f32
    %178 = vector.broadcast %cst_91 : f32 to vector<1x64xf32>
    %179 = arith.maximumf %177, %178 : vector<1x64xf32>
    %180 = arith.truncf %179 : vector<1x64xf32> to vector<1x64xbf16>
    %c0_92 = arith.constant 0 : index
    %c0_93 = arith.constant 0 : index
    %181 = vector.load %arg10[%c0_92, %c0_93] : memref<64x128xbf16, #tpu.memory_space<vmem>>, vector<64x128xbf16>
    %cst_94 = arith.constant dense<0.000000e+00> : vector<1x128xf32>
    %182 = tpu.matmul %180, %181, %cst_94 {dimension_numbers = #tpu.dot_dimension_numbers<[1], [0], [0], [1], [0, 0, 1, 1], [], []>} : vector<1x64xbf16>, vector<64x128xbf16>, vector<1x128xf32> -> vector<1x128xf32>
    %c0_95 = arith.constant 0 : index
    %c0_96 = arith.constant 0 : index
    %183 = vector.load %arg11[%c0_95, %c0_96] : memref<1x128xf32, #tpu.memory_space<vmem>>, vector<1x128xf32>
    %184 = arith.addf %182, %183 : vector<1x128xf32>
    %c0_97 = arith.constant 0 : index
    %c0_98 = arith.constant 0 : index
    %c0_99 = arith.constant 0 : index
    %185 = vector.load %arg12[%c0_97, %c0_98, %c0_99] : memref<1x1x128xf32, #tpu.memory_space<vmem>>, vector<1x1x128xf32>
    %186 = vector.shape_cast %185 : vector<1x1x128xf32> to vector<1x128xf32>
    %187 = vector.shape_cast %184 : vector<1x128xf32> to vector<1x1x128xf32>
    tpu.vector_store %arg12[%c0_97, %c0_98, %c0_99], %187 {strides = array<i32>} : memref<1x1x128xf32, #tpu.memory_space<vmem>>, vector<1x1x128xf32>,
    return
  }
  func.func @transform_0(%arg0: i32) -> (i32, i32, i32, i32) {
    %c0_i32 = arith.constant 0 : i32
    %c0_i32_0 = arith.constant 0 : i32
    %c0_i32_1 = arith.constant 0 : i32
    %c0_i32_2 = arith.constant 0 : i32
    return %arg0, %c0_i32, %c0_i32_0, %c0_i32_1 : i32, i32, i32, i32
  }
  func.func @transform_1(%arg0: i32) -> (i32, i32, i32) {
    %c0_i32 = arith.constant 0 : i32
    %c0_i32_0 = arith.constant 0 : i32
    %c0_i32_1 = arith.constant 0 : i32
    %c0_i32_2 = arith.constant 0 : i32
    return %c0_i32, %c0_i32_0, %c0_i32_1 : i32, i32, i32
  }
  func.func @transform_2(%arg0: i32) -> (i32, i32) {
    %c0_i32 = arith.constant 0 : i32
    %c0_i32_0 = arith.constant 0 : i32
    %c0_i32_1 = arith.constant 0 : i32
    return %c0_i32, %c0_i32_0 : i32, i32
  }
  func.func @transform_3(%arg0: i32) -> (i32, i32, i32) {
    %c0_i32 = arith.constant 0 : i32
    %c0_i32_0 = arith.constant 0 : i32
    %c0_i32_1 = arith.constant 0 : i32
    %c0_i32_2 = arith.constant 0 : i32
    return %c0_i32, %c0_i32_0, %c0_i32_1 : i32, i32, i32
  }
  func.func @transform_4(%arg0: i32) -> (i32, i32) {
    %c0_i32 = arith.constant 0 : i32
    %c0_i32_0 = arith.constant 0 : i32
    %c0_i32_1 = arith.constant 0 : i32
    return %c0_i32, %c0_i32_0 : i32, i32
  }
  func.func @transform_5(%arg0: i32) -> (i32, i32) {
    %c0_i32 = arith.constant 0 : i32
    %c0_i32_0 = arith.constant 0 : i32
    %c0_i32_1 = arith.constant 0 : i32
    return %c0_i32, %c0_i32_0 : i32, i32
  }
  func.func @transform_6(%arg0: i32) -> (i32, i32) {
    %c0_i32 = arith.constant 0 : i32
    %c0_i32_0 = arith.constant 0 : i32
    %c0_i32_1 = arith.constant 0 : i32
    return %c0_i32, %c0_i32_0 : i32, i32
  }
  func.func @transform_7(%arg0: i32) -> (i32, i32) {
    %c0_i32 = arith.constant 0 : i32
    %c0_i32_0 = arith.constant 0 : i32
    %c0_i32_1 = arith.constant 0 : i32
    return %c0_i32, %c0_i32_0 : i32, i32
  }
  func.func @transform_8(%arg0: i32) -> (i32, i32) {
    %c0_i32 = arith.constant 0 : i32
    %c0_i32_0 = arith.constant 0 : i32
    %c0_i32_1 = arith.constant 0 : i32
    return %c0_i32, %c0_i32_0 : i32, i32
  }
  func.func @transform_9(%arg0: i32) -> (i32, i32) {
    %c0_i32 = arith.constant 0 : i32
    %c0_i32_0 = arith.constant 0 : i32
    %c0_i32_1 = arith.constant 0 : i32
    return %c0_i32, %c0_i32_0 : i32, i32
  }
  func.func @transform_10(%arg0: i32) -> (i32, i32) {
    %c0_i32 = arith.constant 0 : i32
    %c0_i32_0 = arith.constant 0 : i32
    %c0_i32_1 = arith.constant 0 : i32
    return %c0_i32, %c0_i32_0 : i32, i32
  }
  func.func @transform_11(%arg0: i32) -> (i32, i32, i32) {
    %c0_i32 = arith.constant 0 : i32
    %c0_i32_0 = arith.constant 0 : i32
    %c0_i32_1 = arith.constant 0 : i32
    return %arg0, %c0_i32, %c0_i32_0 : i32, i32, i32
  }
}

</mosaic_0001>

<llo_original>
// kernel: lenet_forward.1
$region0: #{lenet_forward.1}
  #allocation0 [shape = 'u32[]', space=smem, size = 0x4, offset = 0x4, fixed_abs, tag = 'smem constant byte address 0x4 - core index']
  #allocation1 [shape = 'u32[144,128]{1,0:T(1,128)}', space=vmem, size = 0x12000, scoped, tag = 'internal scratch']
  %s0 = inlined_call_operand.vmem [shape: bf16[2,4,8,96], index: 0, kind: input, shape index: {}]
  %s1 = inlined_call_operand.vmem [shape: bf16[5,96,256], index: 1, kind: input, shape index: {}]
  %s2 = inlined_call_operand.vmem [shape: f32[1,128], index: 2, kind: input, shape index: {}]
  %s3 = inlined_call_operand.vmem [shape: bf16[5,128,256], index: 3, kind: input, shape index: {}]
  %s4 = inlined_call_operand.vmem [shape: f32[1,128], index: 4, kind: input, shape index: {}]
  %s5 = inlined_call_operand.vmem [shape: bf16[640,120], index: 5, kind: input, shape index: {}]
  %s6 = inlined_call_operand.vmem [shape: f32[1,120], index: 6, kind: input, shape index: {}]
  %s7 = inlined_call_operand.vmem [shape: bf16[120,64], index: 7, kind: input, shape index: {}]
  %s8 = inlined_call_operand.vmem [shape: f32[1,64], index: 8, kind: input, shape index: {}]
  %s9 = inlined_call_operand.vmem [shape: bf16[64,128], index: 9, kind: input, shape index: {}]
  %s10 = inlined_call_operand.vmem [shape: f32[1,128], index: 10, kind: input, shape index: {}]
  %s11 = inlined_call_operand.hbm [shape: f32[2,1,128], index: 11, kind: output, shape index: {}]
  %s12 = sld [smem:[#allocation0]]
  $region77: #{lenet_forward.1} parent=0
    _
  %s14 = ssub.s32 1, %s12
  %s15 = scalar_select 0, %s14, %s12
  $region1: #{lenet_forward.1} parent=0
    #allocation2 [shape = 'u8[1024]{0}', space=vmem, size = 0x400, scoped, tag = 'output window, operand 0']
    #allocation3 [shape = 's32[2]{0}', space=sflag, size = 0x8, scoped, tag = 'scoped memory for lenet_forward.1']
    %16 = vsyncpa [#allocation3], 0
    %s17 = scalar_lea.sflag [#allocation3], 1
    %18 = vsyncpa %s17, 0
    loop: start=0, step=1, limit=4
    $region2: #{lenet_forward.1} parent=1 // loop_pre_header
      _
    $region3: #{lenet_forward.1} parent=1 // loop_header
      %s20 = sphi 0, %s24
      %p21 = scmp.ge.s32.totalorder %s20, 4
      %s30 = sphi 0, %s32
      %s33 = sphi 0, %s30
      %s34 = sphi 0, %s33
      %s50 = sphi 0, %s34
      %s54 = sphi 0, %s54
      %s56 = sphi 0, %s54
      %s57 = sphi 0, %s56
      %s71 = sphi 0, %s57
      %s75 = sphi 0, %s75
      %s77 = sphi 0, %s75
      %s78 = sphi 0, %s77
      %s92 = sphi 0, %s78
      %s96 = sphi 0, %s96
      %s98 = sphi 0, %s96
      %s99 = sphi 0, %s98
      %s113 = sphi 0, %s99
      %s117 = sphi 0, %s117
      %s119 = sphi 0, %s117
      %s120 = sphi 0, %s119
      %s134 = sphi 0, %s120
      %s138 = sphi 0, %s138
      %s140 = sphi 0, %s138
      %s141 = sphi 0, %s140
      %s155 = sphi 0, %s141
      %s159 = sphi 0, %s159
      %s161 = sphi 0, %s159
      %s162 = sphi 0, %s161
      %s176 = sphi 0, %s162
      %s180 = sphi 0, %s180
      %s182 = sphi 0, %s180
      %s183 = sphi 0, %s182
      %s197 = sphi 0, %s183
      %s201 = sphi 0, %s201
      %s203 = sphi 0, %s201
      %s204 = sphi 0, %s203
      %s218 = sphi 0, %s204
      %s222 = sphi 0, %s222
      %s224 = sphi 0, %s222
      %s225 = sphi 0, %s224
      %s239 = sphi 0, %s225
      %s243 = sphi 0, %s243
      %s245 = sphi 0, %s243
      %s246 = sphi 0, %s245
      %s260 = sphi 0, %s246
      %s266 = sphi 0, %s268
      %s269 = sphi 0, %s266
      %s270 = sphi 0, %s269
      %s286 = sphi 0, %s270
    $region4: #{lenet_forward.1} parent=1 // loop_header_branch
      %23 = sbr.rel (%p21) target = $region8
    $region5: #{lenet_forward.1} parent=1 // loop_body
      %s25 = ssub.s32 %s20, 1
      %s26 = ssub.s32 %s20, 2
      %s27 = sadd.s32 %s20, 1
      %s28 = ssub.s32 %s20, %s27
      %p29 = scmp.eq.s32.totalorder %s28, 0
      %s31 = sadd.s32 %s30, 1
      %s32 = scalar_select %p29, %s30, %s31
      %p35 = pneg %p29
      %p36 = scmp.eq.s32.totalorder %s20, 1
      %p37 = por %p35, %p36
      %p38 = scmp.ne.s32.totalorder %s30, %s33
      %p39 = scmp.eq.s32.totalorder %s20, 0
      %p40 = por %p38, %p39
      %p41 = scmp.ne.s32.totalorder %s30, %s33
      %p42 = scmp.eq.s32.totalorder %s25, 1
      %p43 = por %p41, %p42
      %p44 = scmp.ne.s32.totalorder %s33, %s34
      %p45 = scmp.eq.s32.totalorder %s25, 0
      %p46 = por %p44, %p45
      %p47 = scmp.ne.s32.totalorder %s33, %s34
      %p48 = scmp.eq.s32.totalorder %s26, 1
      %p49 = por %p47, %p48
      %p51 = scmp.ne.s32.totalorder %s34, %s50
      %p52 = scmp.eq.s32.totalorder %s26, 0
      %p53 = por %p51, %p52
      %s55 = sadd.s32 %s54, 1
      %p58 = scmp.eq.s32.totalorder %s20, 1
      %p59 = scmp.ne.s32.totalorder %s54, %s56
      %p60 = scmp.eq.s32.totalorder %s20, 0
      %p61 = por %p59, %p60
      %p62 = scmp.ne.s32.totalorder %s54, %s56
      %p63 = scmp.eq.s32.totalorder %s25, 1
      %p64 = por %p62, %p63
      %p65 = scmp.ne.s32.totalorder %s56, %s57
      %p66 = scmp.eq.s32.totalorder %s25, 0
      %p67 = por %p65, %p66
      %p68 = scmp.ne.s32.totalorder %s56, %s57
      %p69 = scmp.eq.s32.totalorder %s26, 1
      %p70 = por %p68, %p69
      %p72 = scmp.ne.s32.totalorder %s57, %s71
      %p73 = scmp.eq.s32.totalorder %s26, 0
      %p74 = por %p72, %p73
      %s76 = sadd.s32 %s75, 1
      %p79 = scmp.eq.s32.totalorder %s20, 1
      %p80 = scmp.ne.s32.totalorder %s75, %s77
      %p81 = scmp.eq.s32.totalorder %s20, 0
      %p82 = por %p80, %p81
      %p83 = scmp.ne.s32.totalorder %s75, %s77
      %p84 = scmp.eq.s32.totalorder %s25, 1
      %p85 = por %p83, %p84
      %p86 = scmp.ne.s32.totalorder %s77, %s78
      %p87 = scmp.eq.s32.totalorder %s25, 0
      %p88 = por %p86, %p87
      %p89 = scmp.ne.s32.totalorder %s77, %s78
      %p90 = scmp.eq.s32.totalorder %s26, 1
      %p91 = por %p89, %p90
      %p93 = scmp.ne.s32.totalorder %s78, %s92
      %p94 = scmp.eq.s32.totalorder %s26, 0
      %p95 = por %p93, %p94
      %s97 = sadd.s32 %s96, 1
      %p100 = scmp.eq.s32.totalorder %s20, 1
      %p101 = scmp.ne.s32.totalorder %s96, %s98
      %p102 = scmp.eq.s32.totalorder %s20, 0
      %p103 = por %p101, %p102
      %p104 = scmp.ne.s32.totalorder %s96, %s98
      %p105 = scmp.eq.s32.totalorder %s25, 1
      %p106 = por %p104, %p105
      %p107 = scmp.ne.s32.totalorder %s98, %s99
      %p108 = scmp.eq.s32.totalorder %s25, 0
      %p109 = por %p107, %p108
      %p110 = scmp.ne.s32.totalorder %s98, %s99
      %p111 = scmp.eq.s32.totalorder %s26, 1
      %p112 = por %p110, %p111
      %p114 = scmp.ne.s32.totalorder %s99, %s113
      %p115 = scmp.eq.s32.totalorder %s26, 0
      %p116 = por %p114, %p115
      %s118 = sadd.s32 %s117, 1
      %p121 = scmp.eq.s32.totalorder %s20, 1
      %p122 = scmp.ne.s32.totalorder %s117, %s119
      %p123 = scmp.eq.s32.totalorder %s20, 0
      %p124 = por %p122, %p123
      %p125 = scmp.ne.s32.totalorder %s117, %s119
      %p126 = scmp.eq.s32.totalorder %s25, 1
      %p127 = por %p125, %p126
      %p128 = scmp.ne.s32.totalorder %s119, %s120
      %p129 = scmp.eq.s32.totalorder %s25, 0
      %p130 = por %p128, %p129
      %p131 = scmp.ne.s32.totalorder %s119, %s120
      %p132 = scmp.eq.s32.totalorder %s26, 1
      %p133 = por %p131, %p132
      %p135 = scmp.ne.s32.totalorder %s120, %s134
      %p136 = scmp.eq.s32.totalorder %s26, 0
      %p137 = por %p135, %p136
      %s139 = sadd.s32 %s138, 1
      %p142 = scmp.eq.s32.totalorder %s20, 1
      %p143 = scmp.ne.s32.totalorder %s138, %s140
      %p144 = scmp.eq.s32.totalorder %s20, 0
      %p145 = por %p143, %p144
      %p146 = scmp.ne.s32.totalorder %s138, %s140
      %p147 = scmp.eq.s32.totalorder %s25, 1
      %p148 = por %p146, %p147
      %p149 = scmp.ne.s32.totalorder %s140, %s141
      %p150 = scmp.eq.s32.totalorder %s25, 0
      %p151 = por %p149, %p150
      %p152 = scmp.ne.s32.totalorder %s140, %s141
      %p153 = scmp.eq.s32.totalorder %s26, 1
      %p154 = por %p152, %p153
      %p156 = scmp.ne.s32.totalorder %s141, %s155
      %p157 = scmp.eq.s32.totalorder %s26, 0
      %p158 = por %p156, %p157
      %s160 = sadd.s32 %s159, 1
      %p163 = scmp.eq.s32.totalorder %s20, 1
      %p164 = scmp.ne.s32.totalorder %s159, %s161
      %p165 = scmp.eq.s32.totalorder %s20, 0
      %p166 = por %p164, %p165
      %p167 = scmp.ne.s32.totalorder %s159, %s161
      %p168 = scmp.eq.s32.totalorder %s25, 1
      %p169 = por %p167, %p168
      %p170 = scmp.ne.s32.totalorder %s161, %s162
      %p171 = scmp.eq.s32.totalorder %s25, 0
      %p172 = por %p170, %p171
      %p173 = scmp.ne.s32.totalorder %s161, %s162
      %p174 = scmp.eq.s32.totalorder %s26, 1
      %p175 = por %p173, %p174
      %p177 = scmp.ne.s32.totalorder %s162, %s176
      %p178 = scmp.eq.s32.totalorder %s26, 0
      %p179 = por %p177, %p178
      %s181 = sadd.s32 %s180, 1
      %p184 = scmp.eq.s32.totalorder %s20, 1
      %p185 = scmp.ne.s32.totalorder %s180, %s182
      %p186 = scmp.eq.s32.totalorder %s20, 0
      %p187 = por %p185, %p186
      %p188 = scmp.ne.s32.totalorder %s180, %s182
      %p189 = scmp.eq.s32.totalorder %s25, 1
      %p190 = por %p188, %p189
      %p191 = scmp.ne.s32.totalorder %s182, %s183
      %p192 = scmp.eq.s32.totalorder %s25, 0
      %p193 = por %p191, %p192
      %p194 = scmp.ne.s32.totalorder %s182, %s183
      %p195 = scmp.eq.s32.totalorder %s26, 1
      %p196 = por %p194, %p195
      %p198 = scmp.ne.s32.totalorder %s183, %s197
      %p199 = scmp.eq.s32.totalorder %s26, 0
      %p200 = por %p198, %p199
      %s202 = sadd.s32 %s201, 1
      %p205 = scmp.eq.s32.totalorder %s20, 1
      %p206 = scmp.ne.s32.totalorder %s201, %s203
      %p207 = scmp.eq.s32.totalorder %s20, 0
      %p208 = por %p206, %p207
      %p209 = scmp.ne.s32.totalorder %s201, %s203
      %p210 = scmp.eq.s32.totalorder %s25, 1
      %p211 = por %p209, %p210
      %p212 = scmp.ne.s32.totalorder %s203, %s204
      %p213 = scmp.eq.s32.totalorder %s25, 0
      %p214 = por %p212, %p213
      %p215 = scmp.ne.s32.totalorder %s203, %s204
      %p216 = scmp.eq.s32.totalorder %s26, 1
      %p217 = por %p215, %p216
      %p219 = scmp.ne.s32.totalorder %s204, %s218
      %p220 = scmp.eq.s32.totalorder %s26, 0
      %p221 = por %p219, %p220
      %s223 = sadd.s32 %s222, 1
      %p226 = scmp.eq.s32.totalorder %s20, 1
      %p227 = scmp.ne.s32.totalorder %s222, %s224
      %p228 = scmp.eq.s32.totalorder %s20, 0
      %p229 = por %p227, %p228
      %p230 = scmp.ne.s32.totalorder %s222, %s224
      %p231 = scmp.eq.s32.totalorder %s25, 1
      %p232 = por %p230, %p231
      %p233 = scmp.ne.s32.totalorder %s224, %s225
      %p234 = scmp.eq.s32.totalorder %s25, 0
      %p235 = por %p233, %p234
      %p236 = scmp.ne.s32.totalorder %s224, %s225
      %p237 = scmp.eq.s32.totalorder %s26, 1
      %p238 = por %p236, %p237
      %p240 = scmp.ne.s32.totalorder %s225, %s239
      %p241 = scmp.eq.s32.totalorder %s26, 0
      %p242 = por %p240, %p241
      %s244 = sadd.s32 %s243, 1
      %p247 = scmp.eq.s32.totalorder %s20, 1
      %p248 = scmp.ne.s32.totalorder %s243, %s245
      %p249 = scmp.eq.s32.totalorder %s20, 0
      %p250 = por %p248, %p249
      %p251 = scmp.ne.s32.totalorder %s243, %s245
      %p252 = scmp.eq.s32.totalorder %s25, 1
      %p253 = por %p251, %p252
      %p254 = scmp.ne.s32.totalorder %s245, %s246
      %p255 = scmp.eq.s32.totalorder %s25, 0
      %p256 = por %p254, %p255
      %p257 = scmp.ne.s32.totalorder %s245, %s246
      %p258 = scmp.eq.s32.totalorder %s26, 1
      %p259 = por %p257, %p258
      %p261 = scmp.ne.s32.totalorder %s246, %s260
      %p262 = scmp.eq.s32.totalorder %s26, 0
      %p263 = por %p261, %p262
      %s264 = ssub.s32 %s20, %s27
      %p265 = scmp.eq.s32.totalorder %s264, 0
      %s267 = sadd.s32 %s266, 1
      %s268 = scalar_select %p265, %s266, %s267
      %p271 = pneg %p265
      %p272 = scmp.eq.s32.totalorder %s20, 1
      %p273 = por %p271, %p272
      %p274 = scmp.ne.s32.totalorder %s266, %s269
      %p275 = scmp.eq.s32.totalorder %s20, 0
      %p276 = por %p274, %p275
      %p277 = scmp.ne.s32.totalorder %s266, %s269
      %p278 = scmp.eq.s32.totalorder %s25, 1
      %p279 = por %p277, %p278
      %p280 = scmp.ne.s32.totalorder %s269, %s270
      %p281 = scmp.eq.s32.totalorder %s25, 0
      %p282 = por %p280, %p281
      %p283 = scmp.ne.s32.totalorder %s269, %s270
      %p284 = scmp.eq.s32.totalorder %s26, 1
      %p285 = por %p283, %p284
      %p287 = scmp.ne.s32.totalorder %s270, %s286
      %p288 = scmp.eq.s32.totalorder %s26, 0
      %p289 = por %p287, %p288
      %p290 = scmp.le.s32.totalorder 1, %s20
      %p291 = scmp.lt.s32.totalorder %s20, 3
      %p292 = pnand %p290, %p291
      %p293 = pneg %p292
      // Predicated region
      $region9: #{lenet_forward.1} parent=5 // pred_check
        _
      $region10: #{lenet_forward.1} parent=5 // pred_check_branch
        %295 = sbr.rel (%p292) target = $region12
      $region11: #{lenet_forward.1} parent=5 // pred_region
        %s296 = ssub.s32 %s20, 1
        // Predicated region
        $region13: #{lenet_forward.1} parent=11 // pred_check
          %p297 = pneg %p67
        $region14: #{lenet_forward.1} parent=11 // pred_check_branch
          %299 = sbr.rel (%p297) target = $region16
        $region15: #{lenet_forward.1} parent=11 // pred_region
          _
        $region16: #{lenet_forward.1} parent=11 // pred_fallthru
          _
        // Predicated region
        $region17: #{lenet_forward.1} parent=11 // pred_check
          %p300 = pneg %p88
        $region18: #{lenet_forward.1} parent=11 // pred_check_branch
          %302 = sbr.rel (%p300) target = $region20
        $region19: #{lenet_forward.1} parent=11 // pred_region
          _
        $region20: #{lenet_forward.1} parent=11 // pred_fallthru
          _
        // Predicated region
        $region21: #{lenet_forward.1} parent=11 // pred_check
          %p303 = pneg %p109
        $region22: #{lenet_forward.1} parent=11 // pred_check_branch
          %305 = sbr.rel (%p303) target = $region24
        $region23: #{lenet_forward.1} parent=11 // pred_region
          _
        $region24: #{lenet_forward.1} parent=11 // pred_fallthru
          _
        // Predicated region
        $region25: #{lenet_forward.1} parent=11 // pred_check
          %p306 = pneg %p130
        $region26: #{lenet_forward.1} parent=11 // pred_check_branch
          %308 = sbr.rel (%p306) target = $region28
        $region27: #{lenet_forward.1} parent=11 // pred_region
          _
        $region28: #{lenet_forward.1} parent=11 // pred_fallthru
          _
        // Predicated region
        $region29: #{lenet_forward.1} parent=11 // pred_check
          %p309 = pneg %p151
        $region30: #{lenet_forward.1} parent=11 // pred_check_branch
          %311 = sbr.rel (%p309) target = $region32
        $region31: #{lenet_forward.1} parent=11 // pred_region
          _
        $region32: #{lenet_forward.1} parent=11 // pred_fallthru
          _
        // Predicated region
        $region33: #{lenet_forward.1} parent=11 // pred_check
          %p312 = pneg %p172
        $region34: #{lenet_forward.1} parent=11 // pred_check_branch
          %314 = sbr.rel (%p312) target = $region36
        $region35: #{lenet_forward.1} parent=11 // pred_region
          _
        $region36: #{lenet_forward.1} parent=11 // pred_fallthru
          _
        // Predicated region
        $region37: #{lenet_forward.1} parent=11 // pred_check
          %p315 = pneg %p193
        $region38: #{lenet_forward.1} parent=11 // pred_check_branch
          %317 = sbr.rel (%p315) target = $region40
        $region39: #{lenet_forward.1} parent=11 // pred_region
          _
        $region40: #{lenet_forward.1} parent=11 // pred_fallthru
          _
        // Predicated region
        $region41: #{lenet_forward.1} parent=11 // pred_check
          %p318 = pneg %p214
        $region42: #{lenet_forward.1} parent=11 // pred_check_branch
          %320 = sbr.rel (%p318) target = $region44
        $region43: #{lenet_forward.1} parent=11 // pred_region
          _
        $region44: #{lenet_forward.1} parent=11 // pred_fallthru
          _
        // Predicated region
        $region45: #{lenet_forward.1} parent=11 // pred_check
          %p321 = pneg %p235
        $region46: #{lenet_forward.1} parent=11 // pred_check_branch
          %323 = sbr.rel (%p321) target = $region48
        $region47: #{lenet_forward.1} parent=11 // pred_region
          _
        $region48: #{lenet_forward.1} parent=11 // pred_fallthru
          _
        // Predicated region
        $region49: #{lenet_forward.1} parent=11 // pred_check
          %p324 = pneg %p256
        $region50: #{lenet_forward.1} parent=11 // pred_check_branch
          %326 = sbr.rel (%p324) target = $region52
        $region51: #{lenet_forward.1} parent=11 // pred_region
          _
        $region52: #{lenet_forward.1} parent=11 // pred_fallthru
          _
      $region12: #{lenet_forward.1} parent=5 // pred_fallthru
        _
      %p327 = scmp.lt.s32.totalorder %s20, 2
      // Predicated region
      $region53: #{lenet_forward.1} parent=5 // pred_check
        %p328 = pneg %p327
      $region54: #{lenet_forward.1} parent=5 // pred_check_branch
        %330 = sbr.rel (%p328) target = $region56
      $region55: #{lenet_forward.1} parent=5 // pred_region
        // Predicated region
        $region57: #{lenet_forward.1} parent=55 // pred_check
          %p331 = pneg %p40
        $region58: #{lenet_forward.1} parent=55 // pred_check_branch
          %333 = sbr.rel (%p331) target = $region60
        $region59: #{lenet_forward.1} parent=55 // pred_region
          %p334 = scmp.lt.s32.totalorder %s20, 1
          %s335 = scalar_select %p334, %s20, 1
          %s336 = smul.addr %s335, 4
          %s337 = smul.addr %s336, 4
          %s338 = scalar_lea.vmem %s0, %s337
        $region60: #{lenet_forward.1} parent=55 // pred_fallthru
          _
      $region56: #{lenet_forward.1} parent=5 // pred_fallthru
        _
      %p339 = scmp.le.s32.totalorder 1, %s20
      %p340 = scmp.lt.s32.totalorder %s20, 3
      %p341 = pnand %p339, %p340
      %p342 = pneg %p341
      // Predicated region
      $region61: #{lenet_forward.1} parent=5 // pred_check
        _
      $region62: #{lenet_forward.1} parent=5 // pred_check_branch
        %344 = sbr.rel (%p341) target = $region64
      $region63: #{lenet_forward.1} parent=5 // pred_region
        %s345 = ssub.s32 %s20, 1
        %p346 = scmp.lt.s32.totalorder %s25, 1
        %s347 = scalar_select %p346, %s25, 1
        %s348 = smul.addr %s347, 4
        %s349 = smul.addr %s348, 4
        %s350 = scalar_lea.vmem %s0, %s349
        %p351 = pneg %p46
        %p352 = pneg %p43
        %p353 = pneg %p67
        %p354 = pneg %p64
        %p355 = pneg %p88
        %p356 = pneg %p85
        %p357 = pneg %p109
        %p358 = pneg %p106
        %p359 = pneg %p130
        %p360 = pneg %p127
        %p361 = pneg %p151
        %p362 = pneg %p148
        %p363 = pneg %p172
        %p364 = pneg %p169
        %p365 = pneg %p193
        %p366 = pneg %p190
        %p367 = pneg %p214
        %p368 = pneg %p211
        %p369 = pneg %p235
        %p370 = pneg %p232
        %p371 = pneg %p256
        %p372 = pneg %p253
        %p373 = pneg %p282
        %p374 = pneg %p279
        %s375 = sand.u32 %s269, 1
        %s376 = scalar_lea.sflag [#allocation3], %s375
        %s377 = sand.u32 %s269, 1
        %s378 = scalar_lea.vmem [#allocation2], %s377
        %p379 = scmp.lt.s32.totalorder %s25, 1
        %s380 = scalar_select %p379, %s25, 1
        %s381 = smul.addr %s380, 4
        %s382 = smul.addr %s381, 4
        %s383 = scalar_lea.vmem %s0, %s382
        %v385 = vld [vmem:[%s383] sm:$0xf]
        %v386 = vld [vmem:[%s383 + $0x4] sm:$0xf]
        %v387 = vld [vmem:[%s383 + $0x8] sm:$0xf]
        %v388 = vld [vmem:[%s383 + $0xc] sm:$0xf]
        %v389 = vld [vmem:[%s1] sm:$0xff]
        %v390 = vld [vmem:[%s1 + $0x8] sm:$0xff]
        %v391 = vld [vmem:[%s1 + $0x10] sm:$0xff]
        %v392 = vld [vmem:[%s1 + $0x18] sm:$0xff]
        %v393 = vld [vmem:[%s1 + $0x20] sm:$0xff]
        %v394 = vld [vmem:[%s1 + $0x28] sm:$0xff]
        %v395 = vld [vmem:[%s1 + $0x30] sm:$0xff]
        %v396 = vld [vmem:[%s1 + $0x38] sm:$0xff]
        %v397 = vld [vmem:[%s1 + $0x40] sm:$0xff]
        %v398 = vld [vmem:[%s1 + $0x48] sm:$0xff]
        %v399 = vld [vmem:[%s1 + $0x50] sm:$0xff]
        %v400 = vld [vmem:[%s1 + $0x58] sm:$0xff]
        %s401 = scalar_lea.vmem %s1, 96
        %v402 = vld [vmem:[%s401] sm:$0xff]
        %v403 = vld [vmem:[%s401 + $0x8] sm:$0xff]
        %v404 = vld [vmem:[%s401 + $0x10] sm:$0xff]
        %v405 = vld [vmem:[%s401 + $0x18] sm:$0xff]
        %v406 = vld [vmem:[%s401 + $0x20] sm:$0xff]
        %v407 = vld [vmem:[%s401 + $0x28] sm:$0xff]
        %v408 = vld [vmem:[%s401 + $0x30] sm:$0xff]
        %v409 = vld [vmem:[%s401 + $0x38] sm:$0xff]
        %v410 = vld [vmem:[%s401 + $0x40] sm:$0xff]
        %v411 = vld [vmem:[%s401 + $0x48] sm:$0xff]
        %v412 = vld [vmem:[%s401 + $0x50] sm:$0xff]
        %v413 = vld [vmem:[%s401 + $0x58] sm:$0xff]
        %v426 = vunpack.c.l.b16 %v402
        %v427 = vunpack.c.h.b16 %v402
        %v428 = vunpack.c.l.b16 %v403
        %v429 = vunpack.c.h.b16 %v403
        %v430 = vunpack.c.l.b16 %v404
        %v431 = vunpack.c.h.b16 %v404
        %v432 = vunpack.c.l.b16 %v405
        %v433 = vunpack.c.h.b16 %v405
        %v434 = vunpack.c.l.b16 %v406
        %v435 = vunpack.c.h.b16 %v406
        %v436 = vunpack.c.l.b16 %v407
        %v437 = vunpack.c.h.b16 %v407
        %v438 = vunpack.c.l.b16 %v408
        %v439 = vunpack.c.h.b16 %v408
        %v440 = vunpack.c.l.b16 %v409
        %v441 = vunpack.c.h.b16 %v409
        %v442 = vunpack.c.l.b16 %v410
        %v443 = vunpack.c.h.b16 %v410
        %v444 = vunpack.c.l.b16 %v411
        %v445 = vunpack.c.h.b16 %v411
        %v446 = vunpack.c.l.b16 %v412
        %v447 = vunpack.c.h.b16 %v412
        %v448 = vunpack.c.l.b16 %v413
        %v449 = vunpack.c.h.b16 %v413
        %v450 = vpack.c.b16 %v428, %v426
        %v451 = vpack.c.b16 %v429, %v427
        %v452 = vpack.c.b16 %v432, %v430
        %v453 = vpack.c.b16 %v433, %v431
        %v454 = vpack.c.b16 %v436, %v434
        %v455 = vpack.c.b16 %v437, %v435
        %v456 = vpack.c.b16 %v440, %v438
        %v457 = vpack.c.b16 %v441, %v439
        %v458 = vpack.c.b16 %v444, %v442
        %v459 = vpack.c.b16 %v445, %v443
        %v460 = vpack.c.b16 %v448, %v446
        %v461 = vpack.c.b16 %v449, %v447
        %vm474 = vcmask 785408
        %v476 = vsel %vm474, %v386, 0
        %478 = vmatprep.subr.bf16.mxu0 0
        %479 = vmatpush1.bf16.msra.mxu0 0
        %480 = vmatprep.subr.bf16.mxu0 0
        %481 = vmatpush1.bf16.msra.mxu0 0
        %482 = vmatprep.subr.bf16.mxu0 %v461
        %483 = vmatpush1.bf16.msra.mxu0 %v460
        %484 = vmatprep.subr.bf16.mxu0 %v459
        %485 = vmatpush1.bf16.msra.mxu0 %v458
        %486 = vmatprep.subr.bf16.mxu0 %v457
        %487 = vmatpush1.bf16.msra.mxu0 %v456
        %488 = vmatprep.subr.bf16.mxu0 %v455
        %489 = vmatpush1.bf16.msra.mxu0 %v454
        %490 = vmatprep.subr.bf16.mxu0 %v453
        %491 = vmatpush1.bf16.msra.mxu0 %v452
        %492 = vmatprep.subr.bf16.mxu0 %v451
        %493 = vmatpush1.bf16.msra.mxu0 %v450
        %494 = vmatprep.subr.bf16.mxu0 0
        %495 = vmatpush2.bf16.msra.mxu0 0
        %496 = vmatprep.subr.bf16.mxu0 0
        %497 = vmatpush2.bf16.msra.mxu0 0
        %498 = vmatprep.subr.bf16.mxu0 0
        %499 = vmatpush2.bf16.msra.mxu0 0
        %500 = vmatprep.subr.bf16.mxu0 0
        %501 = vmatpush2.bf16.msra.mxu0 0
        %502 = vmatprep.subr.bf16.mxu0 0
        %503 = vmatpush2.bf16.msra.mxu0 0
        %504 = vmatprep.subr.bf16.mxu0 0
        %505 = vmatpush2.bf16.msra.mxu0 0
        %506 = vmatprep.subr.bf16.mxu0 0
        %507 = vmatpush2.bf16.msra.mxu0 0
        %508 = vmatprep.subr.bf16.mxu0 0
        %509 = vmatpush2.bf16.msra.mxu0 0
        %510 = vmatprep.mubr.bf16.mxu0 0
        %511 = vmatmul.mubr.bf16.gmra.mxu0 %v476
        %v512 = vpop.f32.mrf.mxu0
        %v513 = vadd.f32 0.0, %v512
        %v514 = vpop.f32.mrf.mxu0
        %v515 = vadd.f32 0.0, %v514
        %v516 = vpop.f32.mrf.mxu0
        %v517 = vpop.f32.mrf.mxu0
        %518 = vdwg.mxu0
        %v531 = vunpack.c.l.b16 %v389
        %v532 = vunpack.c.h.b16 %v389
        %v533 = vunpack.c.l.b16 %v390
        %v534 = vunpack.c.h.b16 %v390
        %v535 = vunpack.c.l.b16 %v391
        %v536 = vunpack.c.h.b16 %v391
        %v537 = vunpack.c.l.b16 %v392
        %v538 = vunpack.c.h.b16 %v392
        %v539 = vunpack.c.l.b16 %v393
        %v540 = vunpack.c.h.b16 %v393
        %v541 = vunpack.c.l.b16 %v394
        %v542 = vunpack.c.h.b16 %v394
        %v543 = vunpack.c.l.b16 %v395
        %v544 = vunpack.c.h.b16 %v395
        %v545 = vunpack.c.l.b16 %v396
        %v546 = vunpack.c.h.b16 %v396
        %v547 = vunpack.c.l.b16 %v397
        %v548 = vunpack.c.h.b16 %v397
        %v549 = vunpack.c.l.b16 %v398
        %v550 = vunpack.c.h.b16 %v398
        %v551 = vunpack.c.l.b16 %v399
        %v552 = vunpack.c.h.b16 %v399
        %v553 = vunpack.c.l.b16 %v400
        %v554 = vunpack.c.h.b16 %v400
        %v555 = vpack.c.b16 %v533, %v531
        %v556 = vpack.c.b16 %v534, %v532
        %v557 = vpack.c.b16 %v537, %v535
        %v558 = vpack.c.b16 %v538, %v536
        %v559 = vpack.c.b16 %v541, %v539
        %v560 = vpack.c.b16 %v542, %v540
        %v561 = vpack.c.b16 %v545, %v543
        %v562 = vpack.c.b16 %v546, %v544
        %v563 = vpack.c.b16 %v549, %v547
        %v564 = vpack.c.b16 %v550, %v548
        %v565 = vpack.c.b16 %v553, %v551
        %v566 = vpack.c.b16 %v554, %v552
        %v580 = vsel %vm474, %v385, 0
        %582 = vmatprep.subr.bf16.mxu0 0
        %583 = vmatpush1.bf16.msra.mxu0 0
        %584 = vmatprep.subr.bf16.mxu0 0
        %585 = vmatpush1.bf16.msra.mxu0 0
        %586 = vmatprep.subr.bf16.mxu0 %v566
        %587 = vmatpush1.bf16.msra.mxu0 %v565
        %588 = vmatprep.subr.bf16.mxu0 %v564
        %589 = vmatpush1.bf16.msra.mxu0 %v563
        %590 = vmatprep.subr.bf16.mxu0 %v562
        %591 = vmatpush1.bf16.msra.mxu0 %v561
        %592 = vmatprep.subr.bf16.mxu0 %v560
        %593 = vmatpush1.bf16.msra.mxu0 %v559
        %594 = vmatprep.subr.bf16.mxu0 %v558
        %595 = vmatpush1.bf16.msra.mxu0 %v557
        %596 = vmatprep.subr.bf16.mxu0 %v556
        %597 = vmatpush1.bf16.msra.mxu0 %v555
        %598 = vmatprep.subr.bf16.mxu0 0
        %599 = vmatpush2.bf16.msra.mxu0 0
        %600 = vmatprep.subr.bf16.mxu0 0
        %601 = vmatpush2.bf16.msra.mxu0 0
        %602 = vmatprep.subr.bf16.mxu0 0
        %603 = vmatpush2.bf16.msra.mxu0 0
        %604 = vmatprep.subr.bf16.mxu0 0
        %605 = vmatpush2.bf16.msra.mxu0 0
        %606 = vmatprep.subr.bf16.mxu0 0
        %607 = vmatpush2.bf16.msra.mxu0 0
        %608 = vmatprep.subr.bf16.mxu0 0
        %609 = vmatpush2.bf16.msra.mxu0 0
        %610 = vmatprep.subr.bf16.mxu0 0
        %611 = vmatpush2.bf16.msra.mxu0 0
        %612 = vmatprep.subr.bf16.mxu0 0
        %613 = vmatpush2.bf16.msra.mxu0 0
        %614 = vmatprep.mubr.bf16.mxu0 0
        %615 = vmatmul.mubr.bf16.gmra.mxu0 %v580
        %v616 = vpop.f32.mrf.mxu0
        %v617 = vadd.f32 %v513, %v616
        %v618 = vpop.f32.mrf.mxu0
        %v619 = vadd.f32 %v515, %v618
        %v620 = vpop.f32.mrf.mxu0
        %v621 = vpop.f32.mrf.mxu0
        %622 = vdwg.mxu0
        %v624 = vsel %vm474, %v387, 0
        %626 = vmatprep.subr.bf16.mxu0 0
        %627 = vmatpush1.bf16.msra.mxu0 0
        %628 = vmatprep.subr.bf16.mxu0 0
        %629 = vmatpush1.bf16.msra.mxu0 0
        %630 = vmatprep.subr.bf16.mxu0 %v461
        %631 = vmatpush1.bf16.msra.mxu0 %v460
        %632 = vmatprep.subr.bf16.mxu0 %v459
        %633 = vmatpush1.bf16.msra.mxu0 %v458
        %634 = vmatprep.subr.bf16.mxu0 %v457
        %635 = vmatpush1.bf16.msra.mxu0 %v456
        %636 = vmatprep.subr.bf16.mxu0 %v455
        %637 = vmatpush1.bf16.msra.mxu0 %v454
        %638 = vmatprep.subr.bf16.mxu0 %v453
        %639 = vmatpush1.bf16.msra.mxu0 %v452
        %640 = vmatprep.subr.bf16.mxu0 %v451
        %641 = vmatpush1.bf16.msra.mxu0 %v450
        %642 = vmatprep.subr.bf16.mxu0 0
        %643 = vmatpush2.bf16.msra.mxu0 0
        %644 = vmatprep.subr.bf16.mxu0 0
        %645 = vmatpush2.bf16.msra.mxu0 0
        %646 = vmatprep.subr.bf16.mxu0 0
        %647 = vmatpush2.bf16.msra.mxu0 0
        %648 = vmatprep.subr.bf16.mxu0 0
        %649 = vmatpush2.bf16.msra.mxu0 0
        %650 = vmatprep.subr.bf16.mxu0 0
        %651 = vmatpush2.bf16.msra.mxu0 0
        %652 = vmatprep.subr.bf16.mxu0 0
        %653 = vmatpush2.bf16.msra.mxu0 0
        %654 = vmatprep.subr.bf16.mxu0 0
        %655 = vmatpush2.bf16.msra.mxu0 0
        %656 = vmatprep.subr.bf16.mxu0 0
        %657 = vmatpush2.bf16.msra.mxu0 0
        %658 = vmatprep.mubr.bf16.mxu0 0
        %659 = vmatmul.mubr.bf16.gmra.mxu0 %v624
        %v660 = vpop.f32.mrf.mxu0
        %v661 = vadd.f32 0.0, %v660
        %v662 = vpop.f32.mrf.mxu0
        %v663 = vadd.f32 0.0, %v662
        %v664 = vpop.f32.mrf.mxu0
        %v665 = vpop.f32.mrf.mxu0
        %666 = vdwg.mxu0
        %667 = vmatprep.subr.bf16.mxu0 0
        %668 = vmatpush1.bf16.msra.mxu0 0
        %669 = vmatprep.subr.bf16.mxu0 0
        %670 = vmatpush1.bf16.msra.mxu0 0
        %671 = vmatprep.subr.bf16.mxu0 %v566
        %672 = vmatpush1.bf16.msra.mxu0 %v565
        %673 = vmatprep.subr.bf16.mxu0 %v564
        %674 = vmatpush1.bf16.msra.mxu0 %v563
        %675 = vmatprep.subr.bf16.mxu0 %v562
        %676 = vmatpush1.bf16.msra.mxu0 %v561
        %677 = vmatprep.subr.bf16.mxu0 %v560
        %678 = vmatpush1.bf16.msra.mxu0 %v559
        %679 = vmatprep.subr.bf16.mxu0 %v558
        %680 = vmatpush1.bf16.msra.mxu0 %v557
        %681 = vmatprep.subr.bf16.mxu0 %v556
        %682 = vmatpush1.bf16.msra.mxu0 %v555
        %683 = vmatprep.subr.bf16.mxu0 0
        %684 = vmatpush2.bf16.msra.mxu0 0
        %685 = vmatprep.subr.bf16.mxu0 0
        %686 = vmatpush2.bf16.msra.mxu0 0
        %687 = vmatprep.subr.bf16.mxu0 0
        %688 = vmatpush2.bf16.msra.mxu0 0
        %689 = vmatprep.subr.bf16.mxu0 0
        %690 = vmatpush2.bf16.msra.mxu0 0
        %691 = vmatprep.subr.bf16.mxu0 0
        %692 = vmatpush2.bf16.msra.mxu0 0
        %693 = vmatprep.subr.bf16.mxu0 0
        %694 = vmatpush2.bf16.msra.mxu0 0
        %695 = vmatprep.subr.bf16.mxu0 0
        %696 = vmatpush2.bf16.msra.mxu0 0
        %697 = vmatprep.subr.bf16.mxu0 0
        %698 = vmatpush2.bf16.msra.mxu0 0
        %699 = vmatprep.mubr.bf16.mxu0 0
        %700 = vmatmul.mubr.bf16.gmra.mxu0 %v476
        %v701 = vpop.f32.mrf.mxu0
        %v702 = vadd.f32 %v661, %v701
        %v703 = vpop.f32.mrf.mxu0
        %v704 = vadd.f32 %v663, %v703
        %v705 = vpop.f32.mrf.mxu0
        %v706 = vpop.f32.mrf.mxu0
        %707 = vdwg.mxu0
        %v709 = vsel %vm474, %v388, 0
        %711 = vmatprep.subr.bf16.mxu0 0
        %712 = vmatpush1.bf16.msra.mxu0 0
        %713 = vmatprep.subr.bf16.mxu0 0
        %714 = vmatpush1.bf16.msra.mxu0 0
        %715 = vmatprep.subr.bf16.mxu0 %v461
        %716 = vmatpush1.bf16.msra.mxu0 %v460
        %717 = vmatprep.subr.bf16.mxu0 %v459
        %718 = vmatpush1.bf16.msra.mxu0 %v458
        %719 = vmatprep.subr.bf16.mxu0 %v457
        %720 = vmatpush1.bf16.msra.mxu0 %v456
        %721 = vmatprep.subr.bf16.mxu0 %v455
        %722 = vmatpush1.bf16.msra.mxu0 %v454
        %723 = vmatprep.subr.bf16.mxu0 %v453
        %724 = vmatpush1.bf16.msra.mxu0 %v452
        %725 = vmatprep.subr.bf16.mxu0 %v451
        %726 = vmatpush1.bf16.msra.mxu0 %v450
        %727 = vmatprep.subr.bf16.mxu0 0
        %728 = vmatpush2.bf16.msra.mxu0 0
        %729 = vmatprep.subr.bf16.mxu0 0
        %730 = vmatpush2.bf16.msra.mxu0 0
        %731 = vmatprep.subr.bf16.mxu0 0
        %732 = vmatpush2.bf16.msra.mxu0 0
        %733 = vmatprep.subr.bf16.mxu0 0
        %734 = vmatpush2.bf16.msra.mxu0 0
        %735 = vmatprep.subr.bf16.mxu0 0
        %736 = vmatpush2.bf16.msra.mxu0 0
        %737 = vmatprep.subr.bf16.mxu0 0
        %738 = vmatpush2.bf16.msra.mxu0 0
        %739 = vmatprep.subr.bf16.mxu0 0
        %740 = vmatpush2.bf16.msra.mxu0 0
        %741 = vmatprep.subr.bf16.mxu0 0
        %742 = vmatpush2.bf16.msra.mxu0 0
        %743 = vmatprep.mubr.bf16.mxu0 0
        %744 = vmatmul.mubr.bf16.gmra.mxu0 %v709
        %v745 = vpop.f32.mrf.mxu0
        %v746 = vadd.f32 0.0, %v745
        %v747 = vpop.f32.mrf.mxu0
        %v748 = vadd.f32 0.0, %v747
        %v749 = vpop.f32.mrf.mxu0
        %v750 = vpop.f32.mrf.mxu0
        %751 = vdwg.mxu0
        %752 = vmatprep.subr.bf16.mxu0 0
        %753 = vmatpush1.bf16.msra.mxu0 0
        %754 = vmatprep.subr.bf16.mxu0 0
        %755 = vmatpush1.bf16.msra.mxu0 0
        %756 = vmatprep.subr.bf16.mxu0 %v566
        %757 = vmatpush1.bf16.msra.mxu0 %v565
        %758 = vmatprep.subr.bf16.mxu0 %v564
        %759 = vmatpush1.bf16.msra.mxu0 %v563
        %760 = vmatprep.subr.bf16.mxu0 %v562
        %761 = vmatpush1.bf16.msra.mxu0 %v561
        %762 = vmatprep.subr.bf16.mxu0 %v560
        %763 = vmatpush1.bf16.msra.mxu0 %v559
        %764 = vmatprep.subr.bf16.mxu0 %v558
        %765 = vmatpush1.bf16.msra.mxu0 %v557
        %766 = vmatprep.subr.bf16.mxu0 %v556
        %767 = vmatpush1.bf16.msra.mxu0 %v555
        %768 = vmatprep.subr.bf16.mxu0 0
        %769 = vmatpush2.bf16.msra.mxu0 0
        %770 = vmatprep.subr.bf16.mxu0 0
        %771 = vmatpush2.bf16.msra.mxu0 0
        %772 = vmatprep.subr.bf16.mxu0 0
        %773 = vmatpush2.bf16.msra.mxu0 0
        %774 = vmatprep.subr.bf16.mxu0 0
        %775 = vmatpush2.bf16.msra.mxu0 0
        %776 = vmatprep.subr.bf16.mxu0 0
        %777 = vmatpush2.bf16.msra.mxu0 0
        %778 = vmatprep.subr.bf16.mxu0 0
        %779 = vmatpush2.bf16.msra.mxu0 0
        %780 = vmatprep.subr.bf16.mxu0 0
        %781 = vmatpush2.bf16.msra.mxu0 0
        %782 = vmatprep.subr.bf16.mxu0 0
        %783 = vmatpush2.bf16.msra.mxu0 0
        %784 = vmatprep.mubr.bf16.mxu0 0
        %785 = vmatmul.mubr.bf16.gmra.mxu0 %v624
        %v786 = vpop.f32.mrf.mxu0
        %v787 = vadd.f32 %v746, %v786
        %v788 = vpop.f32.mrf.mxu0
        %v789 = vadd.f32 %v748, %v788
        %v790 = vpop.f32.mrf.mxu0
        %v791 = vpop.f32.mrf.mxu0
        %792 = vdwg.mxu0
        %v794 = vunpack.c.l.b16 %v385
        %v795 = vpack.c.b16 %v794, %v794
        %v797 = vshrl.u32 %v795, 16
        %v799 = vshll.u32 %v795, 16
        %v801 = vrot.slane %v799, 1
        %v802 = vor.u32 %v797, %v801
        %v804 = vsel %vm474, %v802, 0
        %806 = vmatprep.subr.bf16.mxu0 0
        %807 = vmatpush1.bf16.msra.mxu0 0
        %808 = vmatprep.subr.bf16.mxu0 0
        %809 = vmatpush1.bf16.msra.mxu0 0
        %810 = vmatprep.subr.bf16.mxu0 %v461
        %811 = vmatpush1.bf16.msra.mxu0 %v460
        %812 = vmatprep.subr.bf16.mxu0 %v459
        %813 = vmatpush1.bf16.msra.mxu0 %v458
        %814 = vmatprep.subr.bf16.mxu0 %v457
        %815 = vmatpush1.bf16.msra.mxu0 %v456
        %816 = vmatprep.subr.bf16.mxu0 %v455
        %817 = vmatpush1.bf16.msra.mxu0 %v454
        %818 = vmatprep.subr.bf16.mxu0 %v453
        %819 = vmatpush1.bf16.msra.mxu0 %v452
        %820 = vmatprep.subr.bf16.mxu0 %v451
        %821 = vmatpush1.bf16.msra.mxu0 %v450
        %822 = vmatprep.subr.bf16.mxu0 0
        %823 = vmatpush2.bf16.msra.mxu0 0
        %824 = vmatprep.subr.bf16.mxu0 0
        %825 = vmatpush2.bf16.msra.mxu0 0
        %826 = vmatprep.subr.bf16.mxu0 0
        %827 = vmatpush2.bf16.msra.mxu0 0
        %828 = vmatprep.subr.bf16.mxu0 0
        %829 = vmatpush2.bf16.msra.mxu0 0
        %830 = vmatprep.subr.bf16.mxu0 0
        %831 = vmatpush2.bf16.msra.mxu0 0
        %832 = vmatprep.subr.bf16.mxu0 0
        %833 = vmatpush2.bf16.msra.mxu0 0
        %834 = vmatprep.subr.bf16.mxu0 0
        %835 = vmatpush2.bf16.msra.mxu0 0
        %836 = vmatprep.subr.bf16.mxu0 0
        %837 = vmatpush2.bf16.msra.mxu0 0
        %838 = vmatprep.mubr.bf16.mxu0 0
        %839 = vmatmul.mubr.bf16.gmra.mxu0 %v804
        %v840 = vpop.f32.mrf.mxu0
        %v841 = vadd.f32 0.0, %v840
        %v842 = vpop.f32.mrf.mxu0
        %v843 = vadd.f32 0.0, %v842
        %v844 = vpop.f32.mrf.mxu0
        %v845 = vpop.f32.mrf.mxu0
        %846 = vdwg.mxu0
        %847 = vmatprep.subr.bf16.mxu0 0
        %848 = vmatpush1.bf16.msra.mxu0 0
        %849 = vmatprep.subr.bf16.mxu0 0
        %850 = vmatpush1.bf16.msra.mxu0 0
        %851 = vmatprep.subr.bf16.mxu0 %v566
        %852 = vmatpush1.bf16.msra.mxu0 %v565
        %853 = vmatprep.subr.bf16.mxu0 %v564
        %854 = vmatpush1.bf16.msra.mxu0 %v563
        %855 = vmatprep.subr.bf16.mxu0 %v562
        %856 = vmatpush1.bf16.msra.mxu0 %v561
        %857 = vmatprep.subr.bf16.mxu0 %v560
        %858 = vmatpush1.bf16.msra.mxu0 %v559
        %859 = vmatprep.subr.bf16.mxu0 %v558
        %860 = vmatpush1.bf16.msra.mxu0 %v557
        %861 = vmatprep.subr.bf16.mxu0 %v556
        %862 = vmatpush1.bf16.msra.mxu0 %v555
        %863 = vmatprep.subr.bf16.mxu0 0
        %864 = vmatpush2.bf16.msra.mxu0 0
        %865 = vmatprep.subr.bf16.mxu0 0
        %866 = vmatpush2.bf16.msra.mxu0 0
        %867 = vmatprep.subr.bf16.mxu0 0
        %868 = vmatpush2.bf16.msra.mxu0 0
        %869 = vmatprep.subr.bf16.mxu0 0
        %870 = vmatpush2.bf16.msra.mxu0 0
        %871 = vmatprep.subr.bf16.mxu0 0
        %872 = vmatpush2.bf16.msra.mxu0 0
        %873 = vmatprep.subr.bf16.mxu0 0
        %874 = vmatpush2.bf16.msra.mxu0 0
        %875 = vmatprep.subr.bf16.mxu0 0
        %876 = vmatpush2.bf16.msra.mxu0 0
        %877 = vmatprep.subr.bf16.mxu0 0
        %878 = vmatpush2.bf16.msra.mxu0 0
        %879 = vmatprep.mubr.bf16.mxu0 0
        %880 = vmatmul.mubr.bf16.gmra.mxu0 %v709
        %v881 = vpop.f32.mrf.mxu0
        %v882 = vadd.f32 %v841, %v881
        %v883 = vpop.f32.mrf.mxu0
        %v884 = vadd.f32 %v843, %v883
        %v885 = vpop.f32.mrf.mxu0
        %v886 = vpop.f32.mrf.mxu0
        %887 = vdwg.mxu0
        %s888 = scalar_lea.vmem %s1, 192
        %v889 = vld [vmem:[%s888] sm:$0xff]
        %v890 = vld [vmem:[%s888 + $0x8] sm:$0xff]
        %v891 = vld [vmem:[%s888 + $0x10] sm:$0xff]
        %v892 = vld [vmem:[%s888 + $0x18] sm:$0xff]
        %v893 = vld [vmem:[%s888 + $0x20] sm:$0xff]
        %v894 = vld [vmem:[%s888 + $0x28] sm:$0xff]
        %v895 = vld [vmem:[%s888 + $0x30] sm:$0xff]
        %v896 = vld [vmem:[%s888 + $0x38] sm:$0xff]
        %v897 = vld [vmem:[%s888 + $0x40] sm:$0xff]
        %v898 = vld [vmem:[%s888 + $0x48] sm:$0xff]
        %v899 = vld [vmem:[%s888 + $0x50] sm:$0xff]
        %v900 = vld [vmem:[%s888 + $0x58] sm:$0xff]
        %v913 = vunpack.c.l.b16 %v889
        %v914 = vunpack.c.h.b16 %v889
        %v915 = vunpack.c.l.b16 %v890
        %v916 = vunpack.c.h.b16 %v890
        %v917 = vunpack.c.l.b16 %v891
        %v918 = vunpack.c.h.b16 %v891
        %v919 = vunpack.c.l.b16 %v892
        %v920 = vunpack.c.h.b16 %v892
        %v921 = vunpack.c.l.b16 %v893
        %v922 = vunpack.c.h.b16 %v893
        %v923 = vunpack.c.l.b16 %v894
        %v924 = vunpack.c.h.b16 %v894
        %v925 = vunpack.c.l.b16 %v895
        %v926 = vunpack.c.h.b16 %v895
        %v927 = vunpack.c.l.b16 %v896
        %v928 = vunpack.c.h.b16 %v896
        %v929 = vunpack.c.l.b16 %v897
        %v930 = vunpack.c.h.b16 %v897
        %v931 = vunpack.c.l.b16 %v898
        %v932 = vunpack.c.h.b16 %v898
        %v933 = vunpack.c.l.b16 %v899
        %v934 = vunpack.c.h.b16 %v899
        %v935 = vunpack.c.l.b16 %v900
        %v936 = vunpack.c.h.b16 %v900
        %v937 = vpack.c.b16 %v915, %v913
        %v938 = vpack.c.b16 %v916, %v914
        %v939 = vpack.c.b16 %v919, %v917
        %v940 = vpack.c.b16 %v920, %v918
        %v941 = vpack.c.b16 %v923, %v921
        %v942 = vpack.c.b16 %v924, %v922
        %v943 = vpack.c.b16 %v927, %v925
        %v944 = vpack.c.b16 %v928, %v926
        %v945 = vpack.c.b16 %v931, %v929
        %v946 = vpack.c.b16 %v932, %v930
        %v947 = vpack.c.b16 %v935, %v933
        %v948 = vpack.c.b16 %v936, %v934
        %961 = vmatprep.subr.bf16.mxu0 0
        %962 = vmatpush1.bf16.msra.mxu0 0
        %963 = vmatprep.subr.bf16.mxu0 0
        %964 = vmatpush1.bf16.msra.mxu0 0
        %965 = vmatprep.subr.bf16.mxu0 %v948
        %966 = vmatpush1.bf16.msra.mxu0 %v947
        %967 = vmatprep.subr.bf16.mxu0 %v946
        %968 = vmatpush1.bf16.msra.mxu0 %v945
        %969 = vmatprep.subr.bf16.mxu0 %v944
        %970 = vmatpush1.bf16.msra.mxu0 %v943
        %971 = vmatprep.subr.bf16.mxu0 %v942
        %972 = vmatpush1.bf16.msra.mxu0 %v941
        %973 = vmatprep.subr.bf16.mxu0 %v940
        %974 = vmatpush1.bf16.msra.mxu0 %v939
        %975 = vmatprep.subr.bf16.mxu0 %v938
        %976 = vmatpush1.bf16.msra.mxu0 %v937
        %977 = vmatprep.subr.bf16.mxu0 0
        %978 = vmatpush2.bf16.msra.mxu0 0
        %979 = vmatprep.subr.bf16.mxu0 0
        %980 = vmatpush2.bf16.msra.mxu0 0
        %981 = vmatprep.subr.bf16.mxu0 0
        %982 = vmatpush2.bf16.msra.mxu0 0
        %983 = vmatprep.subr.bf16.mxu0 0
        %984 = vmatpush2.bf16.msra.mxu0 0
        %985 = vmatprep.subr.bf16.mxu0 0
        %986 = vmatpush2.bf16.msra.mxu0 0
        %987 = vmatprep.subr.bf16.mxu0 0
        %988 = vmatpush2.bf16.msra.mxu0 0
        %989 = vmatprep.subr.bf16.mxu0 0
        %990 = vmatpush2.bf16.msra.mxu0 0
        %991 = vmatprep.subr.bf16.mxu0 0
        %992 = vmatpush2.bf16.msra.mxu0 0
        %993 = vmatprep.mubr.bf16.mxu0 0
        %994 = vmatmul.mubr.bf16.gmra.mxu0 %v624
        %v995 = vpop.f32.mrf.mxu0
        %v996 = vadd.f32 0.0, %v995
        %v997 = vpop.f32.mrf.mxu0
        %v998 = vadd.f32 0.0, %v997
        %v999 = vpop.f32.mrf.mxu0
        %v1000 = vpop.f32.mrf.mxu0
        %1001 = vdwg.mxu0
        %v1002 = vadd.f32 %v617, %v996
        %v1003 = vadd.f32 %v619, %v998
        %1004 = vmatprep.subr.bf16.mxu0 0
        %1005 = vmatpush1.bf16.msra.mxu0 0
        %1006 = vmatprep.subr.bf16.mxu0 0
        %1007 = vmatpush1.bf16.msra.mxu0 0
        %1008 = vmatprep.subr.bf16.mxu0 %v948
        %1009 = vmatpush1.bf16.msra.mxu0 %v947
        %1010 = vmatprep.subr.bf16.mxu0 %v946
        %1011 = vmatpush1.bf16.msra.mxu0 %v945
        %1012 = vmatprep.subr.bf16.mxu0 %v944
        %1013 = vmatpush1.bf16.msra.mxu0 %v943
        %1014 = vmatprep.subr.bf16.mxu0 %v942
        %1015 = vmatpush1.bf16.msra.mxu0 %v941
        %1016 = vmatprep.subr.bf16.mxu0 %v940
        %1017 = vmatpush1.bf16.msra.mxu0 %v939
        %1018 = vmatprep.subr.bf16.mxu0 %v938
        %1019 = vmatpush1.bf16.msra.mxu0 %v937
        %1020 = vmatprep.subr.bf16.mxu0 0
        %1021 = vmatpush2.bf16.msra.mxu0 0
        %1022 = vmatprep.subr.bf16.mxu0 0
        %1023 = vmatpush2.bf16.msra.mxu0 0
        %1024 = vmatprep.subr.bf16.mxu0 0
        %1025 = vmatpush2.bf16.msra.mxu0 0
        %1026 = vmatprep.subr.bf16.mxu0 0
        %1027 = vmatpush2.bf16.msra.mxu0 0
        %1028 = vmatprep.subr.bf16.mxu0 0
        %1029 = vmatpush2.bf16.msra.mxu0 0
        %1030 = vmatprep.subr.bf16.mxu0 0
        %1031 = vmatpush2.bf16.msra.mxu0 0
        %1032 = vmatprep.subr.bf16.mxu0 0
        %1033 = vmatpush2.bf16.msra.mxu0 0
        %1034 = vmatprep.subr.bf16.mxu0 0
        %1035 = vmatpush2.bf16.msra.mxu0 0
        %1036 = vmatprep.mubr.bf16.mxu0 0
        %1037 = vmatmul.mubr.bf16.gmra.mxu0 %v709
        %v1038 = vpop.f32.mrf.mxu0
        %v1039 = vadd.f32 0.0, %v1038
        %v1040 = vpop.f32.mrf.mxu0
        %v1041 = vadd.f32 0.0, %v1040
        %v1042 = vpop.f32.mrf.mxu0
        %v1043 = vpop.f32.mrf.mxu0
        %1044 = vdwg.mxu0
        %v1045 = vadd.f32 %v702, %v1039
        %v1046 = vadd.f32 %v704, %v1041
        %1047 = vmatprep.subr.bf16.mxu0 0
        %1048 = vmatpush1.bf16.msra.mxu0 0
        %1049 = vmatprep.subr.bf16.mxu0 0
        %1050 = vmatpush1.bf16.msra.mxu0 0
        %1051 = vmatprep.subr.bf16.mxu0 %v948
        %1052 = vmatpush1.bf16.msra.mxu0 %v947
        %1053 = vmatprep.subr.bf16.mxu0 %v946
        %1054 = vmatpush1.bf16.msra.mxu0 %v945
        %1055 = vmatprep.subr.bf16.mxu0 %v944
        %1056 = vmatpush1.bf16.msra.mxu0 %v943
        %1057 = vmatprep.subr.bf16.mxu0 %v942
        %1058 = vmatpush1.bf16.msra.mxu0 %v941
        %1059 = vmatprep.subr.bf16.mxu0 %v940
        %1060 = vmatpush1.bf16.msra.mxu0 %v939
        %1061 = vmatprep.subr.bf16.mxu0 %v938
        %1062 = vmatpush1.bf16.msra.mxu0 %v937
        %1063 = vmatprep.subr.bf16.mxu0 0
        %1064 = vmatpush2.bf16.msra.mxu0 0
        %1065 = vmatprep.subr.bf16.mxu0 0
        %1066 = vmatpush2.bf16.msra.mxu0 0
        %1067 = vmatprep.subr.bf16.mxu0 0
        %1068 = vmatpush2.bf16.msra.mxu0 0
        %1069 = vmatprep.subr.bf16.mxu0 0
        %1070 = vmatpush2.bf16.msra.mxu0 0
        %1071 = vmatprep.subr.bf16.mxu0 0
        %1072 = vmatpush2.bf16.msra.mxu0 0
        %1073 = vmatprep.subr.bf16.mxu0 0
        %1074 = vmatpush2.bf16.msra.mxu0 0
        %1075 = vmatprep.subr.bf16.mxu0 0
        %1076 = vmatpush2.bf16.msra.mxu0 0
        %1077 = vmatprep.subr.bf16.mxu0 0
        %1078 = vmatpush2.bf16.msra.mxu0 0
        %1079 = vmatprep.mubr.bf16.mxu0 0
        %1080 = vmatmul.mubr.bf16.gmra.mxu0 %v804
        %v1081 = vpop.f32.mrf.mxu0
        %v1082 = vadd.f32 0.0, %v1081
        %v1083 = vpop.f32.mrf.mxu0
        %v1084 = vadd.f32 0.0, %v1083
        %v1085 = vpop.f32.mrf.mxu0
        %v1086 = vpop.f32.mrf.mxu0
        %1087 = vdwg.mxu0
        %v1088 = vadd.f32 %v787, %v1082
        %v1089 = vadd.f32 %v789, %v1084
        %v1091 = vunpack.c.l.b16 %v386
        %v1092 = vpack.c.b16 %v1091, %v1091
        %v1094 = vshrl.u32 %v1092, 16
        %v1096 = vshll.u32 %v1092, 16
        %v1098 = vrot.slane %v1096, 1
        %v1099 = vor.u32 %v1094, %v1098
        %v1101 = vsel %vm474, %v1099, 0
        %1103 = vmatprep.subr.bf16.mxu0 0
        %1104 = vmatpush1.bf16.msra.mxu0 0
        %1105 = vmatprep.subr.bf16.mxu0 0
        %1106 = vmatpush1.bf16.msra.mxu0 0
        %1107 = vmatprep.subr.bf16.mxu0 %v948
        %1108 = vmatpush1.bf16.msra.mxu0 %v947
        %1109 = vmatprep.subr.bf16.mxu0 %v946
        %1110 = vmatpush1.bf16.msra.mxu0 %v945
        %1111 = vmatprep.subr.bf16.mxu0 %v944
        %1112 = vmatpush1.bf16.msra.mxu0 %v943
        %1113 = vmatprep.subr.bf16.mxu0 %v942
        %1114 = vmatpush1.bf16.msra.mxu0 %v941
        %1115 = vmatprep.subr.bf16.mxu0 %v940
        %1116 = vmatpush1.bf16.msra.mxu0 %v939
        %1117 = vmatprep.subr.bf16.mxu0 %v938
        %1118 = vmatpush1.bf16.msra.mxu0 %v937
        %1119 = vmatprep.subr.bf16.mxu0 0
        %1120 = vmatpush2.bf16.msra.mxu0 0
        %1121 = vmatprep.subr.bf16.mxu0 0
        %1122 = vmatpush2.bf16.msra.mxu0 0
        %1123 = vmatprep.subr.bf16.mxu0 0
        %1124 = vmatpush2.bf16.msra.mxu0 0
        %1125 = vmatprep.subr.bf16.mxu0 0
        %1126 = vmatpush2.bf16.msra.mxu0 0
        %1127 = vmatprep.subr.bf16.mxu0 0
        %1128 = vmatpush2.bf16.msra.mxu0 0
        %1129 = vmatprep.subr.bf16.mxu0 0
        %1130 = vmatpush2.bf16.msra.mxu0 0
        %1131 = vmatprep.subr.bf16.mxu0 0
        %1132 = vmatpush2.bf16.msra.mxu0 0
        %1133 = vmatprep.subr.bf16.mxu0 0
        %1134 = vmatpush2.bf16.msra.mxu0 0
        %1135 = vmatprep.mubr.bf16.mxu0 0
        %1136 = vmatmul.mubr.bf16.gmra.mxu0 %v1101
        %v1137 = vpop.f32.mrf.mxu0
        %v1138 = vadd.f32 0.0, %v1137
        %v1139 = vpop.f32.mrf.mxu0
        %v1140 = vadd.f32 0.0, %v1139
        %v1141 = vpop.f32.mrf.mxu0
        %v1142 = vpop.f32.mrf.mxu0
        %1143 = vdwg.mxu0
        %v1144 = vadd.f32 %v882, %v1138
        %v1145 = vadd.f32 %v884, %v1140
        %s1146 = scalar_lea.vmem %s1, 288
        %v1147 = vld [vmem:[%s1146] sm:$0xff]
        %v1148 = vld [vmem:[%s1146 + $0x8] sm:$0xff]
        %v1149 = vld [vmem:[%s1146 + $0x10] sm:$0xff]
        %v1150 = vld [vmem:[%s1146 + $0x18] sm:$0xff]
        %v1151 = vld [vmem:[%s1146 + $0x20] sm:$0xff]
        %v1152 = vld [vmem:[%s1146 + $0x28] sm:$0xff]
        %v1153 = vld [vmem:[%s1146 + $0x30] sm:$0xff]
        %v1154 = vld [vmem:[%s1146 + $0x38] sm:$0xff]
        %v1155 = vld [vmem:[%s1146 + $0x40] sm:$0xff]
        %v1156 = vld [vmem:[%s1146 + $0x48] sm:$0xff]
        %v1157 = vld [vmem:[%s1146 + $0x50] sm:$0xff]
        %v1158 = vld [vmem:[%s1146 + $0x58] sm:$0xff]
        %v1171 = vunpack.c.l.b16 %v1147
        %v1172 = vunpack.c.h.b16 %v1147
        %v1173 = vunpack.c.l.b16 %v1148
        %v1174 = vunpack.c.h.b16 %v1148
        %v1175 = vunpack.c.l.b16 %v1149
        %v1176 = vunpack.c.h.b16 %v1149
        %v1177 = vunpack.c.l.b16 %v1150
        %v1178 = vunpack.c.h.b16 %v1150
        %v1179 = vunpack.c.l.b16 %v1151
        %v1180 = vunpack.c.h.b16 %v1151
        %v1181 = vunpack.c.l.b16 %v1152
        %v1182 = vunpack.c.h.b16 %v1152
        %v1183 = vunpack.c.l.b16 %v1153
        %v1184 = vunpack.c.h.b16 %v1153
        %v1185 = vunpack.c.l.b16 %v1154
        %v1186 = vunpack.c.h.b16 %v1154
        %v1187 = vunpack.c.l.b16 %v1155
        %v1188 = vunpack.c.h.b16 %v1155
        %v1189 = vunpack.c.l.b16 %v1156
        %v1190 = vunpack.c.h.b16 %v1156
        %v1191 = vunpack.c.l.b16 %v1157
        %v1192 = vunpack.c.h.b16 %v1157
        %v1193 = vunpack.c.l.b16 %v1158
        %v1194 = vunpack.c.h.b16 %v1158
        %v1195 = vpack.c.b16 %v1173, %v1171
        %v1196 = vpack.c.b16 %v1174, %v1172
        %v1197 = vpack.c.b16 %v1177, %v1175
        %v1198 = vpack.c.b16 %v1178, %v1176
        %v1199 = vpack.c.b16 %v1181, %v1179
        %v1200 = vpack.c.b16 %v1182, %v1180
        %v1201 = vpack.c.b16 %v1185, %v1183
        %v1202 = vpack.c.b16 %v1186, %v1184
        %v1203 = vpack.c.b16 %v1189, %v1187
        %v1204 = vpack.c.b16 %v1190, %v1188
        %v1205 = vpack.c.b16 %v1193, %v1191
        %v1206 = vpack.c.b16 %v1194, %v1192
        %1219 = vmatprep.subr.bf16.mxu0 0
        %1220 = vmatpush1.bf16.msra.mxu0 0
        %1221 = vmatprep.subr.bf16.mxu0 0
        %1222 = vmatpush1.bf16.msra.mxu0 0
        %1223 = vmatprep.subr.bf16.mxu0 %v1206
        %1224 = vmatpush1.bf16.msra.mxu0 %v1205
        %1225 = vmatprep.subr.bf16.mxu0 %v1204
        %1226 = vmatpush1.bf16.msra.mxu0 %v1203
        %1227 = vmatprep.subr.bf16.mxu0 %v1202
        %1228 = vmatpush1.bf16.msra.mxu0 %v1201
        %1229 = vmatprep.subr.bf16.mxu0 %v1200
        %1230 = vmatpush1.bf16.msra.mxu0 %v1199
        %1231 = vmatprep.subr.bf16.mxu0 %v1198
        %1232 = vmatpush1.bf16.msra.mxu0 %v1197
        %1233 = vmatprep.subr.bf16.mxu0 %v1196
        %1234 = vmatpush1.bf16.msra.mxu0 %v1195
        %1235 = vmatprep.subr.bf16.mxu0 0
        %1236 = vmatpush2.bf16.msra.mxu0 0
        %1237 = vmatprep.subr.bf16.mxu0 0
        %1238 = vmatpush2.bf16.msra.mxu0 0
        %1239 = vmatprep.subr.bf16.mxu0 0
        %1240 = vmatpush2.bf16.msra.mxu0 0
        %1241 = vmatprep.subr.bf16.mxu0 0
        %1242 = vmatpush2.bf16.msra.mxu0 0
        %1243 = vmatprep.subr.bf16.mxu0 0
        %1244 = vmatpush2.bf16.msra.mxu0 0
        %1245 = vmatprep.subr.bf16.mxu0 0
        %1246 = vmatpush2.bf16.msra.mxu0 0
        %1247 = vmatprep.subr.bf16.mxu0 0
        %1248 = vmatpush2.bf16.msra.mxu0 0
        %1249 = vmatprep.subr.bf16.mxu0 0
        %1250 = vmatpush2.bf16.msra.mxu0 0
        %1251 = vmatprep.mubr.bf16.mxu0 0
        %1252 = vmatmul.mubr.bf16.gmra.mxu0 %v709
        %v1253 = vpop.f32.mrf.mxu0
        %v1254 = vadd.f32 0.0, %v1253
        %v1255 = vpop.f32.mrf.mxu0
        %v1256 = vadd.f32 0.0, %v1255
        %v1257 = vpop.f32.mrf.mxu0
        %v1258 = vpop.f32.mrf.mxu0
        %1259 = vdwg.mxu0
        %v1260 = vadd.f32 %v1002, %v1254
        %v1261 = vadd.f32 %v1003, %v1256
        %1262 = vmatprep.subr.bf16.mxu0 0
        %1263 = vmatpush1.bf16.msra.mxu0 0
        %1264 = vmatprep.subr.bf16.mxu0 0
        %1265 = vmatpush1.bf16.msra.mxu0 0
        %1266 = vmatprep.subr.bf16.mxu0 %v1206
        %1267 = vmatpush1.bf16.msra.mxu0 %v1205
        %1268 = vmatprep.subr.bf16.mxu0 %v1204
        %1269 = vmatpush1.bf16.msra.mxu0 %v1203
        %1270 = vmatprep.subr.bf16.mxu0 %v1202
        %1271 = vmatpush1.bf16.msra.mxu0 %v1201
        %1272 = vmatprep.subr.bf16.mxu0 %v1200
        %1273 = vmatpush1.bf16.msra.mxu0 %v1199
        %1274 = vmatprep.subr.bf16.mxu0 %v1198
        %1275 = vmatpush1.bf16.msra.mxu0 %v1197
        %1276 = vmatprep.subr.bf16.mxu0 %v1196
        %1277 = vmatpush1.bf16.msra.mxu0 %v1195
        %1278 = vmatprep.subr.bf16.mxu0 0
        %1279 = vmatpush2.bf16.msra.mxu0 0
        %1280 = vmatprep.subr.bf16.mxu0 0
        %1281 = vmatpush2.bf16.msra.mxu0 0
        %1282 = vmatprep.subr.bf16.mxu0 0
        %1283 = vmatpush2.bf16.msra.mxu0 0
        %1284 = vmatprep.subr.bf16.mxu0 0
        %1285 = vmatpush2.bf16.msra.mxu0 0
        %1286 = vmatprep.subr.bf16.mxu0 0
        %1287 = vmatpush2.bf16.msra.mxu0 0
        %1288 = vmatprep.subr.bf16.mxu0 0
        %1289 = vmatpush2.bf16.msra.mxu0 0
        %1290 = vmatprep.subr.bf16.mxu0 0
        %1291 = vmatpush2.bf16.msra.mxu0 0
        %1292 = vmatprep.subr.bf16.mxu0 0
        %1293 = vmatpush2.bf16.msra.mxu0 0
        %1294 = vmatprep.mubr.bf16.mxu0 0
        %1295 = vmatmul.mubr.bf16.gmra.mxu0 %v804
        %v1296 = vpop.f32.mrf.mxu0
        %v1297 = vadd.f32 0.0, %v1296
        %v1298 = vpop.f32.mrf.mxu0
        %v1299 = vadd.f32 0.0, %v1298
        %v1300 = vpop.f32.mrf.mxu0
        %v1301 = vpop.f32.mrf.mxu0
        %1302 = vdwg.mxu0
        %v1303 = vadd.f32 %v1045, %v1297
        %v1304 = vadd.f32 %v1046, %v1299
        %1305 = vmatprep.subr.bf16.mxu0 0
        %1306 = vmatpush1.bf16.msra.mxu0 0
        %1307 = vmatprep.subr.bf16.mxu0 0
        %1308 = vmatpush1.bf16.msra.mxu0 0
        %1309 = vmatprep.subr.bf16.mxu0 %v1206
        %1310 = vmatpush1.bf16.msra.mxu0 %v1205
        %1311 = vmatprep.subr.bf16.mxu0 %v1204
        %1312 = vmatpush1.bf16.msra.mxu0 %v1203
        %1313 = vmatprep.subr.bf16.mxu0 %v1202
        %1314 = vmatpush1.bf16.msra.mxu0 %v1201
        %1315 = vmatprep.subr.bf16.mxu0 %v1200
        %1316 = vmatpush1.bf16.msra.mxu0 %v1199
        %1317 = vmatprep.subr.bf16.mxu0 %v1198
        %1318 = vmatpush1.bf16.msra.mxu0 %v1197
        %1319 = vmatprep.subr.bf16.mxu0 %v1196
        %1320 = vmatpush1.bf16.msra.mxu0 %v1195
        %1321 = vmatprep.subr.bf16.mxu0 0
        %1322 = vmatpush2.bf16.msra.mxu0 0
        %1323 = vmatprep.subr.bf16.mxu0 0
        %1324 = vmatpush2.bf16.msra.mxu0 0
        %1325 = vmatprep.subr.bf16.mxu0 0
        %1326 = vmatpush2.bf16.msra.mxu0 0
        %1327 = vmatprep.subr.bf16.mxu0 0
        %1328 = vmatpush2.bf16.msra.mxu0 0
        %1329 = vmatprep.subr.bf16.mxu0 0
        %1330 = vmatpush2.bf16.msra.mxu0 0
        %1331 = vmatprep.subr.bf16.mxu0 0
        %1332 = vmatpush2.bf16.msra.mxu0 0
        %1333 = vmatprep.subr.bf16.mxu0 0
        %1334 = vmatpush2.bf16.msra.mxu0 0
        %1335 = vmatprep.subr.bf16.mxu0 0
        %1336 = vmatpush2.bf16.msra.mxu0 0
        %1337 = vmatprep.mubr.bf16.mxu0 0
        %1338 = vmatmul.mubr.bf16.gmra.mxu0 %v1101
        %v1339 = vpop.f32.mrf.mxu0
        %v1340 = vadd.f32 0.0, %v1339
        %v1341 = vpop.f32.mrf.mxu0
        %v1342 = vadd.f32 0.0, %v1341
        %v1343 = vpop.f32.mrf.mxu0
        %v1344 = vpop.f32.mrf.mxu0
        %1345 = vdwg.mxu0
        %v1346 = vadd.f32 %v1088, %v1340
        %v1347 = vadd.f32 %v1089, %v1342
        %v1349 = vunpack.c.l.b16 %v387
        %v1350 = vpack.c.b16 %v1349, %v1349
        %v1352 = vshrl.u32 %v1350, 16
        %v1354 = vshll.u32 %v1350, 16
        %v1356 = vrot.slane %v1354, 1
        %v1357 = vor.u32 %v1352, %v1356
        %v1359 = vsel %vm474, %v1357, 0
        %1361 = vmatprep.subr.bf16.mxu0 0
        %1362 = vmatpush1.bf16.msra.mxu0 0
        %1363 = vmatprep.subr.bf16.mxu0 0
        %1364 = vmatpush1.bf16.msra.mxu0 0
        %1365 = vmatprep.subr.bf16.mxu0 %v1206
        %1366 = vmatpush1.bf16.msra.mxu0 %v1205
        %1367 = vmatprep.subr.bf16.mxu0 %v1204
        %1368 = vmatpush1.bf16.msra.mxu0 %v1203
        %1369 = vmatprep.subr.bf16.mxu0 %v1202
        %1370 = vmatpush1.bf16.msra.mxu0 %v1201
        %1371 = vmatprep.subr.bf16.mxu0 %v1200
        %1372 = vmatpush1.bf16.msra.mxu0 %v1199
        %1373 = vmatprep.subr.bf16.mxu0 %v1198
        %1374 = vmatpush1.bf16.msra.mxu0 %v1197
        %1375 = vmatprep.subr.bf16.mxu0 %v1196
        %1376 = vmatpush1.bf16.msra.mxu0 %v1195
        %1377 = vmatprep.subr.bf16.mxu0 0
        %1378 = vmatpush2.bf16.msra.mxu0 0
        %1379 = vmatprep.subr.bf16.mxu0 0
        %1380 = vmatpush2.bf16.msra.mxu0 0
        %1381 = vmatprep.subr.bf16.mxu0 0
        %1382 = vmatpush2.bf16.msra.mxu0 0
        %1383 = vmatprep.subr.bf16.mxu0 0
        %1384 = vmatpush2.bf16.msra.mxu0 0
        %1385 = vmatprep.subr.bf16.mxu0 0
        %1386 = vmatpush2.bf16.msra.mxu0 0
        %1387 = vmatprep.subr.bf16.mxu0 0
        %1388 = vmatpush2.bf16.msra.mxu0 0
        %1389 = vmatprep.subr.bf16.mxu0 0
        %1390 = vmatpush2.bf16.msra.mxu0 0
        %1391 = vmatprep.subr.bf16.mxu0 0
        %1392 = vmatpush2.bf16.msra.mxu0 0
        %1393 = vmatprep.mubr.bf16.mxu0 0
        %1394 = vmatmul.mubr.bf16.gmra.mxu0 %v1359
        %v1395 = vpop.f32.mrf.mxu0
        %v1396 = vadd.f32 0.0, %v1395
        %v1397 = vpop.f32.mrf.mxu0
        %v1398 = vadd.f32 0.0, %v1397
        %v1399 = vpop.f32.mrf.mxu0
        %v1400 = vpop.f32.mrf.mxu0
        %1401 = vdwg.mxu0
        %v1402 = vadd.f32 %v1144, %v1396
        %v1403 = vadd.f32 %v1145, %v1398
        %s1404 = scalar_lea.vmem %s1, 384
        %v1405 = vld [vmem:[%s1404] sm:$0xff]
        %v1406 = vld [vmem:[%s1404 + $0x8] sm:$0xff]
        %v1407 = vld [vmem:[%s1404 + $0x10] sm:$0xff]
        %v1408 = vld [vmem:[%s1404 + $0x18] sm:$0xff]
        %v1409 = vld [vmem:[%s1404 + $0x20] sm:$0xff]
        %v1410 = vld [vmem:[%s1404 + $0x28] sm:$0xff]
        %v1411 = vld [vmem:[%s1404 + $0x30] sm:$0xff]
        %v1412 = vld [vmem:[%s1404 + $0x38] sm:$0xff]
        %v1413 = vld [vmem:[%s1404 + $0x40] sm:$0xff]
        %v1414 = vld [vmem:[%s1404 + $0x48] sm:$0xff]
        %v1415 = vld [vmem:[%s1404 + $0x50] sm:$0xff]
        %v1416 = vld [vmem:[%s1404 + $0x58] sm:$0xff]
        %v1429 = vunpack.c.l.b16 %v1405
        %v1430 = vunpack.c.h.b16 %v1405
        %v1431 = vunpack.c.l.b16 %v1406
        %v1432 = vunpack.c.h.b16 %v1406
        %v1433 = vunpack.c.l.b16 %v1407
        %v1434 = vunpack.c.h.b16 %v1407
        %v1435 = vunpack.c.l.b16 %v1408
        %v1436 = vunpack.c.h.b16 %v1408
        %v1437 = vunpack.c.l.b16 %v1409
        %v1438 = vunpack.c.h.b16 %v1409
        %v1439 = vunpack.c.l.b16 %v1410
        %v1440 = vunpack.c.h.b16 %v1410
        %v1441 = vunpack.c.l.b16 %v1411
        %v1442 = vunpack.c.h.b16 %v1411
        %v1443 = vunpack.c.l.b16 %v1412
        %v1444 = vunpack.c.h.b16 %v1412
        %v1445 = vunpack.c.l.b16 %v1413
        %v1446 = vunpack.c.h.b16 %v1413
        %v1447 = vunpack.c.l.b16 %v1414
        %v1448 = vunpack.c.h.b16 %v1414
        %v1449 = vunpack.c.l.b16 %v1415
        %v1450 = vunpack.c.h.b16 %v1415
        %v1451 = vunpack.c.l.b16 %v1416
        %v1452 = vunpack.c.h.b16 %v1416
        %v1453 = vpack.c.b16 %v1431, %v1429
        %v1454 = vpack.c.b16 %v1432, %v1430
        %v1455 = vpack.c.b16 %v1435, %v1433
        %v1456 = vpack.c.b16 %v1436, %v1434
        %v1457 = vpack.c.b16 %v1439, %v1437
        %v1458 = vpack.c.b16 %v1440, %v1438
        %v1459 = vpack.c.b16 %v1443, %v1441
        %v1460 = vpack.c.b16 %v1444, %v1442
        %v1461 = vpack.c.b16 %v1447, %v1445
        %v1462 = vpack.c.b16 %v1448, %v1446
        %v1463 = vpack.c.b16 %v1451, %v1449
        %v1464 = vpack.c.b16 %v1452, %v1450
        %1477 = vmatprep.subr.bf16.mxu0 0
        %1478 = vmatpush1.bf16.msra.mxu0 0
        %1479 = vmatprep.subr.bf16.mxu0 0
        %1480 = vmatpush1.bf16.msra.mxu0 0
        %1481 = vmatprep.subr.bf16.mxu0 %v1464
        %1482 = vmatpush1.bf16.msra.mxu0 %v1463
        %1483 = vmatprep.subr.bf16.mxu0 %v1462
        %1484 = vmatpush1.bf16.msra.mxu0 %v1461
        %1485 = vmatprep.subr.bf16.mxu0 %v1460
        %1486 = vmatpush1.bf16.msra.mxu0 %v1459
        %1487 = vmatprep.subr.bf16.mxu0 %v1458
        %1488 = vmatpush1.bf16.msra.mxu0 %v1457
        %1489 = vmatprep.subr.bf16.mxu0 %v1456
        %1490 = vmatpush1.bf16.msra.mxu0 %v1455
        %1491 = vmatprep.subr.bf16.mxu0 %v1454
        %1492 = vmatpush1.bf16.msra.mxu0 %v1453
        %1493 = vmatprep.subr.bf16.mxu0 0
        %1494 = vmatpush2.bf16.msra.mxu0 0
        %1495 = vmatprep.subr.bf16.mxu0 0
        %1496 = vmatpush2.bf16.msra.mxu0 0
        %1497 = vmatprep.subr.bf16.mxu0 0
        %1498 = vmatpush2.bf16.msra.mxu0 0
        %1499 = vmatprep.subr.bf16.mxu0 0
        %1500 = vmatpush2.bf16.msra.mxu0 0
        %1501 = vmatprep.subr.bf16.mxu0 0
        %1502 = vmatpush2.bf16.msra.mxu0 0
        %1503 = vmatprep.subr.bf16.mxu0 0
        %1504 = vmatpush2.bf16.msra.mxu0 0
        %1505 = vmatprep.subr.bf16.mxu0 0
        %1506 = vmatpush2.bf16.msra.mxu0 0
        %1507 = vmatprep.subr.bf16.mxu0 0
        %1508 = vmatpush2.bf16.msra.mxu0 0
        %1509 = vmatprep.mubr.bf16.mxu0 0
        %1510 = vmatmul.mubr.bf16.gmra.mxu0 %v804
        %v1511 = vpop.f32.mrf.mxu0
        %v1512 = vadd.f32 0.0, %v1511
        %v1513 = vpop.f32.mrf.mxu0
        %v1514 = vadd.f32 0.0, %v1513
        %v1515 = vpop.f32.mrf.mxu0
        %v1516 = vpop.f32.mrf.mxu0
        %1517 = vdwg.mxu0
        %v1518 = vadd.f32 %v1260, %v1512
        %v1519 = vadd.f32 %v1261, %v1514
        %1520 = vmatprep.subr.bf16.mxu0 0
        %1521 = vmatpush1.bf16.msra.mxu0 0
        %1522 = vmatprep.subr.bf16.mxu0 0
        %1523 = vmatpush1.bf16.msra.mxu0 0
        %1524 = vmatprep.subr.bf16.mxu0 %v1464
        %1525 = vmatpush1.bf16.msra.mxu0 %v1463
        %1526 = vmatprep.subr.bf16.mxu0 %v1462
        %1527 = vmatpush1.bf16.msra.mxu0 %v1461
        %1528 = vmatprep.subr.bf16.mxu0 %v1460
        %1529 = vmatpush1.bf16.msra.mxu0 %v1459
        %1530 = vmatprep.subr.bf16.mxu0 %v1458
        %1531 = vmatpush1.bf16.msra.mxu0 %v1457
        %1532 = vmatprep.subr.bf16.mxu0 %v1456
        %1533 = vmatpush1.bf16.msra.mxu0 %v1455
        %1534 = vmatprep.subr.bf16.mxu0 %v1454
        %1535 = vmatpush1.bf16.msra.mxu0 %v1453
        %1536 = vmatprep.subr.bf16.mxu0 0
        %1537 = vmatpush2.bf16.msra.mxu0 0
        %1538 = vmatprep.subr.bf16.mxu0 0
        %1539 = vmatpush2.bf16.msra.mxu0 0
        %1540 = vmatprep.subr.bf16.mxu0 0
        %1541 = vmatpush2.bf16.msra.mxu0 0
        %1542 = vmatprep.subr.bf16.mxu0 0
        %1543 = vmatpush2.bf16.msra.mxu0 0
        %1544 = vmatprep.subr.bf16.mxu0 0
        %1545 = vmatpush2.bf16.msra.mxu0 0
        %1546 = vmatprep.subr.bf16.mxu0 0
        %1547 = vmatpush2.bf16.msra.mxu0 0
        %1548 = vmatprep.subr.bf16.mxu0 0
        %1549 = vmatpush2.bf16.msra.mxu0 0
        %1550 = vmatprep.subr.bf16.mxu0 0
        %1551 = vmatpush2.bf16.msra.mxu0 0
        %1552 = vmatprep.mubr.bf16.mxu0 0
        %1553 = vmatmul.mubr.bf16.gmra.mxu0 %v1101
        %v1554 = vpop.f32.mrf.mxu0
        %v1555 = vadd.f32 0.0, %v1554
        %v1556 = vpop.f32.mrf.mxu0
        %v1557 = vadd.f32 0.0, %v1556
        %v1558 = vpop.f32.mrf.mxu0
        %v1559 = vpop.f32.mrf.mxu0
        %1560 = vdwg.mxu0
        %v1561 = vadd.f32 %v1303, %v1555
        %v1562 = vadd.f32 %v1304, %v1557
        %1563 = vmatprep.subr.bf16.mxu0 0
        %1564 = vmatpush1.bf16.msra.mxu0 0
        %1565 = vmatprep.subr.bf16.mxu0 0
        %1566 = vmatpush1.bf16.msra.mxu0 0
        %1567 = vmatprep.subr.bf16.mxu0 %v1464
        %1568 = vmatpush1.bf16.msra.mxu0 %v1463
        %1569 = vmatprep.subr.bf16.mxu0 %v1462
        %1570 = vmatpush1.bf16.msra.mxu0 %v1461
        %1571 = vmatprep.subr.bf16.mxu0 %v1460
        %1572 = vmatpush1.bf16.msra.mxu0 %v1459
        %1573 = vmatprep.subr.bf16.mxu0 %v1458
        %1574 = vmatpush1.bf16.msra.mxu0 %v1457
        %1575 = vmatprep.subr.bf16.mxu0 %v1456
        %1576 = vmatpush1.bf16.msra.mxu0 %v1455
        %1577 = vmatprep.subr.bf16.mxu0 %v1454
        %1578 = vmatpush1.bf16.msra.mxu0 %v1453
        %1579 = vmatprep.subr.bf16.mxu0 0
        %1580 = vmatpush2.bf16.msra.mxu0 0
        %1581 = vmatprep.subr.bf16.mxu0 0
        %1582 = vmatpush2.bf16.msra.mxu0 0
        %1583 = vmatprep.subr.bf16.mxu0 0
        %1584 = vmatpush2.bf16.msra.mxu0 0
        %1585 = vmatprep.subr.bf16.mxu0 0
        %1586 = vmatpush2.bf16.msra.mxu0 0
        %1587 = vmatprep.subr.bf16.mxu0 0
        %1588 = vmatpush2.bf16.msra.mxu0 0
        %1589 = vmatprep.subr.bf16.mxu0 0
        %1590 = vmatpush2.bf16.msra.mxu0 0
        %1591 = vmatprep.subr.bf16.mxu0 0
        %1592 = vmatpush2.bf16.msra.mxu0 0
        %1593 = vmatprep.subr.bf16.mxu0 0
        %1594 = vmatpush2.bf16.msra.mxu0 0
        %1595 = vmatprep.mubr.bf16.mxu0 0
        %1596 = vmatmul.mubr.bf16.gmra.mxu0 %v1359
        %v1597 = vpop.f32.mrf.mxu0
        %v1598 = vadd.f32 0.0, %v1597
        %v1599 = vpop.f32.mrf.mxu0
        %v1600 = vadd.f32 0.0, %v1599
        %v1601 = vpop.f32.mrf.mxu0
        %v1602 = vpop.f32.mrf.mxu0
        %1603 = vdwg.mxu0
        %v1604 = vadd.f32 %v1346, %v1598
        %v1605 = vadd.f32 %v1347, %v1600
        %v1607 = vunpack.c.l.b16 %v388
        %v1608 = vpack.c.b16 %v1607, %v1607
        %v1610 = vshrl.u32 %v1608, 16
        %v1612 = vshll.u32 %v1608, 16
        %v1614 = vrot.slane %v1612, 1
        %v1615 = vor.u32 %v1610, %v1614
        %v1617 = vsel %vm474, %v1615, 0
        %1619 = vmatprep.subr.bf16.mxu0 0
        %1620 = vmatpush1.bf16.msra.mxu0 0
        %1621 = vmatprep.subr.bf16.mxu0 0
        %1622 = vmatpush1.bf16.msra.mxu0 0
        %1623 = vmatprep.subr.bf16.mxu0 %v1464
        %1624 = vmatpush1.bf16.msra.mxu0 %v1463
        %1625 = vmatprep.subr.bf16.mxu0 %v1462
        %1626 = vmatpush1.bf16.msra.mxu0 %v1461
        %1627 = vmatprep.subr.bf16.mxu0 %v1460
        %1628 = vmatpush1.bf16.msra.mxu0 %v1459
        %1629 = vmatprep.subr.bf16.mxu0 %v1458
        %1630 = vmatpush1.bf16.msra.mxu0 %v1457
        %1631 = vmatprep.subr.bf16.mxu0 %v1456
        %1632 = vmatpush1.bf16.msra.mxu0 %v1455
        %1633 = vmatprep.subr.bf16.mxu0 %v1454
        %1634 = vmatpush1.bf16.msra.mxu0 %v1453
        %1635 = vmatprep.subr.bf16.mxu0 0
        %1636 = vmatpush2.bf16.msra.mxu0 0
        %1637 = vmatprep.subr.bf16.mxu0 0
        %1638 = vmatpush2.bf16.msra.mxu0 0
        %1639 = vmatprep.subr.bf16.mxu0 0
        %1640 = vmatpush2.bf16.msra.mxu0 0
        %1641 = vmatprep.subr.bf16.mxu0 0
        %1642 = vmatpush2.bf16.msra.mxu0 0
        %1643 = vmatprep.subr.bf16.mxu0 0
        %1644 = vmatpush2.bf16.msra.mxu0 0
        %1645 = vmatprep.subr.bf16.mxu0 0
        %1646 = vmatpush2.bf16.msra.mxu0 0
        %1647 = vmatprep.subr.bf16.mxu0 0
        %1648 = vmatpush2.bf16.msra.mxu0 0
        %1649 = vmatprep.subr.bf16.mxu0 0
        %1650 = vmatpush2.bf16.msra.mxu0 0
        %1651 = vmatprep.mubr.bf16.mxu0 0
        %1652 = vmatmul.mubr.bf16.gmra.mxu0 %v1617
        %v1653 = vpop.f32.mrf.mxu0
        %v1654 = vadd.f32 0.0, %v1653
        %v1655 = vpop.f32.mrf.mxu0
        %v1656 = vadd.f32 0.0, %v1655
        %v1657 = vpop.f32.mrf.mxu0
        %v1658 = vpop.f32.mrf.mxu0
        %1659 = vdwg.mxu0
        %v1660 = vadd.f32 %v1402, %v1654
        %v1661 = vadd.f32 %v1403, %v1656
        %v1662 = vld [vmem:[%s2] sm:$0x1]
        %v1663 = vmax.f32 %v1518, %v1519
        %v1664 = vmax.f32 %v1561, %v1562
        %v1665 = vmax.f32 %v1663, %v1664
        %v1667 = vlaneseq
        %v1668 = vshrl.u32 %v1667, 7
        %v1669 = vsub.s32 0, %v1668
        %v1670 = vrot.slane %v1662, %v1669
        %v1672 = vadd.f32 %v1665, %v1670
        %v1673 = vmax.f32 %v1672, 0.0
        %v1674 = vpack.c.bf16 %v1673, %v1673
        %v1675 = vmax.f32 %v1604, %v1605
        %v1676 = vmax.f32 %v1660, %v1661
        %v1677 = vmax.f32 %v1675, %v1676
        %v1678 = vadd.f32 %v1677, %v1670
        %v1679 = vmax.f32 %v1678, 0.0
        %v1680 = vpack.c.bf16 %v1679, %v1679
        %v1681 = vld [vmem:[%s3] sm:$0xff]
        %v1682 = vld [vmem:[%s3 + $0x8] sm:$0xff]
        %v1683 = vld [vmem:[%s3 + $0x10] sm:$0xff]
        %v1684 = vld [vmem:[%s3 + $0x18] sm:$0xff]
        %v1685 = vld [vmem:[%s3 + $0x20] sm:$0xff]
        %v1686 = vld [vmem:[%s3 + $0x28] sm:$0xff]
        %v1687 = vld [vmem:[%s3 + $0x30] sm:$0xff]
        %v1688 = vld [vmem:[%s3 + $0x38] sm:$0xff]
        %v1689 = vld [vmem:[%s3 + $0x40] sm:$0xff]
        %v1690 = vld [vmem:[%s3 + $0x48] sm:$0xff]
        %v1691 = vld [vmem:[%s3 + $0x50] sm:$0xff]
        %v1692 = vld [vmem:[%s3 + $0x58] sm:$0xff]
        %v1693 = vld [vmem:[%s3 + $0x60] sm:$0xff]
        %v1694 = vld [vmem:[%s3 + $0x68] sm:$0xff]
        %v1695 = vld [vmem:[%s3 + $0x70] sm:$0xff]
        %v1696 = vld [vmem:[%s3 + $0x78] sm:$0xff]
        %s1697 = scalar_lea.vmem %s3, 128
        %v1698 = vld [vmem:[%s1697] sm:$0xff]
        %v1699 = vld [vmem:[%s1697 + $0x8] sm:$0xff]
        %v1700 = vld [vmem:[%s1697 + $0x10] sm:$0xff]
        %v1701 = vld [vmem:[%s1697 + $0x18] sm:$0xff]
        %v1702 = vld [vmem:[%s1697 + $0x20] sm:$0xff]
        %v1703 = vld [vmem:[%s1697 + $0x28] sm:$0xff]
        %v1704 = vld [vmem:[%s1697 + $0x30] sm:$0xff]
        %v1705 = vld [vmem:[%s1697 + $0x38] sm:$0xff]
        %v1706 = vld [vmem:[%s1697 + $0x40] sm:$0xff]
        %v1707 = vld [vmem:[%s1697 + $0x48] sm:$0xff]
        %v1708 = vld [vmem:[%s1697 + $0x50] sm:$0xff]
        %v1709 = vld [vmem:[%s1697 + $0x58] sm:$0xff]
        %v1710 = vld [vmem:[%s1697 + $0x60] sm:$0xff]
        %v1711 = vld [vmem:[%s1697 + $0x68] sm:$0xff]
        %v1712 = vld [vmem:[%s1697 + $0x70] sm:$0xff]
        %v1713 = vld [vmem:[%s1697 + $0x78] sm:$0xff]
        %v1730 = vunpack.c.l.b16 %v1698
        %v1731 = vunpack.c.h.b16 %v1698
        %v1732 = vunpack.c.l.b16 %v1699
        %v1733 = vunpack.c.h.b16 %v1699
        %v1734 = vunpack.c.l.b16 %v1700
        %v1735 = vunpack.c.h.b16 %v1700
        %v1736 = vunpack.c.l.b16 %v1701
        %v1737 = vunpack.c.h.b16 %v1701
        %v1738 = vunpack.c.l.b16 %v1702
        %v1739 = vunpack.c.h.b16 %v1702
        %v1740 = vunpack.c.l.b16 %v1703
        %v1741 = vunpack.c.h.b16 %v1703
        %v1742 = vunpack.c.l.b16 %v1704
        %v1743 = vunpack.c.h.b16 %v1704
        %v1744 = vunpack.c.l.b16 %v1705
        %v1745 = vunpack.c.h.b16 %v1705
        %v1746 = vunpack.c.l.b16 %v1706
        %v1747 = vunpack.c.h.b16 %v1706
        %v1748 = vunpack.c.l.b16 %v1707
        %v1749 = vunpack.c.h.b16 %v1707
        %v1750 = vunpack.c.l.b16 %v1708
        %v1751 = vunpack.c.h.b16 %v1708
        %v1752 = vunpack.c.l.b16 %v1709
        %v1753 = vunpack.c.h.b16 %v1709
        %v1754 = vunpack.c.l.b16 %v1710
        %v1755 = vunpack.c.h.b16 %v1710
        %v1756 = vunpack.c.l.b16 %v1711
        %v1757 = vunpack.c.h.b16 %v1711
        %v1758 = vunpack.c.l.b16 %v1712
        %v1759 = vunpack.c.h.b16 %v1712
        %v1760 = vunpack.c.l.b16 %v1713
        %v1761 = vunpack.c.h.b16 %v1713
        %v1762 = vpack.c.b16 %v1732, %v1730
        %v1763 = vpack.c.b16 %v1733, %v1731
        %v1764 = vpack.c.b16 %v1736, %v1734
        %v1765 = vpack.c.b16 %v1737, %v1735
        %v1766 = vpack.c.b16 %v1740, %v1738
        %v1767 = vpack.c.b16 %v1741, %v1739
        %v1768 = vpack.c.b16 %v1744, %v1742
        %v1769 = vpack.c.b16 %v1745, %v1743
        %v1770 = vpack.c.b16 %v1748, %v1746
        %v1771 = vpack.c.b16 %v1749, %v1747
        %v1772 = vpack.c.b16 %v1752, %v1750
        %v1773 = vpack.c.b16 %v1753, %v1751
        %v1774 = vpack.c.b16 %v1756, %v1754
        %v1775 = vpack.c.b16 %v1757, %v1755
        %v1776 = vpack.c.b16 %v1760, %v1758
        %v1777 = vpack.c.b16 %v1761, %v1759
        %1794 = vmatprep.subr.bf16.mxu0 %v1777
        %1795 = vmatpush1.bf16.msra.mxu0 %v1776
        %1796 = vmatprep.subr.bf16.mxu0 %v1775
        %1797 = vmatpush1.bf16.msra.mxu0 %v1774
        %1798 = vmatprep.subr.bf16.mxu0 %v1773
        %1799 = vmatpush1.bf16.msra.mxu0 %v1772
        %1800 = vmatprep.subr.bf16.mxu0 %v1771
        %1801 = vmatpush1.bf16.msra.mxu0 %v1770
        %1802 = vmatprep.subr.bf16.mxu0 %v1769
        %1803 = vmatpush1.bf16.msra.mxu0 %v1768
        %1804 = vmatprep.subr.bf16.mxu0 %v1767
        %1805 = vmatpush1.bf16.msra.mxu0 %v1766
        %1806 = vmatprep.subr.bf16.mxu0 %v1765
        %1807 = vmatpush1.bf16.msra.mxu0 %v1764
        %1808 = vmatprep.subr.bf16.mxu0 %v1763
        %1809 = vmatpush1.bf16.msra.mxu0 %v1762
        %1810 = vmatprep.subr.bf16.mxu0 0
        %1811 = vmatpush2.bf16.msra.mxu0 0
        %1812 = vmatprep.subr.bf16.mxu0 0
        %1813 = vmatpush2.bf16.msra.mxu0 0
        %1814 = vmatprep.subr.bf16.mxu0 0
        %1815 = vmatpush2.bf16.msra.mxu0 0
        %1816 = vmatprep.subr.bf16.mxu0 0
        %1817 = vmatpush2.bf16.msra.mxu0 0
        %1818 = vmatprep.subr.bf16.mxu0 0
        %1819 = vmatpush2.bf16.msra.mxu0 0
        %1820 = vmatprep.subr.bf16.mxu0 0
        %1821 = vmatpush2.bf16.msra.mxu0 0
        %1822 = vmatprep.subr.bf16.mxu0 0
        %1823 = vmatpush2.bf16.msra.mxu0 0
        %1824 = vmatprep.subr.bf16.mxu0 0
        %1825 = vmatpush2.bf16.msra.mxu0 0
        %1826 = vmatprep.mubr.bf16.mxu0 0
        %1827 = vmatmul.mubr.bf16.gmra.mxu0 %v1680
        %v1828 = vpop.f32.mrf.mxu0
        %v1829 = vadd.f32 0.0, %v1828
        %v1830 = vpop.f32.mrf.mxu0
        %v1831 = vadd.f32 0.0, %v1830
        %v1832 = vpop.f32.mrf.mxu0
        %v1833 = vpop.f32.mrf.mxu0
        %1834 = vdwg.mxu0
        %v1851 = vunpack.c.l.b16 %v1681
        %v1852 = vunpack.c.h.b16 %v1681
        %v1853 = vunpack.c.l.b16 %v1682
        %v1854 = vunpack.c.h.b16 %v1682
        %v1855 = vunpack.c.l.b16 %v1683
        %v1856 = vunpack.c.h.b16 %v1683
        %v1857 = vunpack.c.l.b16 %v1684
        %v1858 = vunpack.c.h.b16 %v1684
        %v1859 = vunpack.c.l.b16 %v1685
        %v1860 = vunpack.c.h.b16 %v1685
        %v1861 = vunpack.c.l.b16 %v1686
        %v1862 = vunpack.c.h.b16 %v1686
        %v1863 = vunpack.c.l.b16 %v1687
        %v1864 = vunpack.c.h.b16 %v1687
        %v1865 = vunpack.c.l.b16 %v1688
        %v1866 = vunpack.c.h.b16 %v1688
        %v1867 = vunpack.c.l.b16 %v1689
        %v1868 = vunpack.c.h.b16 %v1689
        %v1869 = vunpack.c.l.b16 %v1690
        %v1870 = vunpack.c.h.b16 %v1690
        %v1871 = vunpack.c.l.b16 %v1691
        %v1872 = vunpack.c.h.b16 %v1691
        %v1873 = vunpack.c.l.b16 %v1692
        %v1874 = vunpack.c.h.b16 %v1692
        %v1875 = vunpack.c.l.b16 %v1693
        %v1876 = vunpack.c.h.b16 %v1693
        %v1877 = vunpack.c.l.b16 %v1694
        %v1878 = vunpack.c.h.b16 %v1694
        %v1879 = vunpack.c.l.b16 %v1695
        %v1880 = vunpack.c.h.b16 %v1695
        %v1881 = vunpack.c.l.b16 %v1696
        %v1882 = vunpack.c.h.b16 %v1696
        %v1883 = vpack.c.b16 %v1853, %v1851
        %v1884 = vpack.c.b16 %v1854, %v1852
        %v1885 = vpack.c.b16 %v1857, %v1855
        %v1886 = vpack.c.b16 %v1858, %v1856
        %v1887 = vpack.c.b16 %v1861, %v1859
        %v1888 = vpack.c.b16 %v1862, %v1860
        %v1889 = vpack.c.b16 %v1865, %v1863
        %v1890 = vpack.c.b16 %v1866, %v1864
        %v1891 = vpack.c.b16 %v1869, %v1867
        %v1892 = vpack.c.b16 %v1870, %v1868
        %v1893 = vpack.c.b16 %v1873, %v1871
        %v1894 = vpack.c.b16 %v1874, %v1872
        %v1895 = vpack.c.b16 %v1877, %v1875
        %v1896 = vpack.c.b16 %v1878, %v1876
        %v1897 = vpack.c.b16 %v1881, %v1879
        %v1898 = vpack.c.b16 %v1882, %v1880
        %1915 = vmatprep.subr.bf16.mxu0 %v1898
        %1916 = vmatpush1.bf16.msra.mxu0 %v1897
        %1917 = vmatprep.subr.bf16.mxu0 %v1896
        %1918 = vmatpush1.bf16.msra.mxu0 %v1895
        %1919 = vmatprep.subr.bf16.mxu0 %v1894
        %1920 = vmatpush1.bf16.msra.mxu0 %v1893
        %1921 = vmatprep.subr.bf16.mxu0 %v1892
        %1922 = vmatpush1.bf16.msra.mxu0 %v1891
        %1923 = vmatprep.subr.bf16.mxu0 %v1890
        %1924 = vmatpush1.bf16.msra.mxu0 %v1889
        %1925 = vmatprep.subr.bf16.mxu0 %v1888
        %1926 = vmatpush1.bf16.msra.mxu0 %v1887
        %1927 = vmatprep.subr.bf16.mxu0 %v1886
        %1928 = vmatpush1.bf16.msra.mxu0 %v1885
        %1929 = vmatprep.subr.bf16.mxu0 %v1884
        %1930 = vmatpush1.bf16.msra.mxu0 %v1883
        %1931 = vmatprep.subr.bf16.mxu0 0
        %1932 = vmatpush2.bf16.msra.mxu0 0
        %1933 = vmatprep.subr.bf16.mxu0 0
        %1934 = vmatpush2.bf16.msra.mxu0 0
        %1935 = vmatprep.subr.bf16.mxu0 0
        %1936 = vmatpush2.bf16.msra.mxu0 0
        %1937 = vmatprep.subr.bf16.mxu0 0
        %1938 = vmatpush2.bf16.msra.mxu0 0
        %1939 = vmatprep.subr.bf16.mxu0 0
        %1940 = vmatpush2.bf16.msra.mxu0 0
        %1941 = vmatprep.subr.bf16.mxu0 0
        %1942 = vmatpush2.bf16.msra.mxu0 0
        %1943 = vmatprep.subr.bf16.mxu0 0
        %1944 = vmatpush2.bf16.msra.mxu0 0
        %1945 = vmatprep.subr.bf16.mxu0 0
        %1946 = vmatpush2.bf16.msra.mxu0 0
        %1947 = vmatprep.mubr.bf16.mxu0 0
        %1948 = vmatmul.mubr.bf16.gmra.mxu0 %v1674
        %v1949 = vpop.f32.mrf.mxu0
        %v1950 = vadd.f32 %v1829, %v1949
        %v1951 = vpop.f32.mrf.mxu0
        %v1952 = vadd.f32 %v1831, %v1951
        %v1953 = vpop.f32.mrf.mxu0
        %v1954 = vpop.f32.mrf.mxu0
        %1955 = vdwg.mxu0
        %v1957 = vshrl.u32 %v1674, 16
        %v1959 = vshll.u32 %v1674, 16
        %v1961 = vrot.slane %v1959, 1
        %v1962 = vor.u32 %v1957, %v1961
        %1964 = vmatprep.subr.bf16.mxu0 %v1777
        %1965 = vmatpush1.bf16.msra.mxu0 %v1776
        %1966 = vmatprep.subr.bf16.mxu0 %v1775
        %1967 = vmatpush1.bf16.msra.mxu0 %v1774
        %1968 = vmatprep.subr.bf16.mxu0 %v1773
        %1969 = vmatpush1.bf16.msra.mxu0 %v1772
        %1970 = vmatprep.subr.bf16.mxu0 %v1771
        %1971 = vmatpush1.bf16.msra.mxu0 %v1770
        %1972 = vmatprep.subr.bf16.mxu0 %v1769
        %1973 = vmatpush1.bf16.msra.mxu0 %v1768
        %1974 = vmatprep.subr.bf16.mxu0 %v1767
        %1975 = vmatpush1.bf16.msra.mxu0 %v1766
        %1976 = vmatprep.subr.bf16.mxu0 %v1765
        %1977 = vmatpush1.bf16.msra.mxu0 %v1764
        %1978 = vmatprep.subr.bf16.mxu0 %v1763
        %1979 = vmatpush1.bf16.msra.mxu0 %v1762
        %1980 = vmatprep.subr.bf16.mxu0 0
        %1981 = vmatpush2.bf16.msra.mxu0 0
        %1982 = vmatprep.subr.bf16.mxu0 0
        %1983 = vmatpush2.bf16.msra.mxu0 0
        %1984 = vmatprep.subr.bf16.mxu0 0
        %1985 = vmatpush2.bf16.msra.mxu0 0
        %1986 = vmatprep.subr.bf16.mxu0 0
        %1987 = vmatpush2.bf16.msra.mxu0 0
        %1988 = vmatprep.subr.bf16.mxu0 0
        %1989 = vmatpush2.bf16.msra.mxu0 0
        %1990 = vmatprep.subr.bf16.mxu0 0
        %1991 = vmatpush2.bf16.msra.mxu0 0
        %1992 = vmatprep.subr.bf16.mxu0 0
        %1993 = vmatpush2.bf16.msra.mxu0 0
        %1994 = vmatprep.subr.bf16.mxu0 0
        %1995 = vmatpush2.bf16.msra.mxu0 0
        %1996 = vmatprep.mubr.bf16.mxu0 0
        %1997 = vmatmul.mubr.bf16.gmra.mxu0 %v1962
        %v1998 = vpop.f32.mrf.mxu0
        %v1999 = vadd.f32 0.0, %v1998
        %v2000 = vpop.f32.mrf.mxu0
        %v2001 = vadd.f32 0.0, %v2000
        %v2002 = vpop.f32.mrf.mxu0
        %v2003 = vpop.f32.mrf.mxu0
        %2004 = vdwg.mxu0
        %2005 = vmatprep.subr.bf16.mxu0 %v1898
        %2006 = vmatpush1.bf16.msra.mxu0 %v1897
        %2007 = vmatprep.subr.bf16.mxu0 %v1896
        %2008 = vmatpush1.bf16.msra.mxu0 %v1895
        %2009 = vmatprep.subr.bf16.mxu0 %v1894
        %2010 = vmatpush1.bf16.msra.mxu0 %v1893
        %2011 = vmatprep.subr.bf16.mxu0 %v1892
        %2012 = vmatpush1.bf16.msra.mxu0 %v1891
        %2013 = vmatprep.subr.bf16.mxu0 %v1890
        %2014 = vmatpush1.bf16.msra.mxu0 %v1889
        %2015 = vmatprep.subr.bf16.mxu0 %v1888
        %2016 = vmatpush1.bf16.msra.mxu0 %v1887
        %2017 = vmatprep.subr.bf16.mxu0 %v1886
        %2018 = vmatpush1.bf16.msra.mxu0 %v1885
        %2019 = vmatprep.subr.bf16.mxu0 %v1884
        %2020 = vmatpush1.bf16.msra.mxu0 %v1883
        %2021 = vmatprep.subr.bf16.mxu0 0
        %2022 = vmatpush2.bf16.msra.mxu0 0
        %2023 = vmatprep.subr.bf16.mxu0 0
        %2024 = vmatpush2.bf16.msra.mxu0 0
        %2025 = vmatprep.subr.bf16.mxu0 0
        %2026 = vmatpush2.bf16.msra.mxu0 0
        %2027 = vmatprep.subr.bf16.mxu0 0
        %2028 = vmatpush2.bf16.msra.mxu0 0
        %2029 = vmatprep.subr.bf16.mxu0 0
        %2030 = vmatpush2.bf16.msra.mxu0 0
        %2031 = vmatprep.subr.bf16.mxu0 0
        %2032 = vmatpush2.bf16.msra.mxu0 0
        %2033 = vmatprep.subr.bf16.mxu0 0
        %2034 = vmatpush2.bf16.msra.mxu0 0
        %2035 = vmatprep.subr.bf16.mxu0 0
        %2036 = vmatpush2.bf16.msra.mxu0 0
        %2037 = vmatprep.mubr.bf16.mxu0 0
        %2038 = vmatmul.mubr.bf16.gmra.mxu0 %v1680
        %v2039 = vpop.f32.mrf.mxu0
        %v2040 = vadd.f32 %v1999, %v2039
        %v2041 = vpop.f32.mrf.mxu0
        %v2042 = vadd.f32 %v2001, %v2041
        %v2043 = vpop.f32.mrf.mxu0
        %v2044 = vpop.f32.mrf.mxu0
        %2045 = vdwg.mxu0
        %s2046 = scalar_lea.vmem %s3, 256
        %v2047 = vld [vmem:[%s2046] sm:$0xff]
        %v2048 = vld [vmem:[%s2046 + $0x8] sm:$0xff]
        %v2049 = vld [vmem:[%s2046 + $0x10] sm:$0xff]
        %v2050 = vld [vmem:[%s2046 + $0x18] sm:$0xff]
        %v2051 = vld [vmem:[%s2046 + $0x20] sm:$0xff]
        %v2052 = vld [vmem:[%s2046 + $0x28] sm:$0xff]
        %v2053 = vld [vmem:[%s2046 + $0x30] sm:$0xff]
        %v2054 = vld [vmem:[%s2046 + $0x38] sm:$0xff]
        %v2055 = vld [vmem:[%s2046 + $0x40] sm:$0xff]
        %v2056 = vld [vmem:[%s2046 + $0x48] sm:$0xff]
        %v2057 = vld [vmem:[%s2046 + $0x50] sm:$0xff]
        %v2058 = vld [vmem:[%s2046 + $0x58] sm:$0xff]
        %v2059 = vld [vmem:[%s2046 + $0x60] sm:$0xff]
        %v2060 = vld [vmem:[%s2046 + $0x68] sm:$0xff]
        %v2061 = vld [vmem:[%s2046 + $0x70] sm:$0xff]
        %v2062 = vld [vmem:[%s2046 + $0x78] sm:$0xff]
        %v2079 = vunpack.c.l.b16 %v2047
        %v2080 = vunpack.c.h.b16 %v2047
        %v2081 = vunpack.c.l.b16 %v2048
        %v2082 = vunpack.c.h.b16 %v2048
        %v2083 = vunpack.c.l.b16 %v2049
        %v2084 = vunpack.c.h.b16 %v2049
        %v2085 = vunpack.c.l.b16 %v2050
        %v2086 = vunpack.c.h.b16 %v2050
        %v2087 = vunpack.c.l.b16 %v2051
        %v2088 = vunpack.c.h.b16 %v2051
        %v2089 = vunpack.c.l.b16 %v2052
        %v2090 = vunpack.c.h.b16 %v2052
        %v2091 = vunpack.c.l.b16 %v2053
        %v2092 = vunpack.c.h.b16 %v2053
        %v2093 = vunpack.c.l.b16 %v2054
        %v2094 = vunpack.c.h.b16 %v2054
        %v2095 = vunpack.c.l.b16 %v2055
        %v2096 = vunpack.c.h.b16 %v2055
        %v2097 = vunpack.c.l.b16 %v2056
        %v2098 = vunpack.c.h.b16 %v2056
        %v2099 = vunpack.c.l.b16 %v2057
        %v2100 = vunpack.c.h.b16 %v2057
        %v2101 = vunpack.c.l.b16 %v2058
        %v2102 = vunpack.c.h.b16 %v2058
        %v2103 = vunpack.c.l.b16 %v2059
        %v2104 = vunpack.c.h.b16 %v2059
        %v2105 = vunpack.c.l.b16 %v2060
        %v2106 = vunpack.c.h.b16 %v2060
        %v2107 = vunpack.c.l.b16 %v2061
        %v2108 = vunpack.c.h.b16 %v2061
        %v2109 = vunpack.c.l.b16 %v2062
        %v2110 = vunpack.c.h.b16 %v2062
        %v2111 = vpack.c.b16 %v2081, %v2079
        %v2112 = vpack.c.b16 %v2082, %v2080
        %v2113 = vpack.c.b16 %v2085, %v2083
        %v2114 = vpack.c.b16 %v2086, %v2084
        %v2115 = vpack.c.b16 %v2089, %v2087
        %v2116 = vpack.c.b16 %v2090, %v2088
        %v2117 = vpack.c.b16 %v2093, %v2091
        %v2118 = vpack.c.b16 %v2094, %v2092
        %v2119 = vpack.c.b16 %v2097, %v2095
        %v2120 = vpack.c.b16 %v2098, %v2096
        %v2121 = vpack.c.b16 %v2101, %v2099
        %v2122 = vpack.c.b16 %v2102, %v2100
        %v2123 = vpack.c.b16 %v2105, %v2103
        %v2124 = vpack.c.b16 %v2106, %v2104
        %v2125 = vpack.c.b16 %v2109, %v2107
        %v2126 = vpack.c.b16 %v2110, %v2108
        %2143 = vmatprep.subr.bf16.mxu0 %v2126
        %2144 = vmatpush1.bf16.msra.mxu0 %v2125
        %2145 = vmatprep.subr.bf16.mxu0 %v2124
        %2146 = vmatpush1.bf16.msra.mxu0 %v2123
        %2147 = vmatprep.subr.bf16.mxu0 %v2122
        %2148 = vmatpush1.bf16.msra.mxu0 %v2121
        %2149 = vmatprep.subr.bf16.mxu0 %v2120
        %2150 = vmatpush1.bf16.msra.mxu0 %v2119
        %2151 = vmatprep.subr.bf16.mxu0 %v2118
        %2152 = vmatpush1.bf16.msra.mxu0 %v2117
        %2153 = vmatprep.subr.bf16.mxu0 %v2116
        %2154 = vmatpush1.bf16.msra.mxu0 %v2115
        %2155 = vmatprep.subr.bf16.mxu0 %v2114
        %2156 = vmatpush1.bf16.msra.mxu0 %v2113
        %2157 = vmatprep.subr.bf16.mxu0 %v2112
        %2158 = vmatpush1.bf16.msra.mxu0 %v2111
        %2159 = vmatprep.subr.bf16.mxu0 0
        %2160 = vmatpush2.bf16.msra.mxu0 0
        %2161 = vmatprep.subr.bf16.mxu0 0
        %2162 = vmatpush2.bf16.msra.mxu0 0
        %2163 = vmatprep.subr.bf16.mxu0 0
        %2164 = vmatpush2.bf16.msra.mxu0 0
        %2165 = vmatprep.subr.bf16.mxu0 0
        %2166 = vmatpush2.bf16.msra.mxu0 0
        %2167 = vmatprep.subr.bf16.mxu0 0
        %2168 = vmatpush2.bf16.msra.mxu0 0
        %2169 = vmatprep.subr.bf16.mxu0 0
        %2170 = vmatpush2.bf16.msra.mxu0 0
        %2171 = vmatprep.subr.bf16.mxu0 0
        %2172 = vmatpush2.bf16.msra.mxu0 0
        %2173 = vmatprep.subr.bf16.mxu0 0
        %2174 = vmatpush2.bf16.msra.mxu0 0
        %2175 = vmatprep.mubr.bf16.mxu0 0
        %2176 = vmatmul.mubr.bf16.gmra.mxu0 %v1962
        %v2177 = vpop.f32.mrf.mxu0
        %v2178 = vadd.f32 0.0, %v2177
        %v2179 = vpop.f32.mrf.mxu0
        %v2180 = vadd.f32 0.0, %v2179
        %v2181 = vpop.f32.mrf.mxu0
        %v2182 = vpop.f32.mrf.mxu0
        %2183 = vdwg.mxu0
        %v2184 = vadd.f32 %v1950, %v2178
        %v2185 = vadd.f32 %v1952, %v2180
        %v2187 = vshrl.u32 %v1680, 16
        %v2189 = vshll.u32 %v1680, 16
        %v2191 = vrot.slane %v2189, 1
        %v2192 = vor.u32 %v2187, %v2191
        %2194 = vmatprep.subr.bf16.mxu0 %v2126
        %2195 = vmatpush1.bf16.msra.mxu0 %v2125
        %2196 = vmatprep.subr.bf16.mxu0 %v2124
        %2197 = vmatpush1.bf16.msra.mxu0 %v2123
        %2198 = vmatprep.subr.bf16.mxu0 %v2122
        %2199 = vmatpush1.bf16.msra.mxu0 %v2121
        %2200 = vmatprep.subr.bf16.mxu0 %v2120
        %2201 = vmatpush1.bf16.msra.mxu0 %v2119
        %2202 = vmatprep.subr.bf16.mxu0 %v2118
        %2203 = vmatpush1.bf16.msra.mxu0 %v2117
        %2204 = vmatprep.subr.bf16.mxu0 %v2116
        %2205 = vmatpush1.bf16.msra.mxu0 %v2115
        %2206 = vmatprep.subr.bf16.mxu0 %v2114
        %2207 = vmatpush1.bf16.msra.mxu0 %v2113
        %2208 = vmatprep.subr.bf16.mxu0 %v2112
        %2209 = vmatpush1.bf16.msra.mxu0 %v2111
        %2210 = vmatprep.subr.bf16.mxu0 0
        %2211 = vmatpush2.bf16.msra.mxu0 0
        %2212 = vmatprep.subr.bf16.mxu0 0
        %2213 = vmatpush2.bf16.msra.mxu0 0
        %2214 = vmatprep.subr.bf16.mxu0 0
        %2215 = vmatpush2.bf16.msra.mxu0 0
        %2216 = vmatprep.subr.bf16.mxu0 0
        %2217 = vmatpush2.bf16.msra.mxu0 0
        %2218 = vmatprep.subr.bf16.mxu0 0
        %2219 = vmatpush2.bf16.msra.mxu0 0
        %2220 = vmatprep.subr.bf16.mxu0 0
        %2221 = vmatpush2.bf16.msra.mxu0 0
        %2222 = vmatprep.subr.bf16.mxu0 0
        %2223 = vmatpush2.bf16.msra.mxu0 0
        %2224 = vmatprep.subr.bf16.mxu0 0
        %2225 = vmatpush2.bf16.msra.mxu0 0
        %2226 = vmatprep.mubr.bf16.mxu0 0
        %2227 = vmatmul.mubr.bf16.gmra.mxu0 %v2192
        %v2228 = vpop.f32.mrf.mxu0
        %v2229 = vadd.f32 0.0, %v2228
        %v2230 = vpop.f32.mrf.mxu0
        %v2231 = vadd.f32 0.0, %v2230
        %v2232 = vpop.f32.mrf.mxu0
        %v2233 = vpop.f32.mrf.mxu0
        %2234 = vdwg.mxu0
        %v2235 = vadd.f32 %v2040, %v2229
        %v2236 = vadd.f32 %v2042, %v2231
        %s2237 = scalar_lea.vmem %s3, 384
        %v2238 = vld [vmem:[%s2237] sm:$0xff]
        %v2239 = vld [vmem:[%s2237 + $0x8] sm:$0xff]
        %v2240 = vld [vmem:[%s2237 + $0x10] sm:$0xff]
        %v2241 = vld [vmem:[%s2237 + $0x18] sm:$0xff]
        %v2242 = vld [vmem:[%s2237 + $0x20] sm:$0xff]
        %v2243 = vld [vmem:[%s2237 + $0x28] sm:$0xff]
        %v2244 = vld [vmem:[%s2237 + $0x30] sm:$0xff]
        %v2245 = vld [vmem:[%s2237 + $0x38] sm:$0xff]
        %v2246 = vld [vmem:[%s2237 + $0x40] sm:$0xff]
        %v2247 = vld [vmem:[%s2237 + $0x48] sm:$0xff]
        %v2248 = vld [vmem:[%s2237 + $0x50] sm:$0xff]
        %v2249 = vld [vmem:[%s2237 + $0x58] sm:$0xff]
        %v2250 = vld [vmem:[%s2237 + $0x60] sm:$0xff]
        %v2251 = vld [vmem:[%s2237 + $0x68] sm:$0xff]
        %v2252 = vld [vmem:[%s2237 + $0x70] sm:$0xff]
        %v2253 = vld [vmem:[%s2237 + $0x78] sm:$0xff]
        %v2270 = vunpack.c.l.b16 %v2238
        %v2271 = vunpack.c.h.b16 %v2238
        %v2272 = vunpack.c.l.b16 %v2239
        %v2273 = vunpack.c.h.b16 %v2239
        %v2274 = vunpack.c.l.b16 %v2240
        %v2275 = vunpack.c.h.b16 %v2240
        %v2276 = vunpack.c.l.b16 %v2241
        %v2277 = vunpack.c.h.b16 %v2241
        %v2278 = vunpack.c.l.b16 %v2242
        %v2279 = vunpack.c.h.b16 %v2242
        %v2280 = vunpack.c.l.b16 %v2243
        %v2281 = vunpack.c.h.b16 %v2243
        %v2282 = vunpack.c.l.b16 %v2244
        %v2283 = vunpack.c.h.b16 %v2244
        %v2284 = vunpack.c.l.b16 %v2245
        %v2285 = vunpack.c.h.b16 %v2245
        %v2286 = vunpack.c.l.b16 %v2246
        %v2287 = vunpack.c.h.b16 %v2246
        %v2288 = vunpack.c.l.b16 %v2247
        %v2289 = vunpack.c.h.b16 %v2247
        %v2290 = vunpack.c.l.b16 %v2248
        %v2291 = vunpack.c.h.b16 %v2248
        %v2292 = vunpack.c.l.b16 %v2249
        %v2293 = vunpack.c.h.b16 %v2249
        %v2294 = vunpack.c.l.b16 %v2250
        %v2295 = vunpack.c.h.b16 %v2250
        %v2296 = vunpack.c.l.b16 %v2251
        %v2297 = vunpack.c.h.b16 %v2251
        %v2298 = vunpack.c.l.b16 %v2252
        %v2299 = vunpack.c.h.b16 %v2252
        %v2300 = vunpack.c.l.b16 %v2253
        %v2301 = vunpack.c.h.b16 %v2253
        %v2302 = vpack.c.b16 %v2272, %v2270
        %v2303 = vpack.c.b16 %v2273, %v2271
        %v2304 = vpack.c.b16 %v2276, %v2274
        %v2305 = vpack.c.b16 %v2277, %v2275
        %v2306 = vpack.c.b16 %v2280, %v2278
        %v2307 = vpack.c.b16 %v2281, %v2279
        %v2308 = vpack.c.b16 %v2284, %v2282
        %v2309 = vpack.c.b16 %v2285, %v2283
        %v2310 = vpack.c.b16 %v2288, %v2286
        %v2311 = vpack.c.b16 %v2289, %v2287
        %v2312 = vpack.c.b16 %v2292, %v2290
        %v2313 = vpack.c.b16 %v2293, %v2291
        %v2314 = vpack.c.b16 %v2296, %v2294
        %v2315 = vpack.c.b16 %v2297, %v2295
        %v2316 = vpack.c.b16 %v2300, %v2298
        %v2317 = vpack.c.b16 %v2301, %v2299
        %2334 = vmatprep.subr.bf16.mxu0 %v2317
        %2335 = vmatpush1.bf16.msra.mxu0 %v2316
        %2336 = vmatprep.subr.bf16.mxu0 %v2315
        %2337 = vmatpush1.bf16.msra.mxu0 %v2314
        %2338 = vmatprep.subr.bf16.mxu0 %v2313
        %2339 = vmatpush1.bf16.msra.mxu0 %v2312
        %2340 = vmatprep.subr.bf16.mxu0 %v2311
        %2341 = vmatpush1.bf16.msra.mxu0 %v2310
        %2342 = vmatprep.subr.bf16.mxu0 %v2309
        %2343 = vmatpush1.bf16.msra.mxu0 %v2308
        %2344 = vmatprep.subr.bf16.mxu0 %v2307
        %2345 = vmatpush1.bf16.msra.mxu0 %v2306
        %2346 = vmatprep.subr.bf16.mxu0 %v2305
        %2347 = vmatpush1.bf16.msra.mxu0 %v2304
        %2348 = vmatprep.subr.bf16.mxu0 %v2303
        %2349 = vmatpush1.bf16.msra.mxu0 %v2302
        %2350 = vmatprep.subr.bf16.mxu0 0
        %2351 = vmatpush2.bf16.msra.mxu0 0
        %2352 = vmatprep.subr.bf16.mxu0 0
        %2353 = vmatpush2.bf16.msra.mxu0 0
        %2354 = vmatprep.subr.bf16.mxu0 0
        %2355 = vmatpush2.bf16.msra.mxu0 0
        %2356 = vmatprep.subr.bf16.mxu0 0
        %2357 = vmatpush2.bf16.msra.mxu0 0
        %2358 = vmatprep.subr.bf16.mxu0 0
        %2359 = vmatpush2.bf16.msra.mxu0 0
        %2360 = vmatprep.subr.bf16.mxu0 0
        %2361 = vmatpush2.bf16.msra.mxu0 0
        %2362 = vmatprep.subr.bf16.mxu0 0
        %2363 = vmatpush2.bf16.msra.mxu0 0
        %2364 = vmatprep.subr.bf16.mxu0 0
        %2365 = vmatpush2.bf16.msra.mxu0 0
        %2366 = vmatprep.mubr.bf16.mxu0 0
        %2367 = vmatmul.mubr.bf16.gmra.mxu0 %v2192
        %v2368 = vpop.f32.mrf.mxu0
        %v2369 = vadd.f32 0.0, %v2368
        %v2370 = vpop.f32.mrf.mxu0
        %v2371 = vadd.f32 0.0, %v2370
        %v2372 = vpop.f32.mrf.mxu0
        %v2373 = vpop.f32.mrf.mxu0
        %2374 = vdwg.mxu0
        %v2375 = vadd.f32 %v2184, %v2369
        %v2376 = vadd.f32 %v2185, %v2371
        %v2378 = vrot.slane %v1674, 1
        %2380 = vmatprep.subr.bf16.mxu0 %v2317
        %2381 = vmatpush1.bf16.msra.mxu0 %v2316
        %2382 = vmatprep.subr.bf16.mxu0 %v2315
        %2383 = vmatpush1.bf16.msra.mxu0 %v2314
        %2384 = vmatprep.subr.bf16.mxu0 %v2313
        %2385 = vmatpush1.bf16.msra.mxu0 %v2312
        %2386 = vmatprep.subr.bf16.mxu0 %v2311
        %2387 = vmatpush1.bf16.msra.mxu0 %v2310
        %2388 = vmatprep.subr.bf16.mxu0 %v2309
        %2389 = vmatpush1.bf16.msra.mxu0 %v2308
        %2390 = vmatprep.subr.bf16.mxu0 %v2307
        %2391 = vmatpush1.bf16.msra.mxu0 %v2306
        %2392 = vmatprep.subr.bf16.mxu0 %v2305
        %2393 = vmatpush1.bf16.msra.mxu0 %v2304
        %2394 = vmatprep.subr.bf16.mxu0 %v2303
        %2395 = vmatpush1.bf16.msra.mxu0 %v2302
        %2396 = vmatprep.subr.bf16.mxu0 0
        %2397 = vmatpush2.bf16.msra.mxu0 0
        %2398 = vmatprep.subr.bf16.mxu0 0
        %2399 = vmatpush2.bf16.msra.mxu0 0
        %2400 = vmatprep.subr.bf16.mxu0 0
        %2401 = vmatpush2.bf16.msra.mxu0 0
        %2402 = vmatprep.subr.bf16.mxu0 0
        %2403 = vmatpush2.bf16.msra.mxu0 0
        %2404 = vmatprep.subr.bf16.mxu0 0
        %2405 = vmatpush2.bf16.msra.mxu0 0
        %2406 = vmatprep.subr.bf16.mxu0 0
        %2407 = vmatpush2.bf16.msra.mxu0 0
        %2408 = vmatprep.subr.bf16.mxu0 0
        %2409 = vmatpush2.bf16.msra.mxu0 0
        %2410 = vmatprep.subr.bf16.mxu0 0
        %2411 = vmatpush2.bf16.msra.mxu0 0
        %2412 = vmatprep.mubr.bf16.mxu0 0
        %2413 = vmatmul.mubr.bf16.gmra.mxu0 %v2378
        %v2414 = vpop.f32.mrf.mxu0
        %v2415 = vadd.f32 0.0, %v2414
        %v2416 = vpop.f32.mrf.mxu0
        %v2417 = vadd.f32 0.0, %v2416
        %v2418 = vpop.f32.mrf.mxu0
        %v2419 = vpop.f32.mrf.mxu0
        %2420 = vdwg.mxu0
        %v2421 = vadd.f32 %v2235, %v2415
        %v2422 = vadd.f32 %v2236, %v2417
        %s2423 = scalar_lea.vmem %s3, 512
        %v2424 = vld [vmem:[%s2423] sm:$0xff]
        %v2425 = vld [vmem:[%s2423 + $0x8] sm:$0xff]
        %v2426 = vld [vmem:[%s2423 + $0x10] sm:$0xff]
        %v2427 = vld [vmem:[%s2423 + $0x18] sm:$0xff]
        %v2428 = vld [vmem:[%s2423 + $0x20] sm:$0xff]
        %v2429 = vld [vmem:[%s2423 + $0x28] sm:$0xff]
        %v2430 = vld [vmem:[%s2423 + $0x30] sm:$0xff]
        %v2431 = vld [vmem:[%s2423 + $0x38] sm:$0xff]
        %v2432 = vld [vmem:[%s2423 + $0x40] sm:$0xff]
        %v2433 = vld [vmem:[%s2423 + $0x48] sm:$0xff]
        %v2434 = vld [vmem:[%s2423 + $0x50] sm:$0xff]
        %v2435 = vld [vmem:[%s2423 + $0x58] sm:$0xff]
        %v2436 = vld [vmem:[%s2423 + $0x60] sm:$0xff]
        %v2437 = vld [vmem:[%s2423 + $0x68] sm:$0xff]
        %v2438 = vld [vmem:[%s2423 + $0x70] sm:$0xff]
        %v2439 = vld [vmem:[%s2423 + $0x78] sm:$0xff]
        %v2456 = vunpack.c.l.b16 %v2424
        %v2457 = vunpack.c.h.b16 %v2424
        %v2458 = vunpack.c.l.b16 %v2425
        %v2459 = vunpack.c.h.b16 %v2425
        %v2460 = vunpack.c.l.b16 %v2426
        %v2461 = vunpack.c.h.b16 %v2426
        %v2462 = vunpack.c.l.b16 %v2427
        %v2463 = vunpack.c.h.b16 %v2427
        %v2464 = vunpack.c.l.b16 %v2428
        %v2465 = vunpack.c.h.b16 %v2428
        %v2466 = vunpack.c.l.b16 %v2429
        %v2467 = vunpack.c.h.b16 %v2429
        %v2468 = vunpack.c.l.b16 %v2430
        %v2469 = vunpack.c.h.b16 %v2430
        %v2470 = vunpack.c.l.b16 %v2431
        %v2471 = vunpack.c.h.b16 %v2431
        %v2472 = vunpack.c.l.b16 %v2432
        %v2473 = vunpack.c.h.b16 %v2432
        %v2474 = vunpack.c.l.b16 %v2433
        %v2475 = vunpack.c.h.b16 %v2433
        %v2476 = vunpack.c.l.b16 %v2434
        %v2477 = vunpack.c.h.b16 %v2434
        %v2478 = vunpack.c.l.b16 %v2435
        %v2479 = vunpack.c.h.b16 %v2435
        %v2480 = vunpack.c.l.b16 %v2436
        %v2481 = vunpack.c.h.b16 %v2436
        %v2482 = vunpack.c.l.b16 %v2437
        %v2483 = vunpack.c.h.b16 %v2437
        %v2484 = vunpack.c.l.b16 %v2438
        %v2485 = vunpack.c.h.b16 %v2438
        %v2486 = vunpack.c.l.b16 %v2439
        %v2487 = vunpack.c.h.b16 %v2439
        %v2488 = vpack.c.b16 %v2458, %v2456
        %v2489 = vpack.c.b16 %v2459, %v2457
        %v2490 = vpack.c.b16 %v2462, %v2460
        %v2491 = vpack.c.b16 %v2463, %v2461
        %v2492 = vpack.c.b16 %v2466, %v2464
        %v2493 = vpack.c.b16 %v2467, %v2465
        %v2494 = vpack.c.b16 %v2470, %v2468
        %v2495 = vpack.c.b16 %v2471, %v2469
        %v2496 = vpack.c.b16 %v2474, %v2472
        %v2497 = vpack.c.b16 %v2475, %v2473
        %v2498 = vpack.c.b16 %v2478, %v2476
        %v2499 = vpack.c.b16 %v2479, %v2477
        %v2500 = vpack.c.b16 %v2482, %v2480
        %v2501 = vpack.c.b16 %v2483, %v2481
        %v2502 = vpack.c.b16 %v2486, %v2484
        %v2503 = vpack.c.b16 %v2487, %v2485
        %2520 = vmatprep.subr.bf16.mxu0 %v2503
        %2521 = vmatpush1.bf16.msra.mxu0 %v2502
        %2522 = vmatprep.subr.bf16.mxu0 %v2501
        %2523 = vmatpush1.bf16.msra.mxu0 %v2500
        %2524 = vmatprep.subr.bf16.mxu0 %v2499
        %2525 = vmatpush1.bf16.msra.mxu0 %v2498
        %2526 = vmatprep.subr.bf16.mxu0 %v2497
        %2527 = vmatpush1.bf16.msra.mxu0 %v2496
        %2528 = vmatprep.subr.bf16.mxu0 %v2495
        %2529 = vmatpush1.bf16.msra.mxu0 %v2494
        %2530 = vmatprep.subr.bf16.mxu0 %v2493
        %2531 = vmatpush1.bf16.msra.mxu0 %v2492
        %2532 = vmatprep.subr.bf16.mxu0 %v2491
        %2533 = vmatpush1.bf16.msra.mxu0 %v2490
        %2534 = vmatprep.subr.bf16.mxu0 %v2489
        %2535 = vmatpush1.bf16.msra.mxu0 %v2488
        %2536 = vmatprep.subr.bf16.mxu0 0
        %2537 = vmatpush2.bf16.msra.mxu0 0
        %2538 = vmatprep.subr.bf16.mxu0 0
        %2539 = vmatpush2.bf16.msra.mxu0 0
        %2540 = vmatprep.subr.bf16.mxu0 0
        %2541 = vmatpush2.bf16.msra.mxu0 0
        %2542 = vmatprep.subr.bf16.mxu0 0
        %2543 = vmatpush2.bf16.msra.mxu0 0
        %2544 = vmatprep.subr.bf16.mxu0 0
        %2545 = vmatpush2.bf16.msra.mxu0 0
        %2546 = vmatprep.subr.bf16.mxu0 0
        %2547 = vmatpush2.bf16.msra.mxu0 0
        %2548 = vmatprep.subr.bf16.mxu0 0
        %2549 = vmatpush2.bf16.msra.mxu0 0
        %2550 = vmatprep.subr.bf16.mxu0 0
        %2551 = vmatpush2.bf16.msra.mxu0 0
        %2552 = vmatprep.mubr.bf16.mxu0 0
        %2553 = vmatmul.mubr.bf16.gmra.mxu0 %v2378
        %v2554 = vpop.f32.mrf.mxu0
        %v2555 = vadd.f32 0.0, %v2554
        %v2556 = vpop.f32.mrf.mxu0
        %v2557 = vadd.f32 0.0, %v2556
        %v2558 = vpop.f32.mrf.mxu0
        %v2559 = vpop.f32.mrf.mxu0
        %2560 = vdwg.mxu0
        %v2561 = vadd.f32 %v2375, %v2555
        %v2562 = vadd.f32 %v2376, %v2557
        %v2564 = vrot.slane %v1680, 1
        %2566 = vmatprep.subr.bf16.mxu0 %v2503
        %2567 = vmatpush1.bf16.msra.mxu0 %v2502
        %2568 = vmatprep.subr.bf16.mxu0 %v2501
        %2569 = vmatpush1.bf16.msra.mxu0 %v2500
        %2570 = vmatprep.subr.bf16.mxu0 %v2499
        %2571 = vmatpush1.bf16.msra.mxu0 %v2498
        %2572 = vmatprep.subr.bf16.mxu0 %v2497
        %2573 = vmatpush1.bf16.msra.mxu0 %v2496
        %2574 = vmatprep.subr.bf16.mxu0 %v2495
        %2575 = vmatpush1.bf16.msra.mxu0 %v2494
        %2576 = vmatprep.subr.bf16.mxu0 %v2493
        %2577 = vmatpush1.bf16.msra.mxu0 %v2492
        %2578 = vmatprep.subr.bf16.mxu0 %v2491
        %2579 = vmatpush1.bf16.msra.mxu0 %v2490
        %2580 = vmatprep.subr.bf16.mxu0 %v2489
        %2581 = vmatpush1.bf16.msra.mxu0 %v2488
        %2582 = vmatprep.subr.bf16.mxu0 0
        %2583 = vmatpush2.bf16.msra.mxu0 0
        %2584 = vmatprep.subr.bf16.mxu0 0
        %2585 = vmatpush2.bf16.msra.mxu0 0
        %2586 = vmatprep.subr.bf16.mxu0 0
        %2587 = vmatpush2.bf16.msra.mxu0 0
        %2588 = vmatprep.subr.bf16.mxu0 0
        %2589 = vmatpush2.bf16.msra.mxu0 0
        %2590 = vmatprep.subr.bf16.mxu0 0
        %2591 = vmatpush2.bf16.msra.mxu0 0
        %2592 = vmatprep.subr.bf16.mxu0 0
        %2593 = vmatpush2.bf16.msra.mxu0 0
        %2594 = vmatprep.subr.bf16.mxu0 0
        %2595 = vmatpush2.bf16.msra.mxu0 0
        %2596 = vmatprep.subr.bf16.mxu0 0
        %2597 = vmatpush2.bf16.msra.mxu0 0
        %2598 = vmatprep.mubr.bf16.mxu0 0
        %2599 = vmatmul.mubr.bf16.gmra.mxu0 %v2564
        %v2600 = vpop.f32.mrf.mxu0
        %v2601 = vadd.f32 0.0, %v2600
        %v2602 = vpop.f32.mrf.mxu0
        %v2603 = vadd.f32 0.0, %v2602
        %v2604 = vpop.f32.mrf.mxu0
        %v2605 = vpop.f32.mrf.mxu0
        %2606 = vdwg.mxu0
        %v2607 = vadd.f32 %v2421, %v2601
        %v2608 = vadd.f32 %v2422, %v2603
        %v2609 = vmax.f32 %v2561, %v2562
        %v2610 = vmax.f32 %v2607, %v2608
        %v2611 = vmax.f32 %v2609, %v2610
        %v2612 = vld [vmem:[%s4] sm:$0x1]
        %v2614 = vlaneseq
        %v2615 = vshrl.u32 %v2614, 7
        %v2616 = vsub.s32 0, %v2615
        %v2617 = vrot.slane %v2612, %v2616
        %v2619 = vadd.f32 %v2611, %v2617
        %v2620 = vmax.f32 %v2619, 0.0
        %v2621 = vpack.c.bf16 %v2620, %v2620
        %v2622 = vld [vmem:[%s5] sm:$0xf]
        %v2623 = vld [vmem:[%s5 + $0x4] sm:$0xf]
        %v2624 = vld [vmem:[%s5 + $0x8] sm:$0xf]
        %v2625 = vld [vmem:[%s5 + $0xc] sm:$0xf]
        %v2626 = vld [vmem:[%s5 + $0x10] sm:$0xf]
        %v2627 = vld [vmem:[%s5 + $0x14] sm:$0xf]
        %v2628 = vld [vmem:[%s5 + $0x18] sm:$0xf]
        %v2629 = vld [vmem:[%s5 + $0x1c] sm:$0xf]
        %v2630 = vld [vmem:[%s5 + $0x20] sm:$0xf]
        %v2631 = vld [vmem:[%s5 + $0x24] sm:$0xf]
        %v2632 = vld [vmem:[%s5 + $0x28] sm:$0xf]
        %v2633 = vld [vmem:[%s5 + $0x2c] sm:$0xf]
        %v2634 = vld [vmem:[%s5 + $0x30] sm:$0xf]
        %v2635 = vld [vmem:[%s5 + $0x34] sm:$0xf]
        %v2636 = vld [vmem:[%s5 + $0x38] sm:$0xf]
        %v2637 = vld [vmem:[%s5 + $0x3c] sm:$0xf]
        %v2638 = vld [vmem:[%s5 + $0x40] sm:$0xf]
        %v2639 = vld [vmem:[%s5 + $0x44] sm:$0xf]
        %v2640 = vld [vmem:[%s5 + $0x48] sm:$0xf]
        %v2641 = vld [vmem:[%s5 + $0x4c] sm:$0xf]
        %v2642 = vld [vmem:[%s5 + $0x50] sm:$0xf]
        %v2643 = vld [vmem:[%s5 + $0x54] sm:$0xf]
        %v2644 = vld [vmem:[%s5 + $0x58] sm:$0xf]
        %v2645 = vld [vmem:[%s5 + $0x5c] sm:$0xf]
        %v2646 = vld [vmem:[%s5 + $0x60] sm:$0xf]
        %v2647 = vld [vmem:[%s5 + $0x64] sm:$0xf]
        %v2648 = vld [vmem:[%s5 + $0x68] sm:$0xf]
        %v2649 = vld [vmem:[%s5 + $0x6c] sm:$0xf]
        %v2650 = vld [vmem:[%s5 + $0x70] sm:$0xf]
        %v2651 = vld [vmem:[%s5 + $0x74] sm:$0xf]
        %v2652 = vld [vmem:[%s5 + $0x78] sm:$0xf]
        %v2653 = vld [vmem:[%s5 + $0x7c] sm:$0xf]
        %v2655 = vshrl.u32 %v2621, 16
        %v2674 = vunpack.c.l.b16 %v2638
        %v2675 = vunpack.c.l.b16 %v2639
        %v2676 = vunpack.c.l.b16 %v2640
        %v2677 = vunpack.c.l.b16 %v2641
        %v2678 = vunpack.c.l.b16 %v2642
        %v2679 = vunpack.c.l.b16 %v2643
        %v2680 = vunpack.c.l.b16 %v2644
        %v2681 = vunpack.c.l.b16 %v2645
        %v2682 = vunpack.c.l.b16 %v2646
        %v2683 = vunpack.c.l.b16 %v2647
        %v2684 = vunpack.c.l.b16 %v2648
        %v2685 = vunpack.c.l.b16 %v2649
        %v2686 = vunpack.c.l.b16 %v2650
        %v2687 = vunpack.c.l.b16 %v2651
        %v2688 = vunpack.c.l.b16 %v2652
        %v2689 = vunpack.c.l.b16 %v2653
        %v2690 = vpack.c.b16 %v2675, %v2674
        %v2691 = vpack.c.b16 %v2677, %v2676
        %v2692 = vpack.c.b16 %v2679, %v2678
        %v2693 = vpack.c.b16 %v2681, %v2680
        %v2694 = vpack.c.b16 %v2683, %v2682
        %v2695 = vpack.c.b16 %v2685, %v2684
        %v2696 = vpack.c.b16 %v2687, %v2686
        %v2697 = vpack.c.b16 %v2689, %v2688
        %2706 = vmatprep.subr.bf16.mxu0 0
        %2707 = vmatpush1.bf16.msra.mxu0 %v2697
        %2708 = vmatprep.subr.bf16.mxu0 0
        %2709 = vmatpush1.bf16.msra.mxu0 %v2696
        %2710 = vmatprep.subr.bf16.mxu0 0
        %2711 = vmatpush1.bf16.msra.mxu0 %v2695
        %2712 = vmatprep.subr.bf16.mxu0 0
        %2713 = vmatpush1.bf16.msra.mxu0 %v2694
        %2714 = vmatprep.subr.bf16.mxu0 0
        %2715 = vmatpush1.bf16.msra.mxu0 %v2693
        %2716 = vmatprep.subr.bf16.mxu0 0
        %2717 = vmatpush1.bf16.msra.mxu0 %v2692
        %2718 = vmatprep.subr.bf16.mxu0 0
        %2719 = vmatpush1.bf16.msra.mxu0 %v2691
        %2720 = vmatprep.subr.bf16.mxu0 0
        %2721 = vmatpush1.bf16.msra.mxu0 %v2690
        %2722 = vmatprep.subr.bf16.mxu0 0
        %2723 = vmatpush2.bf16.msra.mxu0 0
        %2724 = vmatprep.subr.bf16.mxu0 0
        %2725 = vmatpush2.bf16.msra.mxu0 0
        %2726 = vmatprep.subr.bf16.mxu0 0
        %2727 = vmatpush2.bf16.msra.mxu0 0
        %2728 = vmatprep.subr.bf16.mxu0 0
        %2729 = vmatpush2.bf16.msra.mxu0 0
        %2730 = vmatprep.subr.bf16.mxu0 0
        %2731 = vmatpush2.bf16.msra.mxu0 0
        %2732 = vmatprep.subr.bf16.mxu0 0
        %2733 = vmatpush2.bf16.msra.mxu0 0
        %2734 = vmatprep.subr.bf16.mxu0 0
        %2735 = vmatpush2.bf16.msra.mxu0 0
        %2736 = vmatprep.subr.bf16.mxu0 0
        %2737 = vmatpush2.bf16.msra.mxu0 0
        %2738 = vmatprep.mubr.bf16.mxu0 0
        %2739 = vmatmul.mubr.bf16.gmra.mxu0 %v2655
        %v2740 = vpop.f32.mrf.mxu0
        %v2741 = vadd.f32 0.0, %v2740
        %v2742 = vpop.f32.mrf.mxu0
        %v2743 = vpop.f32.mrf.mxu0
        %v2744 = vpop.f32.mrf.mxu0
        %2745 = vdwg.mxu0
        %v2762 = vunpack.c.l.b16 %v2622
        %v2763 = vunpack.c.l.b16 %v2623
        %v2764 = vunpack.c.l.b16 %v2624
        %v2765 = vunpack.c.l.b16 %v2625
        %v2766 = vunpack.c.l.b16 %v2626
        %v2767 = vunpack.c.l.b16 %v2627
        %v2768 = vunpack.c.l.b16 %v2628
        %v2769 = vunpack.c.l.b16 %v2629
        %v2770 = vunpack.c.l.b16 %v2630
        %v2771 = vunpack.c.l.b16 %v2631
        %v2772 = vunpack.c.l.b16 %v2632
        %v2773 = vunpack.c.l.b16 %v2633
        %v2774 = vunpack.c.l.b16 %v2634
        %v2775 = vunpack.c.l.b16 %v2635
        %v2776 = vunpack.c.l.b16 %v2636
        %v2777 = vunpack.c.l.b16 %v2637
        %v2778 = vpack.c.b16 %v2763, %v2762
        %v2779 = vpack.c.b16 %v2765, %v2764
        %v2780 = vpack.c.b16 %v2767, %v2766
        %v2781 = vpack.c.b16 %v2769, %v2768
        %v2782 = vpack.c.b16 %v2771, %v2770
        %v2783 = vpack.c.b16 %v2773, %v2772
        %v2784 = vpack.c.b16 %v2775, %v2774
        %v2785 = vpack.c.b16 %v2777, %v2776
        %2794 = vmatprep.subr.bf16.mxu0 0
        %2795 = vmatpush1.bf16.msra.mxu0 %v2785
        %2796 = vmatprep.subr.bf16.mxu0 0
        %2797 = vmatpush1.bf16.msra.mxu0 %v2784
        %2798 = vmatprep.subr.bf16.mxu0 0
        %2799 = vmatpush1.bf16.msra.mxu0 %v2783
        %2800 = vmatprep.subr.bf16.mxu0 0
        %2801 = vmatpush1.bf16.msra.mxu0 %v2782
        %2802 = vmatprep.subr.bf16.mxu0 0
        %2803 = vmatpush1.bf16.msra.mxu0 %v2781
        %2804 = vmatprep.subr.bf16.mxu0 0
        %2805 = vmatpush1.bf16.msra.mxu0 %v2780
        %2806 = vmatprep.subr.bf16.mxu0 0
        %2807 = vmatpush1.bf16.msra.mxu0 %v2779
        %2808 = vmatprep.subr.bf16.mxu0 0
        %2809 = vmatpush1.bf16.msra.mxu0 %v2778
        %2810 = vmatprep.subr.bf16.mxu0 0
        %2811 = vmatpush2.bf16.msra.mxu0 0
        %2812 = vmatprep.subr.bf16.mxu0 0
        %2813 = vmatpush2.bf16.msra.mxu0 0
        %2814 = vmatprep.subr.bf16.mxu0 0
        %2815 = vmatpush2.bf16.msra.mxu0 0
        %2816 = vmatprep.subr.bf16.mxu0 0
        %2817 = vmatpush2.bf16.msra.mxu0 0
        %2818 = vmatprep.subr.bf16.mxu0 0
        %2819 = vmatpush2.bf16.msra.mxu0 0
        %2820 = vmatprep.subr.bf16.mxu0 0
        %2821 = vmatpush2.bf16.msra.mxu0 0
        %2822 = vmatprep.subr.bf16.mxu0 0
        %2823 = vmatpush2.bf16.msra.mxu0 0
        %2824 = vmatprep.subr.bf16.mxu0 0
        %2825 = vmatpush2.bf16.msra.mxu0 0
        %2826 = vmatprep.mubr.bf16.mxu0 0
        %2827 = vmatmul.mubr.bf16.gmra.mxu0 %v2621
        %v2828 = vpop.f32.mrf.mxu0
        %v2829 = vadd.f32 %v2741, %v2828
        %v2830 = vpop.f32.mrf.mxu0
        %v2831 = vpop.f32.mrf.mxu0
        %v2832 = vpop.f32.mrf.mxu0
        %2833 = vdwg.mxu0
        %v2834 = vld [vmem:[%s5 + $0x80] sm:$0xf]
        %v2835 = vld [vmem:[%s5 + $0x84] sm:$0xf]
        %v2836 = vld [vmem:[%s5 + $0x88] sm:$0xf]
        %v2837 = vld [vmem:[%s5 + $0x8c] sm:$0xf]
        %v2838 = vld [vmem:[%s5 + $0x90] sm:$0xf]
        %v2839 = vld [vmem:[%s5 + $0x94] sm:$0xf]
        %v2840 = vld [vmem:[%s5 + $0x98] sm:$0xf]
        %v2841 = vld [vmem:[%s5 + $0x9c] sm:$0xf]
        %v2842 = vld [vmem:[%s5 + $0xa0] sm:$0xf]
        %v2843 = vld [vmem:[%s5 + $0xa4] sm:$0xf]
        %v2844 = vld [vmem:[%s5 + $0xa8] sm:$0xf]
        %v2845 = vld [vmem:[%s5 + $0xac] sm:$0xf]
        %v2846 = vld [vmem:[%s5 + $0xb0] sm:$0xf]
        %v2847 = vld [vmem:[%s5 + $0xb4] sm:$0xf]
        %v2848 = vld [vmem:[%s5 + $0xb8] sm:$0xf]
        %v2849 = vld [vmem:[%s5 + $0xbc] sm:$0xf]
        %v2851 = vrot.slane %v2621, 1
        %v2869 = vunpack.c.l.b16 %v2834
        %v2870 = vunpack.c.l.b16 %v2835
        %v2871 = vunpack.c.l.b16 %v2836
        %v2872 = vunpack.c.l.b16 %v2837
        %v2873 = vunpack.c.l.b16 %v2838
        %v2874 = vunpack.c.l.b16 %v2839
        %v2875 = vunpack.c.l.b16 %v2840
        %v2876 = vunpack.c.l.b16 %v2841
        %v2877 = vunpack.c.l.b16 %v2842
        %v2878 = vunpack.c.l.b16 %v2843
        %v2879 = vunpack.c.l.b16 %v2844
        %v2880 = vunpack.c.l.b16 %v2845
        %v2881 = vunpack.c.l.b16 %v2846
        %v2882 = vunpack.c.l.b16 %v2847
        %v2883 = vunpack.c.l.b16 %v2848
        %v2884 = vunpack.c.l.b16 %v2849
        %v2885 = vpack.c.b16 %v2870, %v2869
        %v2886 = vpack.c.b16 %v2872, %v2871
        %v2887 = vpack.c.b16 %v2874, %v2873
        %v2888 = vpack.c.b16 %v2876, %v2875
        %v2889 = vpack.c.b16 %v2878, %v2877
        %v2890 = vpack.c.b16 %v2880, %v2879
        %v2891 = vpack.c.b16 %v2882, %v2881
        %v2892 = vpack.c.b16 %v2884, %v2883
        %2901 = vmatprep.subr.bf16.mxu0 0
        %2902 = vmatpush1.bf16.msra.mxu0 %v2892
        %2903 = vmatprep.subr.bf16.mxu0 0
        %2904 = vmatpush1.bf16.msra.mxu0 %v2891
        %2905 = vmatprep.subr.bf16.mxu0 0
        %2906 = vmatpush1.bf16.msra.mxu0 %v2890
        %2907 = vmatprep.subr.bf16.mxu0 0
        %2908 = vmatpush1.bf16.msra.mxu0 %v2889
        %2909 = vmatprep.subr.bf16.mxu0 0
        %2910 = vmatpush1.bf16.msra.mxu0 %v2888
        %2911 = vmatprep.subr.bf16.mxu0 0
        %2912 = vmatpush1.bf16.msra.mxu0 %v2887
        %2913 = vmatprep.subr.bf16.mxu0 0
        %2914 = vmatpush1.bf16.msra.mxu0 %v2886
        %2915 = vmatprep.subr.bf16.mxu0 0
        %2916 = vmatpush1.bf16.msra.mxu0 %v2885
        %2917 = vmatprep.subr.bf16.mxu0 0
        %2918 = vmatpush2.bf16.msra.mxu0 0
        %2919 = vmatprep.subr.bf16.mxu0 0
        %2920 = vmatpush2.bf16.msra.mxu0 0
        %2921 = vmatprep.subr.bf16.mxu0 0
        %2922 = vmatpush2.bf16.msra.mxu0 0
        %2923 = vmatprep.subr.bf16.mxu0 0
        %2924 = vmatpush2.bf16.msra.mxu0 0
        %2925 = vmatprep.subr.bf16.mxu0 0
        %2926 = vmatpush2.bf16.msra.mxu0 0
        %2927 = vmatprep.subr.bf16.mxu0 0
        %2928 = vmatpush2.bf16.msra.mxu0 0
        %2929 = vmatprep.subr.bf16.mxu0 0
        %2930 = vmatpush2.bf16.msra.mxu0 0
        %2931 = vmatprep.subr.bf16.mxu0 0
        %2932 = vmatpush2.bf16.msra.mxu0 0
        %2933 = vmatprep.mubr.bf16.mxu0 0
        %2934 = vmatmul.mubr.bf16.gmra.mxu0 %v2851
        %v2935 = vpop.f32.mrf.mxu0
        %v2936 = vadd.f32 0.0, %v2935
        %v2937 = vpop.f32.mrf.mxu0
        %v2938 = vpop.f32.mrf.mxu0
        %v2939 = vpop.f32.mrf.mxu0
        %2940 = vdwg.mxu0
        %v2941 = vadd.f32 %v2829, %v2936
        %v2942 = vld [vmem:[%s5 + $0xc0] sm:$0xf]
        %v2943 = vld [vmem:[%s5 + $0xc4] sm:$0xf]
        %v2944 = vld [vmem:[%s5 + $0xc8] sm:$0xf]
        %v2945 = vld [vmem:[%s5 + $0xcc] sm:$0xf]
        %v2946 = vld [vmem:[%s5 + $0xd0] sm:$0xf]
        %v2947 = vld [vmem:[%s5 + $0xd4] sm:$0xf]
        %v2948 = vld [vmem:[%s5 + $0xd8] sm:$0xf]
        %v2949 = vld [vmem:[%s5 + $0xdc] sm:$0xf]
        %v2950 = vld [vmem:[%s5 + $0xe0] sm:$0xf]
        %v2951 = vld [vmem:[%s5 + $0xe4] sm:$0xf]
        %v2952 = vld [vmem:[%s5 + $0xe8] sm:$0xf]
        %v2953 = vld [vmem:[%s5 + $0xec] sm:$0xf]
        %v2954 = vld [vmem:[%s5 + $0xf0] sm:$0xf]
        %v2955 = vld [vmem:[%s5 + $0xf4] sm:$0xf]
        %v2956 = vld [vmem:[%s5 + $0xf8] sm:$0xf]
        %v2957 = vld [vmem:[%s5 + $0xfc] sm:$0xf]
        %v2958 = vrot.slane %v2655, 1
        %v2976 = vunpack.c.l.b16 %v2942
        %v2977 = vunpack.c.l.b16 %v2943
        %v2978 = vunpack.c.l.b16 %v2944
        %v2979 = vunpack.c.l.b16 %v2945
        %v2980 = vunpack.c.l.b16 %v2946
        %v2981 = vunpack.c.l.b16 %v2947
        %v2982 = vunpack.c.l.b16 %v2948
        %v2983 = vunpack.c.l.b16 %v2949
        %v2984 = vunpack.c.l.b16 %v2950
        %v2985 = vunpack.c.l.b16 %v2951
        %v2986 = vunpack.c.l.b16 %v2952
        %v2987 = vunpack.c.l.b16 %v2953
        %v2988 = vunpack.c.l.b16 %v2954
        %v2989 = vunpack.c.l.b16 %v2955
        %v2990 = vunpack.c.l.b16 %v2956
        %v2991 = vunpack.c.l.b16 %v2957
        %v2992 = vpack.c.b16 %v2977, %v2976
        %v2993 = vpack.c.b16 %v2979, %v2978
        %v2994 = vpack.c.b16 %v2981, %v2980
        %v2995 = vpack.c.b16 %v2983, %v2982
        %v2996 = vpack.c.b16 %v2985, %v2984
        %v2997 = vpack.c.b16 %v2987, %v2986
        %v2998 = vpack.c.b16 %v2989, %v2988
        %v2999 = vpack.c.b16 %v2991, %v2990
        %3008 = vmatprep.subr.bf16.mxu0 0
        %3009 = vmatpush1.bf16.msra.mxu0 %v2999
        %3010 = vmatprep.subr.bf16.mxu0 0
        %3011 = vmatpush1.bf16.msra.mxu0 %v2998
        %3012 = vmatprep.subr.bf16.mxu0 0
        %3013 = vmatpush1.bf16.msra.mxu0 %v2997
        %3014 = vmatprep.subr.bf16.mxu0 0
        %3015 = vmatpush1.bf16.msra.mxu0 %v2996
        %3016 = vmatprep.subr.bf16.mxu0 0
        %3017 = vmatpush1.bf16.msra.mxu0 %v2995
        %3018 = vmatprep.subr.bf16.mxu0 0
        %3019 = vmatpush1.bf16.msra.mxu0 %v2994
        %3020 = vmatprep.subr.bf16.mxu0 0
        %3021 = vmatpush1.bf16.msra.mxu0 %v2993
        %3022 = vmatprep.subr.bf16.mxu0 0
        %3023 = vmatpush1.bf16.msra.mxu0 %v2992
        %3024 = vmatprep.subr.bf16.mxu0 0
        %3025 = vmatpush2.bf16.msra.mxu0 0
        %3026 = vmatprep.subr.bf16.mxu0 0
        %3027 = vmatpush2.bf16.msra.mxu0 0
        %3028 = vmatprep.subr.bf16.mxu0 0
        %3029 = vmatpush2.bf16.msra.mxu0 0
        %3030 = vmatprep.subr.bf16.mxu0 0
        %3031 = vmatpush2.bf16.msra.mxu0 0
        %3032 = vmatprep.subr.bf16.mxu0 0
        %3033 = vmatpush2.bf16.msra.mxu0 0
        %3034 = vmatprep.subr.bf16.mxu0 0
        %3035 = vmatpush2.bf16.msra.mxu0 0
        %3036 = vmatprep.subr.bf16.mxu0 0
        %3037 = vmatpush2.bf16.msra.mxu0 0
        %3038 = vmatprep.subr.bf16.mxu0 0
        %3039 = vmatpush2.bf16.msra.mxu0 0
        %3040 = vmatprep.mubr.bf16.mxu0 0
        %3041 = vmatmul.mubr.bf16.gmra.mxu0 %v2958
        %v3042 = vpop.f32.mrf.mxu0
        %v3043 = vadd.f32 0.0, %v3042
        %v3044 = vpop.f32.mrf.mxu0
        %v3045 = vpop.f32.mrf.mxu0
        %v3046 = vpop.f32.mrf.mxu0
        %3047 = vdwg.mxu0
        %v3048 = vadd.f32 %v2941, %v3043
        %v3049 = vld [vmem:[%s5 + $0x100] sm:$0xf]
        %v3050 = vld [vmem:[%s5 + $0x104] sm:$0xf]
        %v3051 = vld [vmem:[%s5 + $0x108] sm:$0xf]
        %v3052 = vld [vmem:[%s5 + $0x10c] sm:$0xf]
        %v3053 = vld [vmem:[%s5 + $0x110] sm:$0xf]
        %v3054 = vld [vmem:[%s5 + $0x114] sm:$0xf]
        %v3055 = vld [vmem:[%s5 + $0x118] sm:$0xf]
        %v3056 = vld [vmem:[%s5 + $0x11c] sm:$0xf]
        %v3057 = vld [vmem:[%s5 + $0x120] sm:$0xf]
        %v3058 = vld [vmem:[%s5 + $0x124] sm:$0xf]
        %v3059 = vld [vmem:[%s5 + $0x128] sm:$0xf]
        %v3060 = vld [vmem:[%s5 + $0x12c] sm:$0xf]
        %v3061 = vld [vmem:[%s5 + $0x130] sm:$0xf]
        %v3062 = vld [vmem:[%s5 + $0x134] sm:$0xf]
        %v3063 = vld [vmem:[%s5 + $0x138] sm:$0xf]
        %v3064 = vld [vmem:[%s5 + $0x13c] sm:$0xf]
        %v3065 = vrot.slane %v2621, 2
        %v3083 = vunpack.c.l.b16 %v3049
        %v3084 = vunpack.c.l.b16 %v3050
        %v3085 = vunpack.c.l.b16 %v3051
        %v3086 = vunpack.c.l.b16 %v3052
        %v3087 = vunpack.c.l.b16 %v3053
        %v3088 = vunpack.c.l.b16 %v3054
        %v3089 = vunpack.c.l.b16 %v3055
        %v3090 = vunpack.c.l.b16 %v3056
        %v3091 = vunpack.c.l.b16 %v3057
        %v3092 = vunpack.c.l.b16 %v3058
        %v3093 = vunpack.c.l.b16 %v3059
        %v3094 = vunpack.c.l.b16 %v3060
        %v3095 = vunpack.c.l.b16 %v3061
        %v3096 = vunpack.c.l.b16 %v3062
        %v3097 = vunpack.c.l.b16 %v3063
        %v3098 = vunpack.c.l.b16 %v3064
        %v3099 = vpack.c.b16 %v3084, %v3083
        %v3100 = vpack.c.b16 %v3086, %v3085
        %v3101 = vpack.c.b16 %v3088, %v3087
        %v3102 = vpack.c.b16 %v3090, %v3089
        %v3103 = vpack.c.b16 %v3092, %v3091
        %v3104 = vpack.c.b16 %v3094, %v3093
        %v3105 = vpack.c.b16 %v3096, %v3095
        %v3106 = vpack.c.b16 %v3098, %v3097
        %3115 = vmatprep.subr.bf16.mxu0 0
        %3116 = vmatpush1.bf16.msra.mxu0 %v3106
        %3117 = vmatprep.subr.bf16.mxu0 0
        %3118 = vmatpush1.bf16.msra.mxu0 %v3105
        %3119 = vmatprep.subr.bf16.mxu0 0
        %3120 = vmatpush1.bf16.msra.mxu0 %v3104
        %3121 = vmatprep.subr.bf16.mxu0 0
        %3122 = vmatpush1.bf16.msra.mxu0 %v3103
        %3123 = vmatprep.subr.bf16.mxu0 0
        %3124 = vmatpush1.bf16.msra.mxu0 %v3102
        %3125 = vmatprep.subr.bf16.mxu0 0
        %3126 = vmatpush1.bf16.msra.mxu0 %v3101
        %3127 = vmatprep.subr.bf16.mxu0 0
        %3128 = vmatpush1.bf16.msra.mxu0 %v3100
        %3129 = vmatprep.subr.bf16.mxu0 0
        %3130 = vmatpush1.bf16.msra.mxu0 %v3099
        %3131 = vmatprep.subr.bf16.mxu0 0
        %3132 = vmatpush2.bf16.msra.mxu0 0
        %3133 = vmatprep.subr.bf16.mxu0 0
        %3134 = vmatpush2.bf16.msra.mxu0 0
        %3135 = vmatprep.subr.bf16.mxu0 0
        %3136 = vmatpush2.bf16.msra.mxu0 0
        %3137 = vmatprep.subr.bf16.mxu0 0
        %3138 = vmatpush2.bf16.msra.mxu0 0
        %3139 = vmatprep.subr.bf16.mxu0 0
        %3140 = vmatpush2.bf16.msra.mxu0 0
        %3141 = vmatprep.subr.bf16.mxu0 0
        %3142 = vmatpush2.bf16.msra.mxu0 0
        %3143 = vmatprep.subr.bf16.mxu0 0
        %3144 = vmatpush2.bf16.msra.mxu0 0
        %3145 = vmatprep.subr.bf16.mxu0 0
        %3146 = vmatpush2.bf16.msra.mxu0 0
        %3147 = vmatprep.mubr.bf16.mxu0 0
        %3148 = vmatmul.mubr.bf16.gmra.mxu0 %v3065
        %v3149 = vpop.f32.mrf.mxu0
        %v3150 = vadd.f32 0.0, %v3149
        %v3151 = vpop.f32.mrf.mxu0
        %v3152 = vpop.f32.mrf.mxu0
        %v3153 = vpop.f32.mrf.mxu0
        %3154 = vdwg.mxu0
        %v3155 = vadd.f32 %v3048, %v3150
        %v3156 = vld [vmem:[%s6] sm:$0x1]
        %v3157 = vadd.f32 %v3155, %v3156
        %v3158 = vmax.f32 %v3157, 0.0
        %v3159 = vpack.c.bf16 %v3158, %v3158
        %v3160 = vld [vmem:[%s7] sm:$0xf]
        %v3161 = vld [vmem:[%s7 + $0x4] sm:$0xf]
        %v3162 = vld [vmem:[%s7 + $0x8] sm:$0xf]
        %v3163 = vld [vmem:[%s7 + $0xc] sm:$0xf]
        %v3164 = vld [vmem:[%s7 + $0x10] sm:$0xf]
        %v3165 = vld [vmem:[%s7 + $0x14] sm:$0xf]
        %v3166 = vld [vmem:[%s7 + $0x18] sm:$0xf]
        %v3167 = vld [vmem:[%s7 + $0x1c] sm:$0xf]
        %v3168 = vld [vmem:[%s7 + $0x20] sm:$0xf]
        %v3169 = vld [vmem:[%s7 + $0x24] sm:$0xf]
        %v3170 = vld [vmem:[%s7 + $0x28] sm:$0xf]
        %v3171 = vld [vmem:[%s7 + $0x2c] sm:$0xf]
        %v3172 = vld [vmem:[%s7 + $0x30] sm:$0xf]
        %v3173 = vld [vmem:[%s7 + $0x34] sm:$0xf]
        %v3174 = vld [vmem:[%s7 + $0x38] sm:$0xf]
        %v3175 = vld [vmem:[%s8] sm:$0x1]
        %v3191 = vunpack.c.l.b16 %v3160
        %v3192 = vunpack.c.l.b16 %v3161
        %v3193 = vunpack.c.l.b16 %v3162
        %v3194 = vunpack.c.l.b16 %v3163
        %v3195 = vunpack.c.l.b16 %v3164
        %v3196 = vunpack.c.l.b16 %v3165
        %v3197 = vunpack.c.l.b16 %v3166
        %v3198 = vunpack.c.l.b16 %v3167
        %v3199 = vunpack.c.l.b16 %v3168
        %v3200 = vunpack.c.l.b16 %v3169
        %v3201 = vunpack.c.l.b16 %v3170
        %v3202 = vunpack.c.l.b16 %v3171
        %v3203 = vunpack.c.l.b16 %v3172
        %v3204 = vunpack.c.l.b16 %v3173
        %v3205 = vunpack.c.l.b16 %v3174
        %v3206 = vpack.c.b16 %v3192, %v3191
        %v3207 = vpack.c.b16 %v3194, %v3193
        %v3208 = vpack.c.b16 %v3196, %v3195
        %v3209 = vpack.c.b16 %v3198, %v3197
        %v3210 = vpack.c.b16 %v3200, %v3199
        %v3211 = vpack.c.b16 %v3202, %v3201
        %v3212 = vpack.c.b16 %v3204, %v3203
        %v3213 = vpack.c.b16 %v3205, %v3205
        %vm3221 = vcmask 982016
        %v3223 = vsel %vm3221, %v3159, 0
        %vm3225 = vcmask 1043456
        %v3227 = vsel %vm3225, %v3213, 0
        %3229 = vmatprep.subr.bf16.mxu0 0
        %3230 = vmatpush1.bf16.msra.mxu0 %v3227
        %3231 = vmatprep.subr.bf16.mxu0 0
        %3232 = vmatpush1.bf16.msra.mxu0 %v3212
        %3233 = vmatprep.subr.bf16.mxu0 0
        %3234 = vmatpush1.bf16.msra.mxu0 %v3211
        %3235 = vmatprep.subr.bf16.mxu0 0
        %3236 = vmatpush1.bf16.msra.mxu0 %v3210
        %3237 = vmatprep.subr.bf16.mxu0 0
        %3238 = vmatpush1.bf16.msra.mxu0 %v3209
        %3239 = vmatprep.subr.bf16.mxu0 0
        %3240 = vmatpush1.bf16.msra.mxu0 %v3208
        %3241 = vmatprep.subr.bf16.mxu0 0
        %3242 = vmatpush1.bf16.msra.mxu0 %v3207
        %3243 = vmatprep.subr.bf16.mxu0 0
        %3244 = vmatpush1.bf16.msra.mxu0 %v3206
        %3245 = vmatprep.subr.bf16.mxu0 0
        %3246 = vmatpush2.bf16.msra.mxu0 0
        %3247 = vmatprep.subr.bf16.mxu0 0
        %3248 = vmatpush2.bf16.msra.mxu0 0
        %3249 = vmatprep.subr.bf16.mxu0 0
        %3250 = vmatpush2.bf16.msra.mxu0 0
        %3251 = vmatprep.subr.bf16.mxu0 0
        %3252 = vmatpush2.bf16.msra.mxu0 0
        %3253 = vmatprep.subr.bf16.mxu0 0
        %3254 = vmatpush2.bf16.msra.mxu0 0
        %3255 = vmatprep.subr.bf16.mxu0 0
        %3256 = vmatpush2.bf16.msra.mxu0 0
        %3257 = vmatprep.subr.bf16.mxu0 0
        %3258 = vmatpush2.bf16.msra.mxu0 0
        %3259 = vmatprep.subr.bf16.mxu0 0
        %3260 = vmatpush2.bf16.msra.mxu0 0
        %3261 = vmatprep.mubr.bf16.mxu0 0
        %3262 = vmatmul.mubr.bf16.gmra.mxu0 %v3223
        %v3263 = vpop.f32.mrf.mxu0
        %v3264 = vadd.f32 %v3175, %v3263
        %v3265 = vpop.f32.mrf.mxu0
        %v3266 = vpop.f32.mrf.mxu0
        %v3267 = vpop.f32.mrf.mxu0
        %3268 = vdwg.mxu0
        %v3269 = vmax.f32 %v3264, 0.0
        %v3270 = vpack.c.bf16 %v3269, %v3269
        %v3271 = vld [vmem:[%s9] sm:$0xf]
        %v3272 = vld [vmem:[%s9 + $0x4] sm:$0xf]
        %v3273 = vld [vmem:[%s9 + $0x8] sm:$0xf]
        %v3274 = vld [vmem:[%s9 + $0xc] sm:$0xf]
        %v3275 = vld [vmem:[%s9 + $0x10] sm:$0xf]
        %v3276 = vld [vmem:[%s9 + $0x14] sm:$0xf]
        %v3277 = vld [vmem:[%s9 + $0x18] sm:$0xf]
        %v3278 = vld [vmem:[%s9 + $0x1c] sm:$0xf]
        %v3279 = vld [vmem:[%s10] sm:$0x1]
        %v3288 = vunpack.c.l.b16 %v3271
        %v3289 = vunpack.c.l.b16 %v3272
        %v3290 = vunpack.c.l.b16 %v3273
        %v3291 = vunpack.c.l.b16 %v3274
        %v3292 = vunpack.c.l.b16 %v3275
        %v3293 = vunpack.c.l.b16 %v3276
        %v3294 = vunpack.c.l.b16 %v3277
        %v3295 = vunpack.c.l.b16 %v3278
        %v3296 = vpack.c.b16 %v3289, %v3288
        %v3297 = vpack.c.b16 %v3291, %v3290
        %v3298 = vpack.c.b16 %v3293, %v3292
        %v3299 = vpack.c.b16 %v3295, %v3294
        %vm3304 = vcmask 523264
        %v3306 = vsel %vm3304, %v3270, 0
        %3308 = vmatprep.subr.bf16.mxu0 0
        %3309 = vmatpush1.bf16.msra.mxu0 0
        %3310 = vmatprep.subr.bf16.mxu0 0
        %3311 = vmatpush1.bf16.msra.mxu0 0
        %3312 = vmatprep.subr.bf16.mxu0 0
        %3313 = vmatpush1.bf16.msra.mxu0 0
        %3314 = vmatprep.subr.bf16.mxu0 0
        %3315 = vmatpush1.bf16.msra.mxu0 0
        %3316 = vmatprep.subr.bf16.mxu0 0
        %3317 = vmatpush1.bf16.msra.mxu0 %v3299
        %3318 = vmatprep.subr.bf16.mxu0 0
        %3319 = vmatpush1.bf16.msra.mxu0 %v3298
        %3320 = vmatprep.subr.bf16.mxu0 0
        %3321 = vmatpush1.bf16.msra.mxu0 %v3297
        %3322 = vmatprep.subr.bf16.mxu0 0
        %3323 = vmatpush1.bf16.msra.mxu0 %v3296
        %3324 = vmatprep.subr.bf16.mxu0 0
        %3325 = vmatpush2.bf16.msra.mxu0 0
        %3326 = vmatprep.subr.bf16.mxu0 0
        %3327 = vmatpush2.bf16.msra.mxu0 0
        %3328 = vmatprep.subr.bf16.mxu0 0
        %3329 = vmatpush2.bf16.msra.mxu0 0
        %3330 = vmatprep.subr.bf16.mxu0 0
        %3331 = vmatpush2.bf16.msra.mxu0 0
        %3332 = vmatprep.subr.bf16.mxu0 0
        %3333 = vmatpush2.bf16.msra.mxu0 0
        %3334 = vmatprep.subr.bf16.mxu0 0
        %3335 = vmatpush2.bf16.msra.mxu0 0
        %3336 = vmatprep.subr.bf16.mxu0 0
        %3337 = vmatpush2.bf16.msra.mxu0 0
        %3338 = vmatprep.subr.bf16.mxu0 0
        %3339 = vmatpush2.bf16.msra.mxu0 0
        %3340 = vmatprep.mubr.bf16.mxu0 0
        %3341 = vmatmul.mubr.bf16.gmra.mxu0 %v3306
        %v3342 = vpop.f32.mrf.mxu0
        %v3343 = vadd.f32 %v3279, %v3342
        %v3344 = vpop.f32.mrf.mxu0
        %v3345 = vpop.f32.mrf.mxu0
        %v3346 = vpop.f32.mrf.mxu0
        %3347 = vdwg.mxu0
        %3348 = vst [vmem:[%s378] sm:$0x1] %v3343
        %s3349 = sand.u32 %s269, 1
        %s3350 = scalar_lea.sflag [#allocation3], %s3349
        %s3351 = sand.u32 %s269, 1
        %s3352 = scalar_lea.vmem [#allocation2], %s3351
        // Predicated region
        $region65: #{lenet_forward.1} parent=63 // pred_check
          %p3353 = pneg %p279
        $region66: #{lenet_forward.1} parent=63 // pred_check_branch
          %3355 = sbr.rel (%p3353) target = $region68
        $region67: #{lenet_forward.1} parent=63 // pred_region
          %s3357 = ssub.s32 16, 16
          %3358 = vsyncadd %s3350, %s3357
          %s3359 = smul.addr %s25, 16
          %s3360 = scalar_lea.hbm %s11, %s3359
          %s3362 = sshll.u32 %s3352, 4
          %s3363 = int_to_ptr.vmem [resolvable:$true] %s3362
          %3365 = dma.vmem_to_hbm [thread:$0]  %s3363, 16, %s3360, %s3350
        $region68: #{lenet_forward.1} parent=63 // pred_fallthru
          _
      $region64: #{lenet_forward.1} parent=5 // pred_fallthru
        _
      %p3366 = scmp.le.s32.totalorder 2, %s20
      // Predicated region
      $region69: #{lenet_forward.1} parent=5 // pred_check
        %p3367 = pneg %p3366
      $region70: #{lenet_forward.1} parent=5 // pred_check_branch
        %3369 = sbr.rel (%p3367) target = $region72
      $region71: #{lenet_forward.1} parent=5 // pred_region
        %s3370 = ssub.s32 %s20, 2
        // Predicated region
        $region73: #{lenet_forward.1} parent=71 // pred_check
          %p3371 = pneg %p285
        $region74: #{lenet_forward.1} parent=71 // pred_check_branch
          %3373 = sbr.rel (%p3371) target = $region76
        $region75: #{lenet_forward.1} parent=71 // pred_region
          %s3374 = sand.u32 %s270, 1
          %s3375 = scalar_lea.sflag [#allocation3], %s3374
          %s3376 = sand.u32 %s270, 1
          %s3377 = scalar_lea.vmem [#allocation2], %s3376
          %3378 = dma.done %s3375, 16
        $region76: #{lenet_forward.1} parent=71 // pred_fallthru
          _
      $region72: #{lenet_forward.1} parent=5 // pred_fallthru
        _
    $region6: #{lenet_forward.1} parent=1 // loop_footer
      %s24 = sadd.s32 1, %s20
    $region7: #{lenet_forward.1} parent=1 // loop_footer_branch
      %19 = sbr.rel target = $region3
    $region8: #{lenet_forward.1} parent=1 // loop_exit
      _
    %3379 = vsyncpa [#allocation3], 1
    %s3380 = scalar_lea.sflag [#allocation3], 1
    %3381 = vsyncpa %s3380, 1

</llo_original>
